<compile_context>
chip_gen: v6e
topology: v6e:2x2x1
jax: 0.10.0
libtpu: 0.0.40
codegen_flags: <defaults>
</compile_context>

<pallas_src>
import jax
import jax.numpy as jnp
import numpy as np
from jax.experimental import pallas as pl
from jax.experimental.pallas import tpu as pltpu

BN_EPS = 1e-5
LANE = 128
VMEM_LIMIT = 48 * 1024 * 1024          # v7x-safe (64 MiB physical per TC)

# ConvTranspose2d(k=4, s=2, p=1) sub-pixel decomposition: output phase r (0/1)
# at input position m reads the 3-wide window x[m-1 .. m+1]; window offset ti
# maps to the original kernel tap index below (others are structural zeros).
_PS_TAPS = {0: {0: 3, 1: 1},     # even output rows/cols
            1: {1: 2, 2: 0}}     # odd  output rows/cols


def _round_up(x, m):
    return (x + m - 1) // m * m


def _pick_tm(m):
    # Final (tiled) layer only: >=2 grid steps whenever M >= 512 so both v7x
    # TensorCores get work; tiles stay tiny so VMEM use is trivial.
    if m >= 2048:
        return 512
    if m >= 512:
        return 256
    return _round_up(m, 16)    # bf16 min tile is (16, 128)


# ----------------------------- Pallas kernels ------------------------------

def _fused_conv_bn_relu_kernel(p_ref, w_ref, g_ref, gamma_ref, beta_ref, o_ref):
    """One layer in one call: matmul (bf16 in, f32 acc on the MXU), train-mode
    BatchNorm statistics + scale/shift, ReLU, bf16 store.  g_ref is a
    precomputed (128,128) channel-group matrix holding 1/count inside each
    channel group (diag/count for stride-1 layers, 4-phase groups for the
    sub-pixel stride-2 layers), so `colsum @ g` is directly the per-column
    broadcasted channel mean."""
    y = jnp.dot(p_ref[...], w_ref[...], preferred_element_type=jnp.float32)
    cp = y.shape[1]
    s1 = jnp.sum(y, axis=0, keepdims=True)          # (1, 128) f32
    s2 = jnp.sum(y * y, axis=0, keepdims=True)      # (1, 128) f32
    g = g_ref[...]
    # Broadcast to 8 sublanes so the tiny group-reduce matmul has a clean tile.
    mean = jnp.dot(jnp.broadcast_to(s1, (8, cp)), g,
                   preferred_element_type=jnp.float32)[0:1, :]
    msq = jnp.dot(jnp.broadcast_to(s2, (8, cp)), g,
                  preferred_element_type=jnp.float32)[0:1, :]
    var = jnp.maximum(msq - mean * mean, 0.0)       # biased var = train-mode BN
    scale = gamma_ref[...] * jax.lax.rsqrt(var + BN_EPS)
    shift = beta_ref[...] - mean * scale
    o_ref[...] = jnp.maximum(y * scale + shift, 0.0).astype(o_ref.dtype)


def _matmul_tanh_kernel(p_ref, w_ref, o_ref):
    y = jnp.dot(p_ref[...], w_ref[...], preferred_element_type=jnp.float32)
    o_ref[...] = jnp.tanh(y).astype(o_ref.dtype)


# --------------------------- pallas_call wrappers ---------------------------

def fused_conv_bn_relu(patches, w_mat, g_mat, gamma_col, beta_col):
    """Whole BN layer in a single grid step.  Max M for a BN layer here is 512,
    so the full (M,K)x(K,128) working set is <1 MiB of VMEM; these layers are
    launch-latency bound, so one fused call beats a parallel two-pass."""
    m_pad, k_pad = patches.shape
    cp = w_mat.shape[1]
    cost = pl.CostEstimate(
        flops=2 * m_pad * k_pad * cp + 6 * m_pad * cp + 4 * 8 * cp * cp,
        transcendentals=cp,
        bytes_accessed=(m_pad * k_pad * 2 + k_pad * cp * 2 + cp * cp * 4 +
                        2 * cp * 4 + m_pad * cp * 2))
    return pl.pallas_call(
        _fused_conv_bn_relu_kernel,
        grid=(1,),
        in_specs=[pl.BlockSpec((m_pad, k_pad), lambda i: (0, 0)),
                  pl.BlockSpec((k_pad, cp), lambda i: (0, 0)),
                  pl.BlockSpec((cp, cp), lambda i: (0, 0)),
                  pl.BlockSpec((1, cp), lambda i: (0, 0)),
                  pl.BlockSpec((1, cp), lambda i: (0, 0))],
        out_specs=pl.BlockSpec((m_pad, cp), lambda i: (0, 0)),
        out_shape=jax.ShapeDtypeStruct((m_pad, cp), jnp.bfloat16),
        compiler_params=pltpu.CompilerParams(
            dimension_semantics=("arbitrary",),
            vmem_limit_bytes=VMEM_LIMIT),
        cost_estimate=cost,
    )(patches, w_mat, g_mat, gamma_col, beta_col)


def matmul_tanh(patches, w_mat, tm):
    """Final layer: M-tiled matmul + Tanh, bf16 out, "parallel" grid so both
    v7x TensorCores run.  (On v5e/v6e a deeper buffer / larger tm could hide
    DMA further, but the streamed patches are only ~0.5 MiB after the
    sub-pixel decomposition.)"""
    m_pad, k_pad = patches.shape
    cp = w_mat.shape[1]
    nt = m_pad // tm
    cost = pl.CostEstimate(
        flops=2 * m_pad * k_pad * cp,
        transcendentals=m_pad * cp,
        bytes_accessed=m_pad * k_pad * 2 + nt * k_pad * cp * 2 + m_pad * cp * 2)
    return pl.pallas_call(
        _matmul_tanh_kernel,
        grid=(nt,),
        in_specs=[pl.BlockSpec((tm, k_pad), lambda i: (i, 0)),
                  pl.BlockSpec((k_pad, cp), lambda i: (0, 0))],
        out_specs=pl.BlockSpec((tm, cp), lambda i: (i, 0)),
        out_shape=jax.ShapeDtypeStruct((m_pad, cp), jnp.bfloat16),
        compiler_params=pltpu.CompilerParams(
            dimension_semantics=("parallel",),
            vmem_limit_bytes=VMEM_LIMIT),
        cost_estimate=cost,
    )(patches, w_mat)


# ------------------------------ JAX glue (NHWC) ------------------------------

def _im2col_nhwc(xp, kh, kw):
    """xp: (N, Hp, Wp, C) -> patches (N*Ho*Wo, kh*kw*C); K index =
    (i*kw + j)*C + c (REAL channels only -- no per-tap lane padding)."""
    n, hp, wp, c = xp.shape
    ho, wo = hp - kh + 1, wp - kw + 1
    cols = [xp[:, i:i + ho, j:j + wo, :] for i in range(kh) for j in range(kw)]
    patches = jnp.concatenate(cols, axis=-1)            # (N, Ho, Wo, kh*kw*C)
    return patches.reshape(n * ho * wo, kh * kw * c), (n, ho, wo)


# ------------------------------ Generator -----------------------------------

class Generator:
    """Mirrors the PyTorch nn.Sequential Generator (DCGAN stage 2), forward
    only, with train-mode BatchNorm batch statistics."""

    def __init__(self, key, nz, ngf, nc):
        # (Cin, Cout, kernel, stride, padding) for each ConvTranspose2d
        self.cfg = [
            (nz,       ngf * 8, 4, 1, 0),
            (ngf * 8,  ngf * 2, 1, 1, 0),
            (ngf * 2,  ngf * 2, 3, 1, 1),
            (ngf * 2,  ngf * 8, 3, 1, 1),
            (ngf * 8,  ngf * 4, 4, 2, 1),
            (ngf * 4,  ngf,     1, 1, 0),
            (ngf,      ngf,     3, 1, 1),
            (ngf,      ngf * 4, 3, 1, 1),
            (ngf * 4,  ngf * 2, 4, 2, 1),
            (ngf * 2,  ngf,     4, 2, 1),
            (ngf,      nc,      4, 2, 1),   # final layer: Tanh, no BN
        ]
        self.layers = []
        n_layers = len(self.cfg)
        for li, (cin, cout, k, s, p) in enumerate(self.cfg):
            key, kw_, kg_ = jax.random.split(key, 3)
            w = 0.02 * jax.random.normal(kw_, (cin, cout, k, k), jnp.float32)
            gamma = 1.0 + 0.02 * jax.random.normal(kg_, (cout,), jnp.float32)
            beta = jnp.zeros((cout,), jnp.float32)
            final = li == n_layers - 1
            self.layers.append(self._prep_layer(
                np.asarray(w), np.asarray(gamma), np.asarray(beta),
                cin, cout, k, s, p, final))
        # TODO(synk): BatchNorm running_mean/running_var buffer updates are not
        # modeled (forward-only; train-mode batch statistics are used).

    @staticmethod
    def _prep_layer(w, gamma, beta, cin, cout, k, s, p, final):
        """Precompute the (K_pad, 128) bf16 matmul weight, the (128,128) BN
        channel-group matrix and the per-column gamma/beta for one layer."""
        if s == 1:
            # ConvTranspose(s=1) == Conv(flip(W)) over an input padded by k-1-p.
            w_conv = w[:, :, ::-1, ::-1].transpose(2, 3, 0, 1)   # (k,k,cin,cout)
            w_conv = w_conv.reshape(k * k * cin, cout)
            window, spatial_pad, phases = k, k - 1 - p, 1
        else:
            # Sub-pixel (pixel-shuffle) decomposition, valid for k=4,s=2,p=1:
            # out[2m+r, 2n+c] is a 2x2-tap conv over x[m-1..m+1, n-1..n+1].
            assert (k, s, p) == (4, 2, 1)
            wps = np.zeros((3, 3, cin, 2, 2, cout), np.float32)
            for r, row_taps in _PS_TAPS.items():
                for ti, ki in row_taps.items():
                    for c, col_taps in _PS_TAPS.items():
                        for tj, kj in col_taps.items():
                            wps[ti, tj, :, r, c, :] = w[:, :, ki, kj]
            w_conv = wps.reshape(9 * cin, 4 * cout)   # cols = (r,c,cout)
            window, spatial_pad, phases = 3, 1, 4

        k_real, n_cols = w_conv.shape
        assert n_cols <= LANE, "output column group must fit in one lane tile"
        k_pad = _round_up(k_real, LANE)               # pad TOTAL K once
        w_mat = np.zeros((k_pad, LANE), np.float32)
        w_mat[:k_real, :n_cols] = w_conv

        layer = dict(window=window, spatial_pad=spatial_pad, phases=phases,
                     cout=cout, n_cols=n_cols, k_pad=k_pad, final=final,
                     w_mat=jnp.asarray(w_mat, jnp.bfloat16))
        if not final:
            group = np.arange(n_cols) % cout          # column -> BN channel
            g01 = (group[:, None] == group[None, :]).astype(np.float32)
            gfull = np.zeros((LANE, LANE), np.float32)
            gfull[:n_cols, :n_cols] = g01             # padded cols -> 0 stats
            gcol = np.zeros((1, LANE), np.float32)
            bcol = np.zeros((1, LANE), np.float32)
            gcol[0, :n_cols] = gamma[group]
            bcol[0, :n_cols] = beta[group]
            layer.update(g01=jnp.asarray(gfull),
                         gamma_col=jnp.asarray(gcol),
                         beta_col=jnp.asarray(bcol))
        return layer

    @staticmethod
    def _apply_layer(x, L):
        sp, win = L['spatial_pad'], L['window']
        xp = jnp.pad(x, ((0, 0), (sp, sp), (sp, sp), (0, 0)))
        # TODO(synk): patches are still materialized by XLA in HBM; tap-shifted
        # in-kernel BlockSpecs / DMA would remove this (now small) HBM stream.
        patches, (n, ho, wo) = _im2col_nhwc(xp, win, win)
        m, k_real = patches.shape
        if L['final']:
            tm = _pick_tm(m)
            m_pad = _round_up(m, tm)
        else:
            m_pad = _round_up(m, 16)
        patches = jnp.pad(patches, ((0, m_pad - m), (0, L['k_pad'] - k_real)))
        patches = patches.astype(jnp.bfloat16)

        if L['final']:
            y = matmul_tanh(patches, L['w_mat'], tm)
        else:
            # count = N*Hout*Wout real elements per channel (zero-padded rows
            # contribute nothing to the in-kernel sums).
            inv_count = 1.0 / float(m * L['phases'])
            y = fused_conv_bn_relu(patches, L['w_mat'], L['g01'] * inv_count,
                                   L['gamma_col'], L['beta_col'])
        y = y[:m, :L['n_cols']]
        if L['phases'] == 1:
            return y.reshape(n, ho, wo, L['cout'])
        # 2x2 pixel shuffle: (r, c, cout) columns -> interleaved spatial pixels.
        y = y.reshape(n, ho, wo, 2, 2, L['cout'])
        y = jnp.transpose(y, (0, 1, 3, 2, 4, 5))
        return y.reshape(n, 2 * ho, 2 * wo, L['cout'])

    def __call__(self, z):
        # NCHW latent (N, nz, 1, 1) -> real-channel NHWC, bf16 for the MXU.
        x = jnp.transpose(z, (0, 2, 3, 1)).astype(jnp.bfloat16)
        for L in self.layers:
            x = self._apply_layer(x, L)
        # (N, 64, 64, nc) bf16 tanh -> NCHW f32 (matches the PyTorch output).
        return jnp.transpose(x, (0, 3, 1, 2)).astype(jnp.float32)


# --------------------------------- main --------------------------------------

if __name__ == "__main__":
    # Small, self-consistent hyperparameters (args.nz, args.ngf, args.nc)
    nz, ngf, nc = 16, 8, 3
    batch = 2

    key = jax.random.PRNGKey(0)
    key, kz = jax.random.split(key)
    gen = Generator(key, nz, ngf, nc)

    # DCGAN latent input: (N, nz, 1, 1) in NCHW
    z = jax.random.normal(kz, (batch, nz, 1, 1), jnp.float32)

    forward = jax.jit(gen.__call__)
    out = jax.block_until_ready(forward(z))

    assert out.shape == (batch, nc, 64, 64), out.shape
    assert bool(jnp.all(jnp.isfinite(out)))
    assert bool(jnp.all(jnp.abs(out) <= 1.0 + 1e-6))  # tanh range
    print("KERNEL_OK")
</pallas_src>

<mosaic_0001>
module attributes {stable_mosaic.version = 11 : i64} {
  func.func @_fused_conv_bn_relu_kernel(%arg0: i32, %arg1: memref<32x256xbf16, #tpu.memory_space<vmem>>, %arg2: memref<256x128xbf16, #tpu.memory_space<vmem>>, %arg3: memref<128x128xf32, #tpu.memory_space<vmem>>, %arg4: memref<1x128xf32, #tpu.memory_space<vmem>>, %arg5: memref<1x128xf32, #tpu.memory_space<vmem>>, %arg6: memref<32x128xbf16, #tpu.memory_space<vmem>>) attributes {dimension_semantics = [#tpu.dimension_semantics<arbitrary>], iteration_bounds = array<i64: 1>, scalar_prefetch = 0 : i64, scratch_operands = 0 : i64, tpu.core_type = #tpu.core_type<tc>, window_params = [{pipeline_mode = #tpu.pipeline_mode<synchronous>, transform_indices = @transform_0, window_bounds = array<i64: 32, 256>}, {pipeline_mode = #tpu.pipeline_mode<synchronous>, transform_indices = @transform_1, window_bounds = array<i64: 256, 128>}, {pipeline_mode = #tpu.pipeline_mode<synchronous>, transform_indices = @transform_2, window_bounds = array<i64: 128, 128>}, {pipeline_mode = #tpu.pipeline_mode<synchronous>, transform_indices = @transform_3, window_bounds = array<i64: 1, 128>}, {pipeline_mode = #tpu.pipeline_mode<synchronous>, transform_indices = @transform_4, window_bounds = array<i64: 1, 128>}, {pipeline_mode = #tpu.pipeline_mode<synchronous>, transform_indices = @transform_5, window_bounds = array<i64: 32, 128>}]} {
    %c0 = arith.constant 0 : index
    %c0_0 = arith.constant 0 : index
    %0 = vector.load %arg1[%c0, %c0_0] : memref<32x256xbf16, #tpu.memory_space<vmem>>, vector<32x256xbf16>
    %c0_1 = arith.constant 0 : index
    %c0_2 = arith.constant 0 : index
    %1 = vector.load %arg2[%c0_1, %c0_2] : memref<256x128xbf16, #tpu.memory_space<vmem>>, vector<256x128xbf16>
    %cst = arith.constant dense<0.000000e+00> : vector<32x128xf32>
    %2 = tpu.matmul %0, %1, %cst {dimension_numbers = #tpu.dot_dimension_numbers<[1], [0], [0], [1], [0, 0, 1, 1], [], []>} : vector<32x256xbf16>, vector<256x128xbf16>, vector<32x128xf32> -> vector<32x128xf32>
    %cst_3 = arith.constant dense<0.000000e+00> : vector<128xf32>
    %3 = vector.multi_reduction <add>, %2, %cst_3 [0] : vector<32x128xf32> to vector<128xf32>
    %4 = vector.shape_cast %3 : vector<128xf32> to vector<1x128xf32>
    %5 = arith.mulf %2, %2 : vector<32x128xf32>
    %cst_4 = arith.constant dense<0.000000e+00> : vector<128xf32>
    %6 = vector.multi_reduction <add>, %5, %cst_4 [0] : vector<32x128xf32> to vector<128xf32>
    %7 = vector.shape_cast %6 : vector<128xf32> to vector<1x128xf32>
    %c0_5 = arith.constant 0 : index
    %c0_6 = arith.constant 0 : index
    %8 = vector.load %arg3[%c0_5, %c0_6] : memref<128x128xf32, #tpu.memory_space<vmem>>, vector<128x128xf32>
    %9 = vector.shape_cast %4 : vector<1x128xf32> to vector<1x128xf32>
    %10 = vector.broadcast %9 : vector<1x128xf32> to vector<8x128xf32>
    %cst_7 = arith.constant dense<0.000000e+00> : vector<8x128xf32>
    %11 = tpu.matmul %10, %8, %cst_7 {dimension_numbers = #tpu.dot_dimension_numbers<[1], [0], [0], [1], [0, 0, 1, 1], [], []>} : vector<8x128xf32>, vector<128x128xf32>, vector<8x128xf32> -> vector<8x128xf32>
    %12 = vector.extract_strided_slice %11 {offsets = [0, 0], sizes = [1, 128], strides = [1, 1]} : vector<8x128xf32> to vector<1x128xf32>
    %13 = vector.shape_cast %7 : vector<1x128xf32> to vector<1x128xf32>
    %14 = vector.broadcast %13 : vector<1x128xf32> to vector<8x128xf32>
    %cst_8 = arith.constant dense<0.000000e+00> : vector<8x128xf32>
    %15 = tpu.matmul %14, %8, %cst_8 {dimension_numbers = #tpu.dot_dimension_numbers<[1], [0], [0], [1], [0, 0, 1, 1], [], []>} : vector<8x128xf32>, vector<128x128xf32>, vector<8x128xf32> -> vector<8x128xf32>
    %16 = vector.extract_strided_slice %15 {offsets = [0, 0], sizes = [1, 128], strides = [1, 1]} : vector<8x128xf32> to vector<1x128xf32>
    %17 = arith.mulf %12, %12 : vector<1x128xf32>
    %18 = arith.subf %16, %17 : vector<1x128xf32>
    %cst_9 = arith.constant 0.000000e+00 : f32
    %19 = vector.broadcast %cst_9 : f32 to vector<1x128xf32>
    %20 = arith.maximumf %18, %19 : vector<1x128xf32>
    %c0_10 = arith.constant 0 : index
    %c0_11 = arith.constant 0 : index
    %21 = vector.load %arg4[%c0_10, %c0_11] : memref<1x128xf32, #tpu.memory_space<vmem>>, vector<1x128xf32>
    %cst_12 = arith.constant 9.99999974E-6 : f32
    %22 = vector.broadcast %cst_12 : f32 to vector<1x128xf32>
    %23 = arith.addf %20, %22 : vector<1x128xf32>
    %24 = math.rsqrt %23 : vector<1x128xf32>
    %25 = arith.mulf %21, %24 : vector<1x128xf32>
    %c0_13 = arith.constant 0 : index
    %c0_14 = arith.constant 0 : index
    %26 = vector.load %arg5[%c0_13, %c0_14] : memref<1x128xf32, #tpu.memory_space<vmem>>, vector<1x128xf32>
    %27 = arith.mulf %12, %25 : vector<1x128xf32>
    %28 = arith.subf %26, %27 : vector<1x128xf32>
    %29 = vector.broadcast %25 : vector<1x128xf32> to vector<32x128xf32>
    %30 = arith.mulf %2, %29 : vector<32x128xf32>
    %31 = vector.broadcast %28 : vector<1x128xf32> to vector<32x128xf32>
    %32 = arith.addf %30, %31 : vector<32x128xf32>
    %cst_15 = arith.constant 0.000000e+00 : f32
    %33 = vector.broadcast %cst_15 : f32 to vector<32x128xf32>
    %34 = arith.maximumf %32, %33 : vector<32x128xf32>
    %35 = arith.truncf %34 : vector<32x128xf32> to vector<32x128xbf16>
    %c0_16 = arith.constant 0 : index
    %c0_17 = arith.constant 0 : index
    %36 = vector.load %arg6[%c0_16, %c0_17] : memref<32x128xbf16, #tpu.memory_space<vmem>>, vector<32x128xbf16>
    tpu.vector_store %arg6[%c0_16, %c0_17], %35 {strides = array<i32>} : memref<32x128xbf16, #tpu.memory_space<vmem>>, vector<32x128xbf16>,
    return
  }
  func.func @transform_0(%arg0: i32) -> (i32, i32) {
    %c0_i32 = arith.constant 0 : i32
    %c0_i32_0 = arith.constant 0 : i32
    %c0_i32_1 = arith.constant 0 : i32
    return %c0_i32, %c0_i32_0 : i32, i32
  }
  func.func @transform_1(%arg0: i32) -> (i32, i32) {
    %c0_i32 = arith.constant 0 : i32
    %c0_i32_0 = arith.constant 0 : i32
    %c0_i32_1 = arith.constant 0 : i32
    return %c0_i32, %c0_i32_0 : i32, i32
  }
  func.func @transform_2(%arg0: i32) -> (i32, i32) {
    %c0_i32 = arith.constant 0 : i32
    %c0_i32_0 = arith.constant 0 : i32
    %c0_i32_1 = arith.constant 0 : i32
    return %c0_i32, %c0_i32_0 : i32, i32
  }
  func.func @transform_3(%arg0: i32) -> (i32, i32) {
    %c0_i32 = arith.constant 0 : i32
    %c0_i32_0 = arith.constant 0 : i32
    %c0_i32_1 = arith.constant 0 : i32
    return %c0_i32, %c0_i32_0 : i32, i32
  }
  func.func @transform_4(%arg0: i32) -> (i32, i32) {
    %c0_i32 = arith.constant 0 : i32
    %c0_i32_0 = arith.constant 0 : i32
    %c0_i32_1 = arith.constant 0 : i32
    return %c0_i32, %c0_i32_0 : i32, i32
  }
  func.func @transform_5(%arg0: i32) -> (i32, i32) {
    %c0_i32 = arith.constant 0 : i32
    %c0_i32_0 = arith.constant 0 : i32
    %c0_i32_1 = arith.constant 0 : i32
    return %c0_i32, %c0_i32_0 : i32, i32
  }
}

module attributes {stable_mosaic.version = 11 : i64} {
  func.func @_fused_conv_bn_relu_kernel(%arg0: i32, %arg1: memref<32x128xbf16, #tpu.memory_space<vmem>>, %arg2: memref<128x128xbf16, #tpu.memory_space<vmem>>, %arg3: memref<128x128xf32, #tpu.memory_space<vmem>>, %arg4: memref<1x128xf32, #tpu.memory_space<vmem>>, %arg5: memref<1x128xf32, #tpu.memory_space<vmem>>, %arg6: memref<32x128xbf16, #tpu.memory_space<vmem>>) attributes {dimension_semantics = [#tpu.dimension_semantics<arbitrary>], iteration_bounds = array<i64: 1>, scalar_prefetch = 0 : i64, scratch_operands = 0 : i64, tpu.core_type = #tpu.core_type<tc>, window_params = [{pipeline_mode = #tpu.pipeline_mode<synchronous>, transform_indices = @transform_0, window_bounds = array<i64: 32, 128>}, {pipeline_mode = #tpu.pipeline_mode<synchronous>, transform_indices = @transform_1, window_bounds = array<i64: 128, 128>}, {pipeline_mode = #tpu.pipeline_mode<synchronous>, transform_indices = @transform_2, window_bounds = array<i64: 128, 128>}, {pipeline_mode = #tpu.pipeline_mode<synchronous>, transform_indices = @transform_3, window_bounds = array<i64: 1, 128>}, {pipeline_mode = #tpu.pipeline_mode<synchronous>, transform_indices = @transform_4, window_bounds = array<i64: 1, 128>}, {pipeline_mode = #tpu.pipeline_mode<synchronous>, transform_indices = @transform_5, window_bounds = array<i64: 32, 128>}]} {
    %c0 = arith.constant 0 : index
    %c0_0 = arith.constant 0 : index
    %0 = vector.load %arg1[%c0, %c0_0] : memref<32x128xbf16, #tpu.memory_space<vmem>>, vector<32x128xbf16>
    %c0_1 = arith.constant 0 : index
    %c0_2 = arith.constant 0 : index
    %1 = vector.load %arg2[%c0_1, %c0_2] : memref<128x128xbf16, #tpu.memory_space<vmem>>, vector<128x128xbf16>
    %cst = arith.constant dense<0.000000e+00> : vector<32x128xf32>
    %2 = tpu.matmul %0, %1, %cst {dimension_numbers = #tpu.dot_dimension_numbers<[1], [0], [0], [1], [0, 0, 1, 1], [], []>} : vector<32x128xbf16>, vector<128x128xbf16>, vector<32x128xf32> -> vector<32x128xf32>
    %cst_3 = arith.constant dense<0.000000e+00> : vector<128xf32>
    %3 = vector.multi_reduction <add>, %2, %cst_3 [0] : vector<32x128xf32> to vector<128xf32>
    %4 = vector.shape_cast %3 : vector<128xf32> to vector<1x128xf32>
    %5 = arith.mulf %2, %2 : vector<32x128xf32>
    %cst_4 = arith.constant dense<0.000000e+00> : vector<128xf32>
    %6 = vector.multi_reduction <add>, %5, %cst_4 [0] : vector<32x128xf32> to vector<128xf32>
    %7 = vector.shape_cast %6 : vector<128xf32> to vector<1x128xf32>
    %c0_5 = arith.constant 0 : index
    %c0_6 = arith.constant 0 : index
    %8 = vector.load %arg3[%c0_5, %c0_6] : memref<128x128xf32, #tpu.memory_space<vmem>>, vector<128x128xf32>
    %9 = vector.shape_cast %4 : vector<1x128xf32> to vector<1x128xf32>
    %10 = vector.broadcast %9 : vector<1x128xf32> to vector<8x128xf32>
    %cst_7 = arith.constant dense<0.000000e+00> : vector<8x128xf32>
    %11 = tpu.matmul %10, %8, %cst_7 {dimension_numbers = #tpu.dot_dimension_numbers<[1], [0], [0], [1], [0, 0, 1, 1], [], []>} : vector<8x128xf32>, vector<128x128xf32>, vector<8x128xf32> -> vector<8x128xf32>
    %12 = vector.extract_strided_slice %11 {offsets = [0, 0], sizes = [1, 128], strides = [1, 1]} : vector<8x128xf32> to vector<1x128xf32>
    %13 = vector.shape_cast %7 : vector<1x128xf32> to vector<1x128xf32>
    %14 = vector.broadcast %13 : vector<1x128xf32> to vector<8x128xf32>
    %cst_8 = arith.constant dense<0.000000e+00> : vector<8x128xf32>
    %15 = tpu.matmul %14, %8, %cst_8 {dimension_numbers = #tpu.dot_dimension_numbers<[1], [0], [0], [1], [0, 0, 1, 1], [], []>} : vector<8x128xf32>, vector<128x128xf32>, vector<8x128xf32> -> vector<8x128xf32>
    %16 = vector.extract_strided_slice %15 {offsets = [0, 0], sizes = [1, 128], strides = [1, 1]} : vector<8x128xf32> to vector<1x128xf32>
    %17 = arith.mulf %12, %12 : vector<1x128xf32>
    %18 = arith.subf %16, %17 : vector<1x128xf32>
    %cst_9 = arith.constant 0.000000e+00 : f32
    %19 = vector.broadcast %cst_9 : f32 to vector<1x128xf32>
    %20 = arith.maximumf %18, %19 : vector<1x128xf32>
    %c0_10 = arith.constant 0 : index
    %c0_11 = arith.constant 0 : index
    %21 = vector.load %arg4[%c0_10, %c0_11] : memref<1x128xf32, #tpu.memory_space<vmem>>, vector<1x128xf32>
    %cst_12 = arith.constant 9.99999974E-6 : f32
    %22 = vector.broadcast %cst_12 : f32 to vector<1x128xf32>
    %23 = arith.addf %20, %22 : vector<1x128xf32>
    %24 = math.rsqrt %23 : vector<1x128xf32>
    %25 = arith.mulf %21, %24 : vector<1x128xf32>
    %c0_13 = arith.constant 0 : index
    %c0_14 = arith.constant 0 : index
    %26 = vector.load %arg5[%c0_13, %c0_14] : memref<1x128xf32, #tpu.memory_space<vmem>>, vector<1x128xf32>
    %27 = arith.mulf %12, %25 : vector<1x128xf32>
    %28 = arith.subf %26, %27 : vector<1x128xf32>
    %29 = vector.broadcast %25 : vector<1x128xf32> to vector<32x128xf32>
    %30 = arith.mulf %2, %29 : vector<32x128xf32>
    %31 = vector.broadcast %28 : vector<1x128xf32> to vector<32x128xf32>
    %32 = arith.addf %30, %31 : vector<32x128xf32>
    %cst_15 = arith.constant 0.000000e+00 : f32
    %33 = vector.broadcast %cst_15 : f32 to vector<32x128xf32>
    %34 = arith.maximumf %32, %33 : vector<32x128xf32>
    %35 = arith.truncf %34 : vector<32x128xf32> to vector<32x128xbf16>
    %c0_16 = arith.constant 0 : index
    %c0_17 = arith.constant 0 : index
    %36 = vector.load %arg6[%c0_16, %c0_17] : memref<32x128xbf16, #tpu.memory_space<vmem>>, vector<32x128xbf16>
    tpu.vector_store %arg6[%c0_16, %c0_17], %35 {strides = array<i32>} : memref<32x128xbf16, #tpu.memory_space<vmem>>, vector<32x128xbf16>,
    return
  }
  func.func @transform_0(%arg0: i32) -> (i32, i32) {
    %c0_i32 = arith.constant 0 : i32
    %c0_i32_0 = arith.constant 0 : i32
    %c0_i32_1 = arith.constant 0 : i32
    return %c0_i32, %c0_i32_0 : i32, i32
  }
  func.func @transform_1(%arg0: i32) -> (i32, i32) {
    %c0_i32 = arith.constant 0 : i32
    %c0_i32_0 = arith.constant 0 : i32
    %c0_i32_1 = arith.constant 0 : i32
    return %c0_i32, %c0_i32_0 : i32, i32
  }
  func.func @transform_2(%arg0: i32) -> (i32, i32) {
    %c0_i32 = arith.constant 0 : i32
    %c0_i32_0 = arith.constant 0 : i32
    %c0_i32_1 = arith.constant 0 : i32
    return %c0_i32, %c0_i32_0 : i32, i32
  }
  func.func @transform_3(%arg0: i32) -> (i32, i32) {
    %c0_i32 = arith.constant 0 : i32
    %c0_i32_0 = arith.constant 0 : i32
    %c0_i32_1 = arith.constant 0 : i32
    return %c0_i32, %c0_i32_0 : i32, i32
  }
  func.func @transform_4(%arg0: i32) -> (i32, i32) {
    %c0_i32 = arith.constant 0 : i32
    %c0_i32_0 = arith.constant 0 : i32
    %c0_i32_1 = arith.constant 0 : i32
    return %c0_i32, %c0_i32_0 : i32, i32
  }
  func.func @transform_5(%arg0: i32) -> (i32, i32) {
    %c0_i32 = arith.constant 0 : i32
    %c0_i32_0 = arith.constant 0 : i32
    %c0_i32_1 = arith.constant 0 : i32
    return %c0_i32, %c0_i32_0 : i32, i32
  }
}

module attributes {stable_mosaic.version = 11 : i64} {
  func.func @_fused_conv_bn_relu_kernel(%arg0: i32, %arg1: memref<32x640xbf16, #tpu.memory_space<vmem>>, %arg2: memref<640x128xbf16, #tpu.memory_space<vmem>>, %arg3: memref<128x128xf32, #tpu.memory_space<vmem>>, %arg4: memref<1x128xf32, #tpu.memory_space<vmem>>, %arg5: memref<1x128xf32, #tpu.memory_space<vmem>>, %arg6: memref<32x128xbf16, #tpu.memory_space<vmem>>) attributes {dimension_semantics = [#tpu.dimension_semantics<arbitrary>], iteration_bounds = array<i64: 1>, scalar_prefetch = 0 : i64, scratch_operands = 0 : i64, tpu.core_type = #tpu.core_type<tc>, window_params = [{pipeline_mode = #tpu.pipeline_mode<synchronous>, transform_indices = @transform_0, window_bounds = array<i64: 32, 640>}, {pipeline_mode = #tpu.pipeline_mode<synchronous>, transform_indices = @transform_1, window_bounds = array<i64: 640, 128>}, {pipeline_mode = #tpu.pipeline_mode<synchronous>, transform_indices = @transform_2, window_bounds = array<i64: 128, 128>}, {pipeline_mode = #tpu.pipeline_mode<synchronous>, transform_indices = @transform_3, window_bounds = array<i64: 1, 128>}, {pipeline_mode = #tpu.pipeline_mode<synchronous>, transform_indices = @transform_4, window_bounds = array<i64: 1, 128>}, {pipeline_mode = #tpu.pipeline_mode<synchronous>, transform_indices = @transform_5, window_bounds = array<i64: 32, 128>}]} {
    %c0 = arith.constant 0 : index
    %c0_0 = arith.constant 0 : index
    %0 = vector.load %arg1[%c0, %c0_0] : memref<32x640xbf16, #tpu.memory_space<vmem>>, vector<32x640xbf16>
    %c0_1 = arith.constant 0 : index
    %c0_2 = arith.constant 0 : index
    %1 = vector.load %arg2[%c0_1, %c0_2] : memref<640x128xbf16, #tpu.memory_space<vmem>>, vector<640x128xbf16>
    %cst = arith.constant dense<0.000000e+00> : vector<32x128xf32>
    %2 = tpu.matmul %0, %1, %cst {dimension_numbers = #tpu.dot_dimension_numbers<[1], [0], [0], [1], [0, 0, 1, 1], [], []>} : vector<32x640xbf16>, vector<640x128xbf16>, vector<32x128xf32> -> vector<32x128xf32>
    %cst_3 = arith.constant dense<0.000000e+00> : vector<128xf32>
    %3 = vector.multi_reduction <add>, %2, %cst_3 [0] : vector<32x128xf32> to vector<128xf32>
    %4 = vector.shape_cast %3 : vector<128xf32> to vector<1x128xf32>
    %5 = arith.mulf %2, %2 : vector<32x128xf32>
    %cst_4 = arith.constant dense<0.000000e+00> : vector<128xf32>
    %6 = vector.multi_reduction <add>, %5, %cst_4 [0] : vector<32x128xf32> to vector<128xf32>
    %7 = vector.shape_cast %6 : vector<128xf32> to vector<1x128xf32>
    %c0_5 = arith.constant 0 : index
    %c0_6 = arith.constant 0 : index
    %8 = vector.load %arg3[%c0_5, %c0_6] : memref<128x128xf32, #tpu.memory_space<vmem>>, vector<128x128xf32>
    %9 = vector.shape_cast %4 : vector<1x128xf32> to vector<1x128xf32>
    %10 = vector.broadcast %9 : vector<1x128xf32> to vector<8x128xf32>
    %cst_7 = arith.constant dense<0.000000e+00> : vector<8x128xf32>
    %11 = tpu.matmul %10, %8, %cst_7 {dimension_numbers = #tpu.dot_dimension_numbers<[1], [0], [0], [1], [0, 0, 1, 1], [], []>} : vector<8x128xf32>, vector<128x128xf32>, vector<8x128xf32> -> vector<8x128xf32>
    %12 = vector.extract_strided_slice %11 {offsets = [0, 0], sizes = [1, 128], strides = [1, 1]} : vector<8x128xf32> to vector<1x128xf32>
    %13 = vector.shape_cast %7 : vector<1x128xf32> to vector<1x128xf32>
    %14 = vector.broadcast %13 : vector<1x128xf32> to vector<8x128xf32>
    %cst_8 = arith.constant dense<0.000000e+00> : vector<8x128xf32>
    %15 = tpu.matmul %14, %8, %cst_8 {dimension_numbers = #tpu.dot_dimension_numbers<[1], [0], [0], [1], [0, 0, 1, 1], [], []>} : vector<8x128xf32>, vector<128x128xf32>, vector<8x128xf32> -> vector<8x128xf32>
    %16 = vector.extract_strided_slice %15 {offsets = [0, 0], sizes = [1, 128], strides = [1, 1]} : vector<8x128xf32> to vector<1x128xf32>
    %17 = arith.mulf %12, %12 : vector<1x128xf32>
    %18 = arith.subf %16, %17 : vector<1x128xf32>
    %cst_9 = arith.constant 0.000000e+00 : f32
    %19 = vector.broadcast %cst_9 : f32 to vector<1x128xf32>
    %20 = arith.maximumf %18, %19 : vector<1x128xf32>
    %c0_10 = arith.constant 0 : index
    %c0_11 = arith.constant 0 : index
    %21 = vector.load %arg4[%c0_10, %c0_11] : memref<1x128xf32, #tpu.memory_space<vmem>>, vector<1x128xf32>
    %cst_12 = arith.constant 9.99999974E-6 : f32
    %22 = vector.broadcast %cst_12 : f32 to vector<1x128xf32>
    %23 = arith.addf %20, %22 : vector<1x128xf32>
    %24 = math.rsqrt %23 : vector<1x128xf32>
    %25 = arith.mulf %21, %24 : vector<1x128xf32>
    %c0_13 = arith.constant 0 : index
    %c0_14 = arith.constant 0 : index
    %26 = vector.load %arg5[%c0_13, %c0_14] : memref<1x128xf32, #tpu.memory_space<vmem>>, vector<1x128xf32>
    %27 = arith.mulf %12, %25 : vector<1x128xf32>
    %28 = arith.subf %26, %27 : vector<1x128xf32>
    %29 = vector.broadcast %25 : vector<1x128xf32> to vector<32x128xf32>
    %30 = arith.mulf %2, %29 : vector<32x128xf32>
    %31 = vector.broadcast %28 : vector<1x128xf32> to vector<32x128xf32>
    %32 = arith.addf %30, %31 : vector<32x128xf32>
    %cst_15 = arith.constant 0.000000e+00 : f32
    %33 = vector.broadcast %cst_15 : f32 to vector<32x128xf32>
    %34 = arith.maximumf %32, %33 : vector<32x128xf32>
    %35 = arith.truncf %34 : vector<32x128xf32> to vector<32x128xbf16>
    %c0_16 = arith.constant 0 : index
    %c0_17 = arith.constant 0 : index
    %36 = vector.load %arg6[%c0_16, %c0_17] : memref<32x128xbf16, #tpu.memory_space<vmem>>, vector<32x128xbf16>
    tpu.vector_store %arg6[%c0_16, %c0_17], %35 {strides = array<i32>} : memref<32x128xbf16, #tpu.memory_space<vmem>>, vector<32x128xbf16>,
    return
  }
  func.func @transform_0(%arg0: i32) -> (i32, i32) {
    %c0_i32 = arith.constant 0 : i32
    %c0_i32_0 = arith.constant 0 : i32
    %c0_i32_1 = arith.constant 0 : i32
    return %c0_i32, %c0_i32_0 : i32, i32
  }
  func.func @transform_1(%arg0: i32) -> (i32, i32) {
    %c0_i32 = arith.constant 0 : i32
    %c0_i32_0 = arith.constant 0 : i32
    %c0_i32_1 = arith.constant 0 : i32
    return %c0_i32, %c0_i32_0 : i32, i32
  }
  func.func @transform_2(%arg0: i32) -> (i32, i32) {
    %c0_i32 = arith.constant 0 : i32
    %c0_i32_0 = arith.constant 0 : i32
    %c0_i32_1 = arith.constant 0 : i32
    return %c0_i32, %c0_i32_0 : i32, i32
  }
  func.func @transform_3(%arg0: i32) -> (i32, i32) {
    %c0_i32 = arith.constant 0 : i32
    %c0_i32_0 = arith.constant 0 : i32
    %c0_i32_1 = arith.constant 0 : i32
    return %c0_i32, %c0_i32_0 : i32, i32
  }
  func.func @transform_4(%arg0: i32) -> (i32, i32) {
    %c0_i32 = arith.constant 0 : i32
    %c0_i32_0 = arith.constant 0 : i32
    %c0_i32_1 = arith.constant 0 : i32
    return %c0_i32, %c0_i32_0 : i32, i32
  }
  func.func @transform_5(%arg0: i32) -> (i32, i32) {
    %c0_i32 = arith.constant 0 : i32
    %c0_i32_0 = arith.constant 0 : i32
    %c0_i32_1 = arith.constant 0 : i32
    return %c0_i32, %c0_i32_0 : i32, i32
  }
}

module attributes {stable_mosaic.version = 11 : i64} {
  func.func @_fused_conv_bn_relu_kernel(%arg0: i32, %arg1: memref<128x128xbf16, #tpu.memory_space<vmem>>, %arg2: memref<128x128xbf16, #tpu.memory_space<vmem>>, %arg3: memref<128x128xf32, #tpu.memory_space<vmem>>, %arg4: memref<1x128xf32, #tpu.memory_space<vmem>>, %arg5: memref<1x128xf32, #tpu.memory_space<vmem>>, %arg6: memref<128x128xbf16, #tpu.memory_space<vmem>>) attributes {dimension_semantics = [#tpu.dimension_semantics<arbitrary>], iteration_bounds = array<i64: 1>, scalar_prefetch = 0 : i64, scratch_operands = 0 : i64, tpu.core_type = #tpu.core_type<tc>, window_params = [{pipeline_mode = #tpu.pipeline_mode<synchronous>, transform_indices = @transform_0, window_bounds = array<i64: 128, 128>}, {pipeline_mode = #tpu.pipeline_mode<synchronous>, transform_indices = @transform_1, window_bounds = array<i64: 128, 128>}, {pipeline_mode = #tpu.pipeline_mode<synchronous>, transform_indices = @transform_2, window_bounds = array<i64: 128, 128>}, {pipeline_mode = #tpu.pipeline_mode<synchronous>, transform_indices = @transform_3, window_bounds = array<i64: 1, 128>}, {pipeline_mode = #tpu.pipeline_mode<synchronous>, transform_indices = @transform_4, window_bounds = array<i64: 1, 128>}, {pipeline_mode = #tpu.pipeline_mode<synchronous>, transform_indices = @transform_5, window_bounds = array<i64: 128, 128>}]} {
    %c0 = arith.constant 0 : index
    %c0_0 = arith.constant 0 : index
    %0 = vector.load %arg1[%c0, %c0_0] : memref<128x128xbf16, #tpu.memory_space<vmem>>, vector<128x128xbf16>
    %c0_1 = arith.constant 0 : index
    %c0_2 = arith.constant 0 : index
    %1 = vector.load %arg2[%c0_1, %c0_2] : memref<128x128xbf16, #tpu.memory_space<vmem>>, vector<128x128xbf16>
    %cst = arith.constant dense<0.000000e+00> : vector<128x128xf32>
    %2 = tpu.matmul %0, %1, %cst {dimension_numbers = #tpu.dot_dimension_numbers<[1], [0], [0], [1], [0, 0, 1, 1], [], []>} : vector<128x128xbf16>, vector<128x128xbf16>, vector<128x128xf32> -> vector<128x128xf32>
    %cst_3 = arith.constant dense<0.000000e+00> : vector<128xf32>
    %3 = vector.multi_reduction <add>, %2, %cst_3 [0] : vector<128x128xf32> to vector<128xf32>
    %4 = vector.shape_cast %3 : vector<128xf32> to vector<1x128xf32>
    %5 = arith.mulf %2, %2 : vector<128x128xf32>
    %cst_4 = arith.constant dense<0.000000e+00> : vector<128xf32>
    %6 = vector.multi_reduction <add>, %5, %cst_4 [0] : vector<128x128xf32> to vector<128xf32>
    %7 = vector.shape_cast %6 : vector<128xf32> to vector<1x128xf32>
    %c0_5 = arith.constant 0 : index
    %c0_6 = arith.constant 0 : index
    %8 = vector.load %arg3[%c0_5, %c0_6] : memref<128x128xf32, #tpu.memory_space<vmem>>, vector<128x128xf32>
    %9 = vector.shape_cast %4 : vector<1x128xf32> to vector<1x128xf32>
    %10 = vector.broadcast %9 : vector<1x128xf32> to vector<8x128xf32>
    %cst_7 = arith.constant dense<0.000000e+00> : vector<8x128xf32>
    %11 = tpu.matmul %10, %8, %cst_7 {dimension_numbers = #tpu.dot_dimension_numbers<[1], [0], [0], [1], [0, 0, 1, 1], [], []>} : vector<8x128xf32>, vector<128x128xf32>, vector<8x128xf32> -> vector<8x128xf32>
    %12 = vector.extract_strided_slice %11 {offsets = [0, 0], sizes = [1, 128], strides = [1, 1]} : vector<8x128xf32> to vector<1x128xf32>
    %13 = vector.shape_cast %7 : vector<1x128xf32> to vector<1x128xf32>
    %14 = vector.broadcast %13 : vector<1x128xf32> to vector<8x128xf32>
    %cst_8 = arith.constant dense<0.000000e+00> : vector<8x128xf32>
    %15 = tpu.matmul %14, %8, %cst_8 {dimension_numbers = #tpu.dot_dimension_numbers<[1], [0], [0], [1], [0, 0, 1, 1], [], []>} : vector<8x128xf32>, vector<128x128xf32>, vector<8x128xf32> -> vector<8x128xf32>
    %16 = vector.extract_strided_slice %15 {offsets = [0, 0], sizes = [1, 128], strides = [1, 1]} : vector<8x128xf32> to vector<1x128xf32>
    %17 = arith.mulf %12, %12 : vector<1x128xf32>
    %18 = arith.subf %16, %17 : vector<1x128xf32>
    %cst_9 = arith.constant 0.000000e+00 : f32
    %19 = vector.broadcast %cst_9 : f32 to vector<1x128xf32>
    %20 = arith.maximumf %18, %19 : vector<1x128xf32>
    %c0_10 = arith.constant 0 : index
    %c0_11 = arith.constant 0 : index
    %21 = vector.load %arg4[%c0_10, %c0_11] : memref<1x128xf32, #tpu.memory_space<vmem>>, vector<1x128xf32>
    %cst_12 = arith.constant 9.99999974E-6 : f32
    %22 = vector.broadcast %cst_12 : f32 to vector<1x128xf32>
    %23 = arith.addf %20, %22 : vector<1x128xf32>
    %24 = math.rsqrt %23 : vector<1x128xf32>
    %25 = arith.mulf %21, %24 : vector<1x128xf32>
    %c0_13 = arith.constant 0 : index
    %c0_14 = arith.constant 0 : index
    %26 = vector.load %arg5[%c0_13, %c0_14] : memref<1x128xf32, #tpu.memory_space<vmem>>, vector<1x128xf32>
    %27 = arith.mulf %12, %25 : vector<1x128xf32>
    %28 = arith.subf %26, %27 : vector<1x128xf32>
    %29 = vector.broadcast %25 : vector<1x128xf32> to vector<128x128xf32>
    %30 = arith.mulf %2, %29 : vector<128x128xf32>
    %31 = vector.broadcast %28 : vector<1x128xf32> to vector<128x128xf32>
    %32 = arith.addf %30, %31 : vector<128x128xf32>
    %cst_15 = arith.constant 0.000000e+00 : f32
    %33 = vector.broadcast %cst_15 : f32 to vector<128x128xf32>
    %34 = arith.maximumf %32, %33 : vector<128x128xf32>
    %35 = arith.truncf %34 : vector<128x128xf32> to vector<128x128xbf16>
    %c0_16 = arith.constant 0 : index
    %c0_17 = arith.constant 0 : index
    %36 = vector.load %arg6[%c0_16, %c0_17] : memref<128x128xbf16, #tpu.memory_space<vmem>>, vector<128x128xbf16>
    tpu.vector_store %arg6[%c0_16, %c0_17], %35 {strides = array<i32>} : memref<128x128xbf16, #tpu.memory_space<vmem>>, vector<128x128xbf16>,
    return
  }
  func.func @transform_0(%arg0: i32) -> (i32, i32) {
    %c0_i32 = arith.constant 0 : i32
    %c0_i32_0 = arith.constant 0 : i32
    %c0_i32_1 = arith.constant 0 : i32
    return %c0_i32, %c0_i32_0 : i32, i32
  }
  func.func @transform_1(%arg0: i32) -> (i32, i32) {
    %c0_i32 = arith.constant 0 : i32
    %c0_i32_0 = arith.constant 0 : i32
    %c0_i32_1 = arith.constant 0 : i32
    return %c0_i32, %c0_i32_0 : i32, i32
  }
  func.func @transform_2(%arg0: i32) -> (i32, i32) {
    %c0_i32 = arith.constant 0 : i32
    %c0_i32_0 = arith.constant 0 : i32
    %c0_i32_1 = arith.constant 0 : i32
    return %c0_i32, %c0_i32_0 : i32, i32
  }
  func.func @transform_3(%arg0: i32) -> (i32, i32) {
    %c0_i32 = arith.constant 0 : i32
    %c0_i32_0 = arith.constant 0 : i32
    %c0_i32_1 = arith.constant 0 : i32
    return %c0_i32, %c0_i32_0 : i32, i32
  }
  func.func @transform_4(%arg0: i32) -> (i32, i32) {
    %c0_i32 = arith.constant 0 : i32
    %c0_i32_0 = arith.constant 0 : i32
    %c0_i32_1 = arith.constant 0 : i32
    return %c0_i32, %c0_i32_0 : i32, i32
  }
  func.func @transform_5(%arg0: i32) -> (i32, i32) {
    %c0_i32 = arith.constant 0 : i32
    %c0_i32_0 = arith.constant 0 : i32
    %c0_i32_1 = arith.constant 0 : i32
    return %c0_i32, %c0_i32_0 : i32, i32
  }
}

module attributes {stable_mosaic.version = 11 : i64} {
  func.func @_fused_conv_bn_relu_kernel(%arg0: i32, %arg1: memref<128x384xbf16, #tpu.memory_space<vmem>>, %arg2: memref<384x128xbf16, #tpu.memory_space<vmem>>, %arg3: memref<128x128xf32, #tpu.memory_space<vmem>>, %arg4: memref<1x128xf32, #tpu.memory_space<vmem>>, %arg5: memref<1x128xf32, #tpu.memory_space<vmem>>, %arg6: memref<128x128xbf16, #tpu.memory_space<vmem>>) attributes {dimension_semantics = [#tpu.dimension_semantics<arbitrary>], iteration_bounds = array<i64: 1>, scalar_prefetch = 0 : i64, scratch_operands = 0 : i64, tpu.core_type = #tpu.core_type<tc>, window_params = [{pipeline_mode = #tpu.pipeline_mode<synchronous>, transform_indices = @transform_0, window_bounds = array<i64: 128, 384>}, {pipeline_mode = #tpu.pipeline_mode<synchronous>, transform_indices = @transform_1, window_bounds = array<i64: 384, 128>}, {pipeline_mode = #tpu.pipeline_mode<synchronous>, transform_indices = @transform_2, window_bounds = array<i64: 128, 128>}, {pipeline_mode = #tpu.pipeline_mode<synchronous>, transform_indices = @transform_3, window_bounds = array<i64: 1, 128>}, {pipeline_mode = #tpu.pipeline_mode<synchronous>, transform_indices = @transform_4, window_bounds = array<i64: 1, 128>}, {pipeline_mode = #tpu.pipeline_mode<synchronous>, transform_indices = @transform_5, window_bounds = array<i64: 128, 128>}]} {
    %c0 = arith.constant 0 : index
    %c0_0 = arith.constant 0 : index
    %0 = vector.load %arg1[%c0, %c0_0] : memref<128x384xbf16, #tpu.memory_space<vmem>>, vector<128x384xbf16>
    %c0_1 = arith.constant 0 : index
    %c0_2 = arith.constant 0 : index
    %1 = vector.load %arg2[%c0_1, %c0_2] : memref<384x128xbf16, #tpu.memory_space<vmem>>, vector<384x128xbf16>
    %cst = arith.constant dense<0.000000e+00> : vector<128x128xf32>
    %2 = tpu.matmul %0, %1, %cst {dimension_numbers = #tpu.dot_dimension_numbers<[1], [0], [0], [1], [0, 0, 1, 1], [], []>} : vector<128x384xbf16>, vector<384x128xbf16>, vector<128x128xf32> -> vector<128x128xf32>
    %cst_3 = arith.constant dense<0.000000e+00> : vector<128xf32>
    %3 = vector.multi_reduction <add>, %2, %cst_3 [0] : vector<128x128xf32> to vector<128xf32>
    %4 = vector.shape_cast %3 : vector<128xf32> to vector<1x128xf32>
    %5 = arith.mulf %2, %2 : vector<128x128xf32>
    %cst_4 = arith.constant dense<0.000000e+00> : vector<128xf32>
    %6 = vector.multi_reduction <add>, %5, %cst_4 [0] : vector<128x128xf32> to vector<128xf32>
    %7 = vector.shape_cast %6 : vector<128xf32> to vector<1x128xf32>
    %c0_5 = arith.constant 0 : index
    %c0_6 = arith.constant 0 : index
    %8 = vector.load %arg3[%c0_5, %c0_6] : memref<128x128xf32, #tpu.memory_space<vmem>>, vector<128x128xf32>
    %9 = vector.shape_cast %4 : vector<1x128xf32> to vector<1x128xf32>
    %10 = vector.broadcast %9 : vector<1x128xf32> to vector<8x128xf32>
    %cst_7 = arith.constant dense<0.000000e+00> : vector<8x128xf32>
    %11 = tpu.matmul %10, %8, %cst_7 {dimension_numbers = #tpu.dot_dimension_numbers<[1], [0], [0], [1], [0, 0, 1, 1], [], []>} : vector<8x128xf32>, vector<128x128xf32>, vector<8x128xf32> -> vector<8x128xf32>
    %12 = vector.extract_strided_slice %11 {offsets = [0, 0], sizes = [1, 128], strides = [1, 1]} : vector<8x128xf32> to vector<1x128xf32>
    %13 = vector.shape_cast %7 : vector<1x128xf32> to vector<1x128xf32>
    %14 = vector.broadcast %13 : vector<1x128xf32> to vector<8x128xf32>
    %cst_8 = arith.constant dense<0.000000e+00> : vector<8x128xf32>
    %15 = tpu.matmul %14, %8, %cst_8 {dimension_numbers = #tpu.dot_dimension_numbers<[1], [0], [0], [1], [0, 0, 1, 1], [], []>} : vector<8x128xf32>, vector<128x128xf32>, vector<8x128xf32> -> vector<8x128xf32>
    %16 = vector.extract_strided_slice %15 {offsets = [0, 0], sizes = [1, 128], strides = [1, 1]} : vector<8x128xf32> to vector<1x128xf32>
    %17 = arith.mulf %12, %12 : vector<1x128xf32>
    %18 = arith.subf %16, %17 : vector<1x128xf32>
    %cst_9 = arith.constant 0.000000e+00 : f32
    %19 = vector.broadcast %cst_9 : f32 to vector<1x128xf32>
    %20 = arith.maximumf %18, %19 : vector<1x128xf32>
    %c0_10 = arith.constant 0 : index
    %c0_11 = arith.constant 0 : index
    %21 = vector.load %arg4[%c0_10, %c0_11] : memref<1x128xf32, #tpu.memory_space<vmem>>, vector<1x128xf32>
    %cst_12 = arith.constant 9.99999974E-6 : f32
    %22 = vector.broadcast %cst_12 : f32 to vector<1x128xf32>
    %23 = arith.addf %20, %22 : vector<1x128xf32>
    %24 = math.rsqrt %23 : vector<1x128xf32>
    %25 = arith.mulf %21, %24 : vector<1x128xf32>
    %c0_13 = arith.constant 0 : index
    %c0_14 = arith.constant 0 : index
    %26 = vector.load %arg5[%c0_13, %c0_14] : memref<1x128xf32, #tpu.memory_space<vmem>>, vector<1x128xf32>
    %27 = arith.mulf %12, %25 : vector<1x128xf32>
    %28 = arith.subf %26, %27 : vector<1x128xf32>
    %29 = vector.broadcast %25 : vector<1x128xf32> to vector<128x128xf32>
    %30 = arith.mulf %2, %29 : vector<128x128xf32>
    %31 = vector.broadcast %28 : vector<1x128xf32> to vector<128x128xf32>
    %32 = arith.addf %30, %31 : vector<128x128xf32>
    %cst_15 = arith.constant 0.000000e+00 : f32
    %33 = vector.broadcast %cst_15 : f32 to vector<128x128xf32>
    %34 = arith.maximumf %32, %33 : vector<128x128xf32>
    %35 = arith.truncf %34 : vector<128x128xf32> to vector<128x128xbf16>
    %c0_16 = arith.constant 0 : index
    %c0_17 = arith.constant 0 : index
    %36 = vector.load %arg6[%c0_16, %c0_17] : memref<128x128xbf16, #tpu.memory_space<vmem>>, vector<128x128xbf16>
    tpu.vector_store %arg6[%c0_16, %c0_17], %35 {strides = array<i32>} : memref<128x128xbf16, #tpu.memory_space<vmem>>, vector<128x128xbf16>,
    return
  }
  func.func @transform_0(%arg0: i32) -> (i32, i32) {
    %c0_i32 = arith.constant 0 : i32
    %c0_i32_0 = arith.constant 0 : i32
    %c0_i32_1 = arith.constant 0 : i32
    return %c0_i32, %c0_i32_0 : i32, i32
  }
  func.func @transform_1(%arg0: i32) -> (i32, i32) {
    %c0_i32 = arith.constant 0 : i32
    %c0_i32_0 = arith.constant 0 : i32
    %c0_i32_1 = arith.constant 0 : i32
    return %c0_i32, %c0_i32_0 : i32, i32
  }
  func.func @transform_2(%arg0: i32) -> (i32, i32) {
    %c0_i32 = arith.constant 0 : i32
    %c0_i32_0 = arith.constant 0 : i32
    %c0_i32_1 = arith.constant 0 : i32
    return %c0_i32, %c0_i32_0 : i32, i32
  }
  func.func @transform_3(%arg0: i32) -> (i32, i32) {
    %c0_i32 = arith.constant 0 : i32
    %c0_i32_0 = arith.constant 0 : i32
    %c0_i32_1 = arith.constant 0 : i32
    return %c0_i32, %c0_i32_0 : i32, i32
  }
  func.func @transform_4(%arg0: i32) -> (i32, i32) {
    %c0_i32 = arith.constant 0 : i32
    %c0_i32_0 = arith.constant 0 : i32
    %c0_i32_1 = arith.constant 0 : i32
    return %c0_i32, %c0_i32_0 : i32, i32
  }
  func.func @transform_5(%arg0: i32) -> (i32, i32) {
    %c0_i32 = arith.constant 0 : i32
    %c0_i32_0 = arith.constant 0 : i32
    %c0_i32_1 = arith.constant 0 : i32
    return %c0_i32, %c0_i32_0 : i32, i32
  }
}

module attributes {stable_mosaic.version = 11 : i64} {
  func.func @_fused_conv_bn_relu_kernel(%arg0: i32, %arg1: memref<512x256xbf16, #tpu.memory_space<vmem>>, %arg2: memref<256x128xbf16, #tpu.memory_space<vmem>>, %arg3: memref<128x128xf32, #tpu.memory_space<vmem>>, %arg4: memref<1x128xf32, #tpu.memory_space<vmem>>, %arg5: memref<1x128xf32, #tpu.memory_space<vmem>>, %arg6: memref<512x128xbf16, #tpu.memory_space<vmem>>) attributes {dimension_semantics = [#tpu.dimension_semantics<arbitrary>], iteration_bounds = array<i64: 1>, scalar_prefetch = 0 : i64, scratch_operands = 0 : i64, tpu.core_type = #tpu.core_type<tc>, window_params = [{pipeline_mode = #tpu.pipeline_mode<synchronous>, transform_indices = @transform_0, window_bounds = array<i64: 512, 256>}, {pipeline_mode = #tpu.pipeline_mode<synchronous>, transform_indices = @transform_1, window_bounds = array<i64: 256, 128>}, {pipeline_mode = #tpu.pipeline_mode<synchronous>, transform_indices = @transform_2, window_bounds = array<i64: 128, 128>}, {pipeline_mode = #tpu.pipeline_mode<synchronous>, transform_indices = @transform_3, window_bounds = array<i64: 1, 128>}, {pipeline_mode = #tpu.pipeline_mode<synchronous>, transform_indices = @transform_4, window_bounds = array<i64: 1, 128>}, {pipeline_mode = #tpu.pipeline_mode<synchronous>, transform_indices = @transform_5, window_bounds = array<i64: 512, 128>}]} {
    %c0 = arith.constant 0 : index
    %c0_0 = arith.constant 0 : index
    %0 = vector.load %arg1[%c0, %c0_0] : memref<512x256xbf16, #tpu.memory_space<vmem>>, vector<512x256xbf16>
    %c0_1 = arith.constant 0 : index
    %c0_2 = arith.constant 0 : index
    %1 = vector.load %arg2[%c0_1, %c0_2] : memref<256x128xbf16, #tpu.memory_space<vmem>>, vector<256x128xbf16>
    %cst = arith.constant dense<0.000000e+00> : vector<512x128xf32>
    %2 = tpu.matmul %0, %1, %cst {dimension_numbers = #tpu.dot_dimension_numbers<[1], [0], [0], [1], [0, 0, 1, 1], [], []>} : vector<512x256xbf16>, vector<256x128xbf16>, vector<512x128xf32> -> vector<512x128xf32>
    %cst_3 = arith.constant dense<0.000000e+00> : vector<128xf32>
    %3 = vector.multi_reduction <add>, %2, %cst_3 [0] : vector<512x128xf32> to vector<128xf32>
    %4 = vector.shape_cast %3 : vector<128xf32> to vector<1x128xf32>
    %5 = arith.mulf %2, %2 : vector<512x128xf32>
    %cst_4 = arith.constant dense<0.000000e+00> : vector<128xf32>
    %6 = vector.multi_reduction <add>, %5, %cst_4 [0] : vector<512x128xf32> to vector<128xf32>
    %7 = vector.shape_cast %6 : vector<128xf32> to vector<1x128xf32>
    %c0_5 = arith.constant 0 : index
    %c0_6 = arith.constant 0 : index
    %8 = vector.load %arg3[%c0_5, %c0_6] : memref<128x128xf32, #tpu.memory_space<vmem>>, vector<128x128xf32>
    %9 = vector.shape_cast %4 : vector<1x128xf32> to vector<1x128xf32>
    %10 = vector.broadcast %9 : vector<1x128xf32> to vector<8x128xf32>
    %cst_7 = arith.constant dense<0.000000e+00> : vector<8x128xf32>
    %11 = tpu.matmul %10, %8, %cst_7 {dimension_numbers = #tpu.dot_dimension_numbers<[1], [0], [0], [1], [0, 0, 1, 1], [], []>} : vector<8x128xf32>, vector<128x128xf32>, vector<8x128xf32> -> vector<8x128xf32>
    %12 = vector.extract_strided_slice %11 {offsets = [0, 0], sizes = [1, 128], strides = [1, 1]} : vector<8x128xf32> to vector<1x128xf32>
    %13 = vector.shape_cast %7 : vector<1x128xf32> to vector<1x128xf32>
    %14 = vector.broadcast %13 : vector<1x128xf32> to vector<8x128xf32>
    %cst_8 = arith.constant dense<0.000000e+00> : vector<8x128xf32>
    %15 = tpu.matmul %14, %8, %cst_8 {dimension_numbers = #tpu.dot_dimension_numbers<[1], [0], [0], [1], [0, 0, 1, 1], [], []>} : vector<8x128xf32>, vector<128x128xf32>, vector<8x128xf32> -> vector<8x128xf32>
    %16 = vector.extract_strided_slice %15 {offsets = [0, 0], sizes = [1, 128], strides = [1, 1]} : vector<8x128xf32> to vector<1x128xf32>
    %17 = arith.mulf %12, %12 : vector<1x128xf32>
    %18 = arith.subf %16, %17 : vector<1x128xf32>
    %cst_9 = arith.constant 0.000000e+00 : f32
    %19 = vector.broadcast %cst_9 : f32 to vector<1x128xf32>
    %20 = arith.maximumf %18, %19 : vector<1x128xf32>
    %c0_10 = arith.constant 0 : index
    %c0_11 = arith.constant 0 : index
    %21 = vector.load %arg4[%c0_10, %c0_11] : memref<1x128xf32, #tpu.memory_space<vmem>>, vector<1x128xf32>
    %cst_12 = arith.constant 9.99999974E-6 : f32
    %22 = vector.broadcast %cst_12 : f32 to vector<1x128xf32>
    %23 = arith.addf %20, %22 : vector<1x128xf32>
    %24 = math.rsqrt %23 : vector<1x128xf32>
    %25 = arith.mulf %21, %24 : vector<1x128xf32>
    %c0_13 = arith.constant 0 : index
    %c0_14 = arith.constant 0 : index
    %26 = vector.load %arg5[%c0_13, %c0_14] : memref<1x128xf32, #tpu.memory_space<vmem>>, vector<1x128xf32>
    %27 = arith.mulf %12, %25 : vector<1x128xf32>
    %28 = arith.subf %26, %27 : vector<1x128xf32>
    %29 = vector.broadcast %25 : vector<1x128xf32> to vector<512x128xf32>
    %30 = arith.mulf %2, %29 : vector<512x128xf32>
    %31 = vector.broadcast %28 : vector<1x128xf32> to vector<512x128xf32>
    %32 = arith.addf %30, %31 : vector<512x128xf32>
    %cst_15 = arith.constant 0.000000e+00 : f32
    %33 = vector.broadcast %cst_15 : f32 to vector<512x128xf32>
    %34 = arith.maximumf %32, %33 : vector<512x128xf32>
    %35 = arith.truncf %34 : vector<512x128xf32> to vector<512x128xbf16>
    %c0_16 = arith.constant 0 : index
    %c0_17 = arith.constant 0 : index
    %36 = vector.load %arg6[%c0_16, %c0_17] : memref<512x128xbf16, #tpu.memory_space<vmem>>, vector<512x128xbf16>
    tpu.vector_store %arg6[%c0_16, %c0_17], %35 {strides = array<i32>} : memref<512x128xbf16, #tpu.memory_space<vmem>>, vector<512x128xbf16>,
    return
  }
  func.func @transform_0(%arg0: i32) -> (i32, i32) {
    %c0_i32 = arith.constant 0 : i32
    %c0_i32_0 = arith.constant 0 : i32
    %c0_i32_1 = arith.constant 0 : i32
    return %c0_i32, %c0_i32_0 : i32, i32
  }
  func.func @transform_1(%arg0: i32) -> (i32, i32) {
    %c0_i32 = arith.constant 0 : i32
    %c0_i32_0 = arith.constant 0 : i32
    %c0_i32_1 = arith.constant 0 : i32
    return %c0_i32, %c0_i32_0 : i32, i32
  }
  func.func @transform_2(%arg0: i32) -> (i32, i32) {
    %c0_i32 = arith.constant 0 : i32
    %c0_i32_0 = arith.constant 0 : i32
    %c0_i32_1 = arith.constant 0 : i32
    return %c0_i32, %c0_i32_0 : i32, i32
  }
  func.func @transform_3(%arg0: i32) -> (i32, i32) {
    %c0_i32 = arith.constant 0 : i32
    %c0_i32_0 = arith.constant 0 : i32
    %c0_i32_1 = arith.constant 0 : i32
    return %c0_i32, %c0_i32_0 : i32, i32
  }
  func.func @transform_4(%arg0: i32) -> (i32, i32) {
    %c0_i32 = arith.constant 0 : i32
    %c0_i32_0 = arith.constant 0 : i32
    %c0_i32_1 = arith.constant 0 : i32
    return %c0_i32, %c0_i32_0 : i32, i32
  }
  func.func @transform_5(%arg0: i32) -> (i32, i32) {
    %c0_i32 = arith.constant 0 : i32
    %c0_i32_0 = arith.constant 0 : i32
    %c0_i32_1 = arith.constant 0 : i32
    return %c0_i32, %c0_i32_0 : i32, i32
  }
}

module attributes {stable_mosaic.version = 11 : i64} {
  func.func @_matmul_tanh_kernel(%arg0: i32, %arg1: memref<512x128xbf16, #tpu.memory_space<vmem>>, %arg2: memref<128x128xbf16, #tpu.memory_space<vmem>>, %arg3: memref<512x128xbf16, #tpu.memory_space<vmem>>) attributes {dimension_semantics = [#tpu.dimension_semantics<parallel>], iteration_bounds = array<i64: 4>, scalar_prefetch = 0 : i64, scratch_operands = 0 : i64, tpu.core_type = #tpu.core_type<tc>, window_params = [{transform_indices = @transform_0, window_bounds = array<i64: 512, 128>}, {pipeline_mode = #tpu.pipeline_mode<synchronous>, transform_indices = @transform_1, window_bounds = array<i64: 128, 128>}, {transform_indices = @transform_2, window_bounds = array<i64: 512, 128>}]} {
    %c0 = arith.constant 0 : index
    %c0_0 = arith.constant 0 : index
    %0 = vector.load %arg1[%c0, %c0_0] : memref<512x128xbf16, #tpu.memory_space<vmem>>, vector<512x128xbf16>
    %c0_1 = arith.constant 0 : index
    %c0_2 = arith.constant 0 : index
    %1 = vector.load %arg2[%c0_1, %c0_2] : memref<128x128xbf16, #tpu.memory_space<vmem>>, vector<128x128xbf16>
    %cst = arith.constant dense<0.000000e+00> : vector<512x128xf32>
    %2 = tpu.matmul %0, %1, %cst {dimension_numbers = #tpu.dot_dimension_numbers<[1], [0], [0], [1], [0, 0, 1, 1], [], []>} : vector<512x128xbf16>, vector<128x128xbf16>, vector<512x128xf32> -> vector<512x128xf32>
    %3 = math.tanh %2 : vector<512x128xf32>
    %4 = arith.truncf %3 : vector<512x128xf32> to vector<512x128xbf16>
    %c0_3 = arith.constant 0 : index
    %c0_4 = arith.constant 0 : index
    %5 = vector.load %arg3[%c0_3, %c0_4] : memref<512x128xbf16, #tpu.memory_space<vmem>>, vector<512x128xbf16>
    tpu.vector_store %arg3[%c0_3, %c0_4], %4 {strides = array<i32>} : memref<512x128xbf16, #tpu.memory_space<vmem>>, vector<512x128xbf16>,
    return
  }
  func.func @transform_0(%arg0: i32) -> (i32, i32) {
    %c0_i32 = arith.constant 0 : i32
    %c0_i32_0 = arith.constant 0 : i32
    return %arg0, %c0_i32 : i32, i32
  }
  func.func @transform_1(%arg0: i32) -> (i32, i32) {
    %c0_i32 = arith.constant 0 : i32
    %c0_i32_0 = arith.constant 0 : i32
    %c0_i32_1 = arith.constant 0 : i32
    return %c0_i32, %c0_i32_0 : i32, i32
  }
  func.func @transform_2(%arg0: i32) -> (i32, i32) {
    %c0_i32 = arith.constant 0 : i32
    %c0_i32_0 = arith.constant 0 : i32
    return %arg0, %c0_i32 : i32, i32
  }
}

</mosaic_0001>

<llo_original>
// kernel: a_call__.11
$region0: #{a_call__.11}
  #allocation0 [shape = 'u32[]', space=smem, size = 0x4, offset = 0x4, fixed_abs, tag = 'smem constant byte address 0x4 - core index']
  #allocation1 [shape = 'u32[144,128]{1,0:T(1,128)}', space=vmem, size = 0x12000, scoped, tag = 'internal scratch']
  %s0 = inlined_call_operand.vmem [shape: bf16[32,256], index: 0, kind: input, shape index: {}]
  %s1 = inlined_call_operand.hbm [shape: bf16[256,128], index: 1, kind: input, shape index: {}]
  %s2 = inlined_call_operand.hbm [shape: f32[128,128], index: 2, kind: input, shape index: {}]
  %s3 = inlined_call_operand.hbm [shape: f32[1,128], index: 3, kind: input, shape index: {}]
  %s4 = inlined_call_operand.vmem [shape: f32[1,128], index: 4, kind: input, shape index: {}]
  %s5 = inlined_call_operand.vmem [shape: bf16[32,128], index: 5, kind: output, shape index: {}]
  %s6 = sld [smem:[#allocation0]]
  $region42: #{a_call__.11} parent=0
    _
  %s8 = ssub.s32 1, %s6
  %s9 = scalar_select 0, %s8, %s6
  $region1: #{a_call__.11} parent=0
    #allocation2 [shape = 'u8[65536]{0}', space=vmem, size = 0x10000, scoped, tag = 'input window, operand 1, single buffered']
    #allocation3 [shape = 's32[1]{0}', space=sflag, size = 0x4, scoped, tag = 'scoped memory for a_call__.11']
    #allocation4 [shape = 'u8[65536]{0}', space=vmem, size = 0x10000, scoped, tag = 'input window, operand 2, single buffered']
    #allocation5 [shape = 's32[1]{0}', space=sflag, size = 0x4, scoped, tag = 'scoped memory for a_call__.11']
    #allocation6 [shape = 'u8[512]{0}', space=vmem, size = 0x400, scoped, tag = 'input window, operand 3, single buffered']
    %10 = vsyncpa [#allocation3], 0
    %11 = vsyncpa [#allocation5], 0
    // Predicated region
    $region2: #{a_call__.11} parent=1 // pred_check
      _
    $region3: #{a_call__.11} parent=1 // pred_check_branch
      %13 = sbr.rel (0) target = $region5
    $region4: #{a_call__.11} parent=1 // pred_region
      _
    $region5: #{a_call__.11} parent=1 // pred_fallthru
      _
    // Predicated region
    $region6: #{a_call__.11} parent=1 // pred_check
      _
    $region7: #{a_call__.11} parent=1 // pred_check_branch
      %15 = sbr.rel (0) target = $region9
    $region8: #{a_call__.11} parent=1 // pred_region
      %s17 = ssub.s32 2048, 2048
      %18 = vsyncadd [#allocation3], %s17
      %s19 = sshll.u32 [#allocation2], 4
      %s20 = int_to_ptr.vmem [resolvable:$true] %s19
      %25 = dma.hbm_to_vmem [thread:$0]  %s1, 2048, %s20, [#allocation3], 64, 64, 4
    $region9: #{a_call__.11} parent=1 // pred_fallthru
      _
    // Predicated region
    $region10: #{a_call__.11} parent=1 // pred_check
      _
    $region11: #{a_call__.11} parent=1 // pred_check_branch
      %27 = sbr.rel (0) target = $region13
    $region12: #{a_call__.11} parent=1 // pred_region
      %s29 = ssub.s32 2048, 2048
      %30 = vsyncadd [#allocation5], %s29
      %s31 = sshll.u32 [#allocation4], 4
      %s32 = int_to_ptr.vmem [resolvable:$true] %s31
      %37 = dma.hbm_to_vmem [thread:$0]  %s2, 2048, %s32, [#allocation5], 128, 128, 8
    $region13: #{a_call__.11} parent=1 // pred_fallthru
      _
    // Predicated region
    $region14: #{a_call__.11} parent=1 // pred_check
      _
    $region15: #{a_call__.11} parent=1 // pred_check_branch
      %39 = sbr.rel (0) target = $region17
    $region16: #{a_call__.11} parent=1 // pred_region
      %s41 = ssub.s32 16, 16
      %42 = vsyncadd [#allocation5], %s41
      %s44 = sshll.u32 [#allocation6], 4
      %s45 = int_to_ptr.vmem [resolvable:$true] %s44
      %47 = dma.hbm_to_vmem [thread:$0]  %s3, 16, %s45, [#allocation5]
    $region17: #{a_call__.11} parent=1 // pred_fallthru
      _
    // Predicated region
    $region18: #{a_call__.11} parent=1 // pred_check
      _
    $region19: #{a_call__.11} parent=1 // pred_check_branch
      %49 = sbr.rel (0) target = $region21
    $region20: #{a_call__.11} parent=1 // pred_region
      _
    $region21: #{a_call__.11} parent=1 // pred_fallthru
      _
    // Predicated region
    $region22: #{a_call__.11} parent=1 // pred_check
      _
    $region23: #{a_call__.11} parent=1 // pred_check_branch
      %51 = sbr.rel (0) target = $region25
    $region24: #{a_call__.11} parent=1 // pred_region
      %52 = dma.done [#allocation3], 2048
    $region25: #{a_call__.11} parent=1 // pred_fallthru
      _
    // Predicated region
    $region26: #{a_call__.11} parent=1 // pred_check
      _
    $region27: #{a_call__.11} parent=1 // pred_check_branch
      %54 = sbr.rel (0) target = $region29
    $region28: #{a_call__.11} parent=1 // pred_region
      %55 = dma.done [#allocation5], 2048
    $region29: #{a_call__.11} parent=1 // pred_fallthru
      _
    // Predicated region
    $region30: #{a_call__.11} parent=1 // pred_check
      _
    $region31: #{a_call__.11} parent=1 // pred_check_branch
      %57 = sbr.rel (0) target = $region33
    $region32: #{a_call__.11} parent=1 // pred_region
      %58 = dma.done [#allocation5], 16
    $region33: #{a_call__.11} parent=1 // pred_fallthru
      _
    %v60 = vld [vmem:[%s0] sm:$0xff]
    %v61 = vld [vmem:[%s0 + $0x8] sm:$0xff]
    %v62 = vld [vmem:[%s0 + $0x10] sm:$0xff]
    %v63 = vld [vmem:[%s0 + $0x18] sm:$0xff]
    %v64 = vld [vmem:[#allocation2] sm:$0xf]
    %v65 = vld [vmem:[#allocation2 + $0x4] sm:$0xf]
    %v66 = vld [vmem:[#allocation2 + $0x8] sm:$0xf]
    %v67 = vld [vmem:[#allocation2 + $0xc] sm:$0xf]
    %v68 = vld [vmem:[#allocation2 + $0x10] sm:$0xf]
    %v69 = vld [vmem:[#allocation2 + $0x14] sm:$0xf]
    %v70 = vld [vmem:[#allocation2 + $0x18] sm:$0xf]
    %v71 = vld [vmem:[#allocation2 + $0x1c] sm:$0xf]
    %v72 = vld [vmem:[#allocation2 + $0x20] sm:$0xf]
    %v73 = vld [vmem:[#allocation2 + $0x24] sm:$0xf]
    %v74 = vld [vmem:[#allocation2 + $0x28] sm:$0xf]
    %v75 = vld [vmem:[#allocation2 + $0x2c] sm:$0xf]
    %v76 = vld [vmem:[#allocation2 + $0x30] sm:$0xf]
    %v77 = vld [vmem:[#allocation2 + $0x34] sm:$0xf]
    %v78 = vld [vmem:[#allocation2 + $0x38] sm:$0xf]
    %v79 = vld [vmem:[#allocation2 + $0x3c] sm:$0xf]
    %v80 = vld [vmem:[#allocation2 + $0x40] sm:$0xf]
    %v81 = vld [vmem:[#allocation2 + $0x44] sm:$0xf]
    %v82 = vld [vmem:[#allocation2 + $0x48] sm:$0xf]
    %v83 = vld [vmem:[#allocation2 + $0x4c] sm:$0xf]
    %v84 = vld [vmem:[#allocation2 + $0x50] sm:$0xf]
    %v85 = vld [vmem:[#allocation2 + $0x54] sm:$0xf]
    %v86 = vld [vmem:[#allocation2 + $0x58] sm:$0xf]
    %v87 = vld [vmem:[#allocation2 + $0x5c] sm:$0xf]
    %v88 = vld [vmem:[#allocation2 + $0x60] sm:$0xf]
    %v89 = vld [vmem:[#allocation2 + $0x64] sm:$0xf]
    %v90 = vld [vmem:[#allocation2 + $0x68] sm:$0xf]
    %v91 = vld [vmem:[#allocation2 + $0x6c] sm:$0xf]
    %v92 = vld [vmem:[#allocation2 + $0x70] sm:$0xf]
    %v93 = vld [vmem:[#allocation2 + $0x74] sm:$0xf]
    %v94 = vld [vmem:[#allocation2 + $0x78] sm:$0xf]
    %v95 = vld [vmem:[#allocation2 + $0x7c] sm:$0xf]
    %v100 = vunpack.c.l.b16 %v60
    %v101 = vunpack.c.h.b16 %v60
    %v102 = vunpack.c.l.b16 %v61
    %v103 = vunpack.c.h.b16 %v61
    %v104 = vunpack.c.l.b16 %v62
    %v105 = vunpack.c.h.b16 %v62
    %v106 = vunpack.c.l.b16 %v63
    %v107 = vunpack.c.h.b16 %v63
    %v108 = vpack.c.b16 %v102, %v100
    %v109 = vpack.c.b16 %v103, %v101
    %v110 = vpack.c.b16 %v106, %v104
    %v111 = vpack.c.b16 %v107, %v105
    %v148 = vunpack.c.l.b16 %v64
    %v149 = vunpack.c.l.b16 %v65
    %v150 = vunpack.c.l.b16 %v66
    %v151 = vunpack.c.l.b16 %v67
    %v152 = vunpack.c.l.b16 %v68
    %v153 = vunpack.c.l.b16 %v69
    %v154 = vunpack.c.l.b16 %v70
    %v155 = vunpack.c.l.b16 %v71
    %v156 = vunpack.c.l.b16 %v72
    %v157 = vunpack.c.l.b16 %v73
    %v158 = vunpack.c.l.b16 %v74
    %v159 = vunpack.c.l.b16 %v75
    %v160 = vunpack.c.l.b16 %v76
    %v161 = vunpack.c.l.b16 %v77
    %v162 = vunpack.c.l.b16 %v78
    %v163 = vunpack.c.l.b16 %v79
    %v164 = vunpack.c.l.b16 %v80
    %v165 = vunpack.c.l.b16 %v81
    %v166 = vunpack.c.l.b16 %v82
    %v167 = vunpack.c.l.b16 %v83
    %v168 = vunpack.c.l.b16 %v84
    %v169 = vunpack.c.l.b16 %v85
    %v170 = vunpack.c.l.b16 %v86
    %v171 = vunpack.c.l.b16 %v87
    %v172 = vunpack.c.l.b16 %v88
    %v173 = vunpack.c.l.b16 %v89
    %v174 = vunpack.c.l.b16 %v90
    %v175 = vunpack.c.l.b16 %v91
    %v176 = vunpack.c.l.b16 %v92
    %v177 = vunpack.c.l.b16 %v93
    %v178 = vunpack.c.l.b16 %v94
    %v179 = vunpack.c.l.b16 %v95
    %v180 = vpack.c.b16 %v149, %v148
    %v181 = vpack.c.b16 %v151, %v150
    %v182 = vpack.c.b16 %v153, %v152
    %v183 = vpack.c.b16 %v155, %v154
    %v184 = vpack.c.b16 %v157, %v156
    %v185 = vpack.c.b16 %v159, %v158
    %v186 = vpack.c.b16 %v161, %v160
    %v187 = vpack.c.b16 %v163, %v162
    %v188 = vpack.c.b16 %v165, %v164
    %v189 = vpack.c.b16 %v167, %v166
    %v190 = vpack.c.b16 %v169, %v168
    %v191 = vpack.c.b16 %v171, %v170
    %v192 = vpack.c.b16 %v173, %v172
    %v193 = vpack.c.b16 %v175, %v174
    %v194 = vpack.c.b16 %v177, %v176
    %v195 = vpack.c.b16 %v179, %v178
    %212 = vmatprep.subr.bf16.mxu0 0
    %213 = vmatpush1.bf16.msra.mxu0 %v187
    %214 = vmatprep.subr.bf16.mxu0 0
    %215 = vmatpush1.bf16.msra.mxu0 %v186
    %216 = vmatprep.subr.bf16.mxu0 0
    %217 = vmatpush1.bf16.msra.mxu0 %v185
    %218 = vmatprep.subr.bf16.mxu0 0
    %219 = vmatpush1.bf16.msra.mxu0 %v184
    %220 = vmatprep.subr.bf16.mxu0 0
    %221 = vmatpush1.bf16.msra.mxu0 %v183
    %222 = vmatprep.subr.bf16.mxu0 0
    %223 = vmatpush1.bf16.msra.mxu0 %v182
    %224 = vmatprep.subr.bf16.mxu0 0
    %225 = vmatpush1.bf16.msra.mxu0 %v181
    %226 = vmatprep.subr.bf16.mxu0 0
    %227 = vmatpush1.bf16.msra.mxu0 %v180
    %228 = vmatprep.subr.bf16.mxu0 0
    %229 = vmatpush2.bf16.msra.mxu0 %v195
    %230 = vmatprep.subr.bf16.mxu0 0
    %231 = vmatpush2.bf16.msra.mxu0 %v194
    %232 = vmatprep.subr.bf16.mxu0 0
    %233 = vmatpush2.bf16.msra.mxu0 %v193
    %234 = vmatprep.subr.bf16.mxu0 0
    %235 = vmatpush2.bf16.msra.mxu0 %v192
    %236 = vmatprep.subr.bf16.mxu0 0
    %237 = vmatpush2.bf16.msra.mxu0 %v191
    %238 = vmatprep.subr.bf16.mxu0 0
    %239 = vmatpush2.bf16.msra.mxu0 %v190
    %240 = vmatprep.subr.bf16.mxu0 0
    %241 = vmatpush2.bf16.msra.mxu0 %v189
    %242 = vmatprep.subr.bf16.mxu0 0
    %243 = vmatpush2.bf16.msra.mxu0 %v188
    %244 = vmatprep.mubr.bf16.mxu0 %v109
    %245 = vmatmul.mubr.bf16.gmra.mxu0 %v108
    %v246 = vpop.f32.mrf.mxu0
    %v247 = vadd.f32 0.0, %v246
    %v248 = vpop.f32.mrf.mxu0
    %v249 = vpop.f32.mrf.mxu0
    %v250 = vadd.f32 0.0, %v249
    %v251 = vpop.f32.mrf.mxu0
    %252 = vmatprep.mubr.bf16.mxu0 %v111
    %253 = vmatmul.mubr.bf16.gmra.mxu0 %v110
    %v254 = vpop.f32.mrf.mxu0
    %v255 = vadd.f32 0.0, %v254
    %v256 = vpop.f32.mrf.mxu0
    %v257 = vpop.f32.mrf.mxu0
    %v258 = vadd.f32 0.0, %v257
    %v259 = vpop.f32.mrf.mxu0
    %260 = vdwg.mxu0
    %v261 = vadd.f32 %v247, %v250
    %v262 = vadd.f32 %v261, %v255
    %v263 = vadd.f32 %v262, %v258
    %v264 = vrot.slane %v263, 4
    %v265 = vadd.f32 %v263, %v264
    %v266 = vrot.slane %v265, 2
    %v267 = vadd.f32 %v265, %v266
    %v268 = vrot.slane %v267, 1
    %v269 = vadd.f32 %v267, %v268
    %v270 = vmul.f32 %v247, %v247
    %v271 = vmul.f32 %v250, %v250
    %v272 = vmul.f32 %v255, %v255
    %v273 = vmul.f32 %v258, %v258
    %v274 = vadd.f32 %v270, %v271
    %v275 = vadd.f32 %v274, %v272
    %v276 = vadd.f32 %v275, %v273
    %v277 = vrot.slane %v276, 4
    %v278 = vadd.f32 %v276, %v277
    %v279 = vrot.slane %v278, 2
    %v280 = vadd.f32 %v278, %v279
    %v281 = vrot.slane %v280, 1
    %v282 = vadd.f32 %v280, %v281
    %v283 = vld [vmem:[#allocation4] sm:$0xff]
    %v284 = vld [vmem:[#allocation4 + $0x8] sm:$0xff]
    %v285 = vld [vmem:[#allocation4 + $0x10] sm:$0xff]
    %v286 = vld [vmem:[#allocation4 + $0x18] sm:$0xff]
    %v287 = vld [vmem:[#allocation4 + $0x20] sm:$0xff]
    %v288 = vld [vmem:[#allocation4 + $0x28] sm:$0xff]
    %v289 = vld [vmem:[#allocation4 + $0x30] sm:$0xff]
    %v290 = vld [vmem:[#allocation4 + $0x38] sm:$0xff]
    %v291 = vld [vmem:[#allocation4 + $0x40] sm:$0xff]
    %v292 = vld [vmem:[#allocation4 + $0x48] sm:$0xff]
    %v293 = vld [vmem:[#allocation4 + $0x50] sm:$0xff]
    %v294 = vld [vmem:[#allocation4 + $0x58] sm:$0xff]
    %v295 = vld [vmem:[#allocation4 + $0x60] sm:$0xff]
    %v296 = vld [vmem:[#allocation4 + $0x68] sm:$0xff]
    %v297 = vld [vmem:[#allocation4 + $0x70] sm:$0xff]
    %v298 = vld [vmem:[#allocation4 + $0x78] sm:$0xff]
    %299 = vmatprep.subr.mxu0 0.0
    %300 = vmatpush1.msra.mxu0 %v298
    %301 = vmatprep.subr.mxu0 0.0
    %302 = vmatpush1.msra.mxu0 %v297
    %303 = vmatprep.subr.mxu0 0.0
    %304 = vmatpush1.msra.mxu0 %v296
    %305 = vmatprep.subr.mxu0 0.0
    %306 = vmatpush1.msra.mxu0 %v295
    %307 = vmatprep.subr.mxu0 0.0
    %308 = vmatpush1.msra.mxu0 %v294
    %309 = vmatprep.subr.mxu0 0.0
    %310 = vmatpush1.msra.mxu0 %v293
    %311 = vmatprep.subr.mxu0 0.0
    %312 = vmatpush1.msra.mxu0 %v292
    %313 = vmatprep.subr.mxu0 0.0
    %314 = vmatpush1.msra.mxu0 %v291
    %315 = vmatprep.subr.mxu0 0.0
    %316 = vmatpush1.msra.mxu0 %v290
    %317 = vmatprep.subr.mxu0 0.0
    %318 = vmatpush1.msra.mxu0 %v289
    %319 = vmatprep.subr.mxu0 0.0
    %320 = vmatpush1.msra.mxu0 %v288
    %321 = vmatprep.subr.mxu0 0.0
    %322 = vmatpush1.msra.mxu0 %v287
    %323 = vmatprep.subr.mxu0 0.0
    %324 = vmatpush1.msra.mxu0 %v286
    %325 = vmatprep.subr.mxu0 0.0
    %326 = vmatpush1.msra.mxu0 %v285
    %327 = vmatprep.subr.mxu0 0.0
    %328 = vmatpush1.msra.mxu0 %v284
    %329 = vmatprep.subr.mxu0 0.0
    %330 = vmatpush1.msra.mxu0 %v283
    %331 = vmatprep.subr.mxu0 0.0
    %332 = vmatpush2.msra.mxu0 0.0
    %333 = vmatprep.subr.mxu0 0.0
    %334 = vmatpush2.msra.mxu0 0.0
    %335 = vmatprep.subr.mxu0 0.0
    %336 = vmatpush2.msra.mxu0 0.0
    %337 = vmatprep.subr.mxu0 0.0
    %338 = vmatpush2.msra.mxu0 0.0
    %339 = vmatprep.subr.mxu0 0.0
    %340 = vmatpush2.msra.mxu0 0.0
    %341 = vmatprep.subr.mxu0 0.0
    %342 = vmatpush2.msra.mxu0 0.0
    %343 = vmatprep.subr.mxu0 0.0
    %344 = vmatpush2.msra.mxu0 0.0
    %345 = vmatprep.subr.mxu0 0.0
    %346 = vmatpush2.msra.mxu0 0.0
    %347 = vmatprep.subr.mxu0 0.0
    %348 = vmatpush2.msra.mxu0 0.0
    %349 = vmatprep.subr.mxu0 0.0
    %350 = vmatpush2.msra.mxu0 0.0
    %351 = vmatprep.subr.mxu0 0.0
    %352 = vmatpush2.msra.mxu0 0.0
    %353 = vmatprep.subr.mxu0 0.0
    %354 = vmatpush2.msra.mxu0 0.0
    %355 = vmatprep.subr.mxu0 0.0
    %356 = vmatpush2.msra.mxu0 0.0
    %357 = vmatprep.subr.mxu0 0.0
    %358 = vmatpush2.msra.mxu0 0.0
    %359 = vmatprep.subr.mxu0 0.0
    %360 = vmatpush2.msra.mxu0 0.0
    %361 = vmatprep.subr.mxu0 0.0
    %362 = vmatpush2.msra.mxu0 0.0
    %363 = vmatprep.mubr.f32.mxu0 0.0
    %364 = vmatmul.mubr.f32.gmra.mxu0 %v269
    %v365 = vpop.f32.mrf.mxu0
    %v366 = vadd.f32 0.0, %v365
    %v367 = vpop.f32.mrf.mxu0
    %368 = vdwg.mxu0
    %369 = vmatprep.subr.mxu0 0.0
    %370 = vmatpush1.msra.mxu0 %v298
    %371 = vmatprep.subr.mxu0 0.0
    %372 = vmatpush1.msra.mxu0 %v297
    %373 = vmatprep.subr.mxu0 0.0
    %374 = vmatpush1.msra.mxu0 %v296
    %375 = vmatprep.subr.mxu0 0.0
    %376 = vmatpush1.msra.mxu0 %v295
    %377 = vmatprep.subr.mxu0 0.0
    %378 = vmatpush1.msra.mxu0 %v294
    %379 = vmatprep.subr.mxu0 0.0
    %380 = vmatpush1.msra.mxu0 %v293
    %381 = vmatprep.subr.mxu0 0.0
    %382 = vmatpush1.msra.mxu0 %v292
    %383 = vmatprep.subr.mxu0 0.0
    %384 = vmatpush1.msra.mxu0 %v291
    %385 = vmatprep.subr.mxu0 0.0
    %386 = vmatpush1.msra.mxu0 %v290
    %387 = vmatprep.subr.mxu0 0.0
    %388 = vmatpush1.msra.mxu0 %v289
    %389 = vmatprep.subr.mxu0 0.0
    %390 = vmatpush1.msra.mxu0 %v288
    %391 = vmatprep.subr.mxu0 0.0
    %392 = vmatpush1.msra.mxu0 %v287
    %393 = vmatprep.subr.mxu0 0.0
    %394 = vmatpush1.msra.mxu0 %v286
    %395 = vmatprep.subr.mxu0 0.0
    %396 = vmatpush1.msra.mxu0 %v285
    %397 = vmatprep.subr.mxu0 0.0
    %398 = vmatpush1.msra.mxu0 %v284
    %399 = vmatprep.subr.mxu0 0.0
    %400 = vmatpush1.msra.mxu0 %v283
    %401 = vmatprep.subr.mxu0 0.0
    %402 = vmatpush2.msra.mxu0 0.0
    %403 = vmatprep.subr.mxu0 0.0
    %404 = vmatpush2.msra.mxu0 0.0
    %405 = vmatprep.subr.mxu0 0.0
    %406 = vmatpush2.msra.mxu0 0.0
    %407 = vmatprep.subr.mxu0 0.0
    %408 = vmatpush2.msra.mxu0 0.0
    %409 = vmatprep.subr.mxu0 0.0
    %410 = vmatpush2.msra.mxu0 0.0
    %411 = vmatprep.subr.mxu0 0.0
    %412 = vmatpush2.msra.mxu0 0.0
    %413 = vmatprep.subr.mxu0 0.0
    %414 = vmatpush2.msra.mxu0 0.0
    %415 = vmatprep.subr.mxu0 0.0
    %416 = vmatpush2.msra.mxu0 0.0
    %417 = vmatprep.subr.mxu0 0.0
    %418 = vmatpush2.msra.mxu0 0.0
    %419 = vmatprep.subr.mxu0 0.0
    %420 = vmatpush2.msra.mxu0 0.0
    %421 = vmatprep.subr.mxu0 0.0
    %422 = vmatpush2.msra.mxu0 0.0
    %423 = vmatprep.subr.mxu0 0.0
    %424 = vmatpush2.msra.mxu0 0.0
    %425 = vmatprep.subr.mxu0 0.0
    %426 = vmatpush2.msra.mxu0 0.0
    %427 = vmatprep.subr.mxu0 0.0
    %428 = vmatpush2.msra.mxu0 0.0
    %429 = vmatprep.subr.mxu0 0.0
    %430 = vmatpush2.msra.mxu0 0.0
    %431 = vmatprep.subr.mxu0 0.0
    %432 = vmatpush2.msra.mxu0 0.0
    %433 = vmatprep.mubr.f32.mxu0 0.0
    %434 = vmatmul.mubr.f32.gmra.mxu0 %v282
    %v435 = vpop.f32.mrf.mxu0
    %v436 = vadd.f32 0.0, %v435
    %v437 = vpop.f32.mrf.mxu0
    %438 = vdwg.mxu0
    %v439 = vmul.f32 %v366, %v366
    %v440 = vsub.f32 %v436, %v439
    %v441 = vmax.f32 %v440, 0.0
    %v442 = vld [vmem:[#allocation6] sm:$0x1]
    %v443 = vadd.f32 %v441, 1e-05
    %v444 = vrsqrt.pop %v443
    %v445 = vmul.f32 %v442, %v444
    %v446 = vld [vmem:[%s4] sm:$0x1]
    %v447 = vmul.f32 %v366, %v445
    %v448 = vsub.f32 %v446, %v447
    %v450 = vlaneseq
    %v451 = vshrl.u32 %v450, 7
    %v452 = vsub.s32 0, %v451
    %v453 = vrot.slane %v445, %v452
    %v455 = vmul.f32 %v247, %v453
    %v456 = vmul.f32 %v250, %v453
    %v457 = vmul.f32 %v255, %v453
    %v458 = vmul.f32 %v258, %v453
    %v460 = vlaneseq
    %v461 = vshrl.u32 %v460, 7
    %v462 = vsub.s32 0, %v461
    %v463 = vrot.slane %v448, %v462
    %v465 = vadd.f32 %v455, %v463
    %v466 = vadd.f32 %v456, %v463
    %v467 = vadd.f32 %v457, %v463
    %v468 = vadd.f32 %v458, %v463
    %v469 = vmax.f32 %v465, 0.0
    %v470 = vmax.f32 %v466, 0.0
    %v471 = vmax.f32 %v467, 0.0
    %v472 = vmax.f32 %v468, 0.0
    %v473 = vpack.c.bf16 %v470, %v469
    %v474 = vpack.c.bf16 %v472, %v471
    %v477 = vunpack.c.l.b16 %v473
    %v478 = vunpack.c.h.b16 %v473
    %v479 = vunpack.c.l.b16 %v474
    %v480 = vunpack.c.h.b16 %v474
    %v481 = vpack.c.b16 %v477, %v477
    %v482 = vpack.c.b16 %v478, %v478
    %v483 = vpack.c.b16 %v479, %v479
    %v484 = vpack.c.b16 %v480, %v480
    %489 = vst [vmem:[%s5] sm:$0xf] %v481
    %490 = vst [vmem:[%s5 + $0x4] sm:$0xf] %v482
    %491 = vst [vmem:[%s5 + $0x8] sm:$0xf] %v483
    %492 = vst [vmem:[%s5 + $0xc] sm:$0xf] %v484
    // Predicated region
    $region34: #{a_call__.11} parent=1 // pred_check
      _
    $region35: #{a_call__.11} parent=1 // pred_check_branch
      %494 = sbr.rel (0) target = $region37
    $region36: #{a_call__.11} parent=1 // pred_region
      _
    $region37: #{a_call__.11} parent=1 // pred_fallthru
      _
    // Predicated region
    $region38: #{a_call__.11} parent=1 // pred_check
      _
    $region39: #{a_call__.11} parent=1 // pred_check_branch
      %496 = sbr.rel (0) target = $region41
    $region40: #{a_call__.11} parent=1 // pred_region
      _
    $region41: #{a_call__.11} parent=1 // pred_fallthru
      _
    %497 = vsyncpa [#allocation3], 1
    %498 = vsyncpa [#allocation5], 1

// kernel: a_call__.12
$region0: #{a_call__.12}
  #allocation0 [shape = 'u32[]', space=smem, size = 0x4, offset = 0x4, fixed_abs, tag = 'smem constant byte address 0x4 - core index']
  #allocation1 [shape = 'u32[144,128]{1,0:T(1,128)}', space=vmem, size = 0x12000, scoped, tag = 'internal scratch']
  %s0 = inlined_call_operand.vmem [shape: bf16[32,128], index: 0, kind: input, shape index: {}]
  %s1 = inlined_call_operand.hbm [shape: bf16[128,128], index: 1, kind: input, shape index: {}]
  %s2 = inlined_call_operand.hbm [shape: f32[128,128], index: 2, kind: input, shape index: {}]
  %s3 = inlined_call_operand.hbm [shape: f32[1,128], index: 3, kind: input, shape index: {}]
  %s4 = inlined_call_operand.vmem [shape: f32[1,128], index: 4, kind: input, shape index: {}]
  %s5 = inlined_call_operand.vmem [shape: bf16[32,128], index: 5, kind: output, shape index: {}]
  %s6 = sld [smem:[#allocation0]]
  $region42: #{a_call__.12} parent=0
    _
  %s8 = ssub.s32 1, %s6
  %s9 = scalar_select 0, %s8, %s6
  $region1: #{a_call__.12} parent=0
    #allocation2 [shape = 'u8[32768]{0}', space=vmem, size = 0x8000, scoped, tag = 'input window, operand 1, single buffered']
    #allocation3 [shape = 's32[1]{0}', space=sflag, size = 0x4, scoped, tag = 'scoped memory for a_call__.12']
    #allocation4 [shape = 'u8[65536]{0}', space=vmem, size = 0x10000, scoped, tag = 'input window, operand 2, single buffered']
    #allocation5 [shape = 's32[1]{0}', space=sflag, size = 0x4, scoped, tag = 'scoped memory for a_call__.12']
    #allocation6 [shape = 'u8[512]{0}', space=vmem, size = 0x400, scoped, tag = 'input window, operand 3, single buffered']
    %10 = vsyncpa [#allocation3], 0
    %11 = vsyncpa [#allocation5], 0
    // Predicated region
    $region2: #{a_call__.12} parent=1 // pred_check
      _
    $region3: #{a_call__.12} parent=1 // pred_check_branch
      %13 = sbr.rel (0) target = $region5
    $region4: #{a_call__.12} parent=1 // pred_region
      _
    $region5: #{a_call__.12} parent=1 // pred_fallthru
      _
    // Predicated region
    $region6: #{a_call__.12} parent=1 // pred_check
      _
    $region7: #{a_call__.12} parent=1 // pred_check_branch
      %15 = sbr.rel (0) target = $region9
    $region8: #{a_call__.12} parent=1 // pred_region
      %s17 = ssub.s32 1024, 1024
      %18 = vsyncadd [#allocation3], %s17
      %s19 = sshll.u32 [#allocation2], 4
      %s20 = int_to_ptr.vmem [resolvable:$true] %s19
      %25 = dma.hbm_to_vmem [thread:$0]  %s1, 1024, %s20, [#allocation3], 64, 64, 4
    $region9: #{a_call__.12} parent=1 // pred_fallthru
      _
    // Predicated region
    $region10: #{a_call__.12} parent=1 // pred_check
      _
    $region11: #{a_call__.12} parent=1 // pred_check_branch
      %27 = sbr.rel (0) target = $region13
    $region12: #{a_call__.12} parent=1 // pred_region
      %s29 = ssub.s32 2048, 2048
      %30 = vsyncadd [#allocation5], %s29
      %s31 = sshll.u32 [#allocation4], 4
      %s32 = int_to_ptr.vmem [resolvable:$true] %s31
      %37 = dma.hbm_to_vmem [thread:$0]  %s2, 2048, %s32, [#allocation5], 128, 128, 8
    $region13: #{a_call__.12} parent=1 // pred_fallthru
      _
    // Predicated region
    $region14: #{a_call__.12} parent=1 // pred_check
      _
    $region15: #{a_call__.12} parent=1 // pred_check_branch
      %39 = sbr.rel (0) target = $region17
    $region16: #{a_call__.12} parent=1 // pred_region
      %s41 = ssub.s32 16, 16
      %42 = vsyncadd [#allocation5], %s41
      %s44 = sshll.u32 [#allocation6], 4
      %s45 = int_to_ptr.vmem [resolvable:$true] %s44
      %47 = dma.hbm_to_vmem [thread:$0]  %s3, 16, %s45, [#allocation5]
    $region17: #{a_call__.12} parent=1 // pred_fallthru
      _
    // Predicated region
    $region18: #{a_call__.12} parent=1 // pred_check
      _
    $region19: #{a_call__.12} parent=1 // pred_check_branch
      %49 = sbr.rel (0) target = $region21
    $region20: #{a_call__.12} parent=1 // pred_region
      _
    $region21: #{a_call__.12} parent=1 // pred_fallthru
      _
    // Predicated region
    $region22: #{a_call__.12} parent=1 // pred_check
      _
    $region23: #{a_call__.12} parent=1 // pred_check_branch
      %51 = sbr.rel (0) target = $region25
    $region24: #{a_call__.12} parent=1 // pred_region
      %52 = dma.done [#allocation3], 1024
    $region25: #{a_call__.12} parent=1 // pred_fallthru
      _
    // Predicated region
    $region26: #{a_call__.12} parent=1 // pred_check
      _
    $region27: #{a_call__.12} parent=1 // pred_check_branch
      %54 = sbr.rel (0) target = $region29
    $region28: #{a_call__.12} parent=1 // pred_region
      %55 = dma.done [#allocation5], 2048
    $region29: #{a_call__.12} parent=1 // pred_fallthru
      _
    // Predicated region
    $region30: #{a_call__.12} parent=1 // pred_check
      _
    $region31: #{a_call__.12} parent=1 // pred_check_branch
      %57 = sbr.rel (0) target = $region33
    $region32: #{a_call__.12} parent=1 // pred_region
      %58 = dma.done [#allocation5], 16
    $region33: #{a_call__.12} parent=1 // pred_fallthru
      _
    %v60 = vld [vmem:[%s0] sm:$0xf]
    %v61 = vld [vmem:[%s0 + $0x4] sm:$0xf]
    %v62 = vld [vmem:[%s0 + $0x8] sm:$0xf]
    %v63 = vld [vmem:[%s0 + $0xc] sm:$0xf]
    %v64 = vld [vmem:[#allocation2] sm:$0xf]
    %v65 = vld [vmem:[#allocation2 + $0x4] sm:$0xf]
    %v66 = vld [vmem:[#allocation2 + $0x8] sm:$0xf]
    %v67 = vld [vmem:[#allocation2 + $0xc] sm:$0xf]
    %v68 = vld [vmem:[#allocation2 + $0x10] sm:$0xf]
    %v69 = vld [vmem:[#allocation2 + $0x14] sm:$0xf]
    %v70 = vld [vmem:[#allocation2 + $0x18] sm:$0xf]
    %v71 = vld [vmem:[#allocation2 + $0x1c] sm:$0xf]
    %v72 = vld [vmem:[#allocation2 + $0x20] sm:$0xf]
    %v73 = vld [vmem:[#allocation2 + $0x24] sm:$0xf]
    %v74 = vld [vmem:[#allocation2 + $0x28] sm:$0xf]
    %v75 = vld [vmem:[#allocation2 + $0x2c] sm:$0xf]
    %v76 = vld [vmem:[#allocation2 + $0x30] sm:$0xf]
    %v77 = vld [vmem:[#allocation2 + $0x34] sm:$0xf]
    %v78 = vld [vmem:[#allocation2 + $0x38] sm:$0xf]
    %v79 = vld [vmem:[#allocation2 + $0x3c] sm:$0xf]
    %v84 = vunpack.c.l.b16 %v60
    %v85 = vunpack.c.l.b16 %v61
    %v86 = vunpack.c.l.b16 %v62
    %v87 = vunpack.c.l.b16 %v63
    %v88 = vpack.c.b16 %v85, %v84
    %v89 = vpack.c.b16 %v87, %v86
    %v108 = vunpack.c.l.b16 %v64
    %v109 = vunpack.c.l.b16 %v65
    %v110 = vunpack.c.l.b16 %v66
    %v111 = vunpack.c.l.b16 %v67
    %v112 = vunpack.c.l.b16 %v68
    %v113 = vunpack.c.l.b16 %v69
    %v114 = vunpack.c.l.b16 %v70
    %v115 = vunpack.c.l.b16 %v71
    %v116 = vunpack.c.l.b16 %v72
    %v117 = vunpack.c.l.b16 %v73
    %v118 = vunpack.c.l.b16 %v74
    %v119 = vunpack.c.l.b16 %v75
    %v120 = vunpack.c.l.b16 %v76
    %v121 = vunpack.c.l.b16 %v77
    %v122 = vunpack.c.l.b16 %v78
    %v123 = vunpack.c.l.b16 %v79
    %v124 = vpack.c.b16 %v109, %v108
    %v125 = vpack.c.b16 %v111, %v110
    %v126 = vpack.c.b16 %v113, %v112
    %v127 = vpack.c.b16 %v115, %v114
    %v128 = vpack.c.b16 %v117, %v116
    %v129 = vpack.c.b16 %v119, %v118
    %v130 = vpack.c.b16 %v121, %v120
    %v131 = vpack.c.b16 %v123, %v122
    %140 = vmatprep.subr.bf16.mxu0 0
    %141 = vmatpush1.bf16.msra.mxu0 %v131
    %142 = vmatprep.subr.bf16.mxu0 0
    %143 = vmatpush1.bf16.msra.mxu0 %v130
    %144 = vmatprep.subr.bf16.mxu0 0
    %145 = vmatpush1.bf16.msra.mxu0 %v129
    %146 = vmatprep.subr.bf16.mxu0 0
    %147 = vmatpush1.bf16.msra.mxu0 %v128
    %148 = vmatprep.subr.bf16.mxu0 0
    %149 = vmatpush1.bf16.msra.mxu0 %v127
    %150 = vmatprep.subr.bf16.mxu0 0
    %151 = vmatpush1.bf16.msra.mxu0 %v126
    %152 = vmatprep.subr.bf16.mxu0 0
    %153 = vmatpush1.bf16.msra.mxu0 %v125
    %154 = vmatprep.subr.bf16.mxu0 0
    %155 = vmatpush1.bf16.msra.mxu0 %v124
    %156 = vmatprep.subr.bf16.mxu0 0
    %157 = vmatpush2.bf16.msra.mxu0 0
    %158 = vmatprep.subr.bf16.mxu0 0
    %159 = vmatpush2.bf16.msra.mxu0 0
    %160 = vmatprep.subr.bf16.mxu0 0
    %161 = vmatpush2.bf16.msra.mxu0 0
    %162 = vmatprep.subr.bf16.mxu0 0
    %163 = vmatpush2.bf16.msra.mxu0 0
    %164 = vmatprep.subr.bf16.mxu0 0
    %165 = vmatpush2.bf16.msra.mxu0 0
    %166 = vmatprep.subr.bf16.mxu0 0
    %167 = vmatpush2.bf16.msra.mxu0 0
    %168 = vmatprep.subr.bf16.mxu0 0
    %169 = vmatpush2.bf16.msra.mxu0 0
    %170 = vmatprep.subr.bf16.mxu0 0
    %171 = vmatpush2.bf16.msra.mxu0 0
    %172 = vmatprep.mubr.bf16.mxu0 0
    %173 = vmatmul.mubr.bf16.gmra.mxu0 %v88
    %v174 = vpop.f32.mrf.mxu0
    %v175 = vadd.f32 0.0, %v174
    %v176 = vpop.f32.mrf.mxu0
    %v177 = vpop.f32.mrf.mxu0
    %v178 = vadd.f32 0.0, %v177
    %v179 = vpop.f32.mrf.mxu0
    %180 = vmatprep.mubr.bf16.mxu0 0
    %181 = vmatmul.mubr.bf16.gmra.mxu0 %v89
    %v182 = vpop.f32.mrf.mxu0
    %v183 = vadd.f32 0.0, %v182
    %v184 = vpop.f32.mrf.mxu0
    %v185 = vpop.f32.mrf.mxu0
    %v186 = vadd.f32 0.0, %v185
    %v187 = vpop.f32.mrf.mxu0
    %188 = vdwg.mxu0
    %v189 = vadd.f32 %v175, %v178
    %v190 = vadd.f32 %v189, %v183
    %v191 = vadd.f32 %v190, %v186
    %v192 = vrot.slane %v191, 4
    %v193 = vadd.f32 %v191, %v192
    %v194 = vrot.slane %v193, 2
    %v195 = vadd.f32 %v193, %v194
    %v196 = vrot.slane %v195, 1
    %v197 = vadd.f32 %v195, %v196
    %v198 = vmul.f32 %v175, %v175
    %v199 = vmul.f32 %v178, %v178
    %v200 = vmul.f32 %v183, %v183
    %v201 = vmul.f32 %v186, %v186
    %v202 = vadd.f32 %v198, %v199
    %v203 = vadd.f32 %v202, %v200
    %v204 = vadd.f32 %v203, %v201
    %v205 = vrot.slane %v204, 4
    %v206 = vadd.f32 %v204, %v205
    %v207 = vrot.slane %v206, 2
    %v208 = vadd.f32 %v206, %v207
    %v209 = vrot.slane %v208, 1
    %v210 = vadd.f32 %v208, %v209
    %v211 = vld [vmem:[#allocation4] sm:$0xff]
    %v212 = vld [vmem:[#allocation4 + $0x8] sm:$0xff]
    %v213 = vld [vmem:[#allocation4 + $0x10] sm:$0xff]
    %v214 = vld [vmem:[#allocation4 + $0x18] sm:$0xff]
    %v215 = vld [vmem:[#allocation4 + $0x20] sm:$0xff]
    %v216 = vld [vmem:[#allocation4 + $0x28] sm:$0xff]
    %v217 = vld [vmem:[#allocation4 + $0x30] sm:$0xff]
    %v218 = vld [vmem:[#allocation4 + $0x38] sm:$0xff]
    %v219 = vld [vmem:[#allocation4 + $0x40] sm:$0xff]
    %v220 = vld [vmem:[#allocation4 + $0x48] sm:$0xff]
    %v221 = vld [vmem:[#allocation4 + $0x50] sm:$0xff]
    %v222 = vld [vmem:[#allocation4 + $0x58] sm:$0xff]
    %v223 = vld [vmem:[#allocation4 + $0x60] sm:$0xff]
    %v224 = vld [vmem:[#allocation4 + $0x68] sm:$0xff]
    %v225 = vld [vmem:[#allocation4 + $0x70] sm:$0xff]
    %v226 = vld [vmem:[#allocation4 + $0x78] sm:$0xff]
    %227 = vmatprep.subr.mxu0 0.0
    %228 = vmatpush1.msra.mxu0 %v226
    %229 = vmatprep.subr.mxu0 0.0
    %230 = vmatpush1.msra.mxu0 %v225
    %231 = vmatprep.subr.mxu0 0.0
    %232 = vmatpush1.msra.mxu0 %v224
    %233 = vmatprep.subr.mxu0 0.0
    %234 = vmatpush1.msra.mxu0 %v223
    %235 = vmatprep.subr.mxu0 0.0
    %236 = vmatpush1.msra.mxu0 %v222
    %237 = vmatprep.subr.mxu0 0.0
    %238 = vmatpush1.msra.mxu0 %v221
    %239 = vmatprep.subr.mxu0 0.0
    %240 = vmatpush1.msra.mxu0 %v220
    %241 = vmatprep.subr.mxu0 0.0
    %242 = vmatpush1.msra.mxu0 %v219
    %243 = vmatprep.subr.mxu0 0.0
    %244 = vmatpush1.msra.mxu0 %v218
    %245 = vmatprep.subr.mxu0 0.0
    %246 = vmatpush1.msra.mxu0 %v217
    %247 = vmatprep.subr.mxu0 0.0
    %248 = vmatpush1.msra.mxu0 %v216
    %249 = vmatprep.subr.mxu0 0.0
    %250 = vmatpush1.msra.mxu0 %v215
    %251 = vmatprep.subr.mxu0 0.0
    %252 = vmatpush1.msra.mxu0 %v214
    %253 = vmatprep.subr.mxu0 0.0
    %254 = vmatpush1.msra.mxu0 %v213
    %255 = vmatprep.subr.mxu0 0.0
    %256 = vmatpush1.msra.mxu0 %v212
    %257 = vmatprep.subr.mxu0 0.0
    %258 = vmatpush1.msra.mxu0 %v211
    %259 = vmatprep.subr.mxu0 0.0
    %260 = vmatpush2.msra.mxu0 0.0
    %261 = vmatprep.subr.mxu0 0.0
    %262 = vmatpush2.msra.mxu0 0.0
    %263 = vmatprep.subr.mxu0 0.0
    %264 = vmatpush2.msra.mxu0 0.0
    %265 = vmatprep.subr.mxu0 0.0
    %266 = vmatpush2.msra.mxu0 0.0
    %267 = vmatprep.subr.mxu0 0.0
    %268 = vmatpush2.msra.mxu0 0.0
    %269 = vmatprep.subr.mxu0 0.0
    %270 = vmatpush2.msra.mxu0 0.0
    %271 = vmatprep.subr.mxu0 0.0
    %272 = vmatpush2.msra.mxu0 0.0
    %273 = vmatprep.subr.mxu0 0.0
    %274 = vmatpush2.msra.mxu0 0.0
    %275 = vmatprep.subr.mxu0 0.0
    %276 = vmatpush2.msra.mxu0 0.0
    %277 = vmatprep.subr.mxu0 0.0
    %278 = vmatpush2.msra.mxu0 0.0
    %279 = vmatprep.subr.mxu0 0.0
    %280 = vmatpush2.msra.mxu0 0.0
    %281 = vmatprep.subr.mxu0 0.0
    %282 = vmatpush2.msra.mxu0 0.0
    %283 = vmatprep.subr.mxu0 0.0
    %284 = vmatpush2.msra.mxu0 0.0
    %285 = vmatprep.subr.mxu0 0.0
    %286 = vmatpush2.msra.mxu0 0.0
    %287 = vmatprep.subr.mxu0 0.0
    %288 = vmatpush2.msra.mxu0 0.0
    %289 = vmatprep.subr.mxu0 0.0
    %290 = vmatpush2.msra.mxu0 0.0
    %291 = vmatprep.mubr.f32.mxu0 0.0
    %292 = vmatmul.mubr.f32.gmra.mxu0 %v197
    %v293 = vpop.f32.mrf.mxu0
    %v294 = vadd.f32 0.0, %v293
    %v295 = vpop.f32.mrf.mxu0
    %296 = vdwg.mxu0
    %297 = vmatprep.subr.mxu0 0.0
    %298 = vmatpush1.msra.mxu0 %v226
    %299 = vmatprep.subr.mxu0 0.0
    %300 = vmatpush1.msra.mxu0 %v225
    %301 = vmatprep.subr.mxu0 0.0
    %302 = vmatpush1.msra.mxu0 %v224
    %303 = vmatprep.subr.mxu0 0.0
    %304 = vmatpush1.msra.mxu0 %v223
    %305 = vmatprep.subr.mxu0 0.0
    %306 = vmatpush1.msra.mxu0 %v222
    %307 = vmatprep.subr.mxu0 0.0
    %308 = vmatpush1.msra.mxu0 %v221
    %309 = vmatprep.subr.mxu0 0.0
    %310 = vmatpush1.msra.mxu0 %v220
    %311 = vmatprep.subr.mxu0 0.0
    %312 = vmatpush1.msra.mxu0 %v219
    %313 = vmatprep.subr.mxu0 0.0
    %314 = vmatpush1.msra.mxu0 %v218
    %315 = vmatprep.subr.mxu0 0.0
    %316 = vmatpush1.msra.mxu0 %v217
    %317 = vmatprep.subr.mxu0 0.0
    %318 = vmatpush1.msra.mxu0 %v216
    %319 = vmatprep.subr.mxu0 0.0
    %320 = vmatpush1.msra.mxu0 %v215
    %321 = vmatprep.subr.mxu0 0.0
    %322 = vmatpush1.msra.mxu0 %v214
    %323 = vmatprep.subr.mxu0 0.0
    %324 = vmatpush1.msra.mxu0 %v213
    %325 = vmatprep.subr.mxu0 0.0
    %326 = vmatpush1.msra.mxu0 %v212
    %327 = vmatprep.subr.mxu0 0.0
    %328 = vmatpush1.msra.mxu0 %v211
    %329 = vmatprep.subr.mxu0 0.0
    %330 = vmatpush2.msra.mxu0 0.0
    %331 = vmatprep.subr.mxu0 0.0
    %332 = vmatpush2.msra.mxu0 0.0
    %333 = vmatprep.subr.mxu0 0.0
    %334 = vmatpush2.msra.mxu0 0.0
    %335 = vmatprep.subr.mxu0 0.0
    %336 = vmatpush2.msra.mxu0 0.0
    %337 = vmatprep.subr.mxu0 0.0
    %338 = vmatpush2.msra.mxu0 0.0
    %339 = vmatprep.subr.mxu0 0.0
    %340 = vmatpush2.msra.mxu0 0.0
    %341 = vmatprep.subr.mxu0 0.0
    %342 = vmatpush2.msra.mxu0 0.0
    %343 = vmatprep.subr.mxu0 0.0
    %344 = vmatpush2.msra.mxu0 0.0
    %345 = vmatprep.subr.mxu0 0.0
    %346 = vmatpush2.msra.mxu0 0.0
    %347 = vmatprep.subr.mxu0 0.0
    %348 = vmatpush2.msra.mxu0 0.0
    %349 = vmatprep.subr.mxu0 0.0
    %350 = vmatpush2.msra.mxu0 0.0
    %351 = vmatprep.subr.mxu0 0.0
    %352 = vmatpush2.msra.mxu0 0.0
    %353 = vmatprep.subr.mxu0 0.0
    %354 = vmatpush2.msra.mxu0 0.0
    %355 = vmatprep.subr.mxu0 0.0
    %356 = vmatpush2.msra.mxu0 0.0
    %357 = vmatprep.subr.mxu0 0.0
    %358 = vmatpush2.msra.mxu0 0.0
    %359 = vmatprep.subr.mxu0 0.0
    %360 = vmatpush2.msra.mxu0 0.0
    %361 = vmatprep.mubr.f32.mxu0 0.0
    %362 = vmatmul.mubr.f32.gmra.mxu0 %v210
    %v363 = vpop.f32.mrf.mxu0
    %v364 = vadd.f32 0.0, %v363
    %v365 = vpop.f32.mrf.mxu0
    %366 = vdwg.mxu0
    %v367 = vmul.f32 %v294, %v294
    %v368 = vsub.f32 %v364, %v367
    %v369 = vmax.f32 %v368, 0.0
    %v370 = vld [vmem:[#allocation6] sm:$0x1]
    %v371 = vadd.f32 %v369, 1e-05
    %v372 = vrsqrt.pop %v371
    %v373 = vmul.f32 %v370, %v372
    %v374 = vld [vmem:[%s4] sm:$0x1]
    %v375 = vmul.f32 %v294, %v373
    %v376 = vsub.f32 %v374, %v375
    %v378 = vlaneseq
    %v379 = vshrl.u32 %v378, 7
    %v380 = vsub.s32 0, %v379
    %v381 = vrot.slane %v373, %v380
    %v383 = vmul.f32 %v175, %v381
    %v384 = vmul.f32 %v178, %v381
    %v385 = vmul.f32 %v183, %v381
    %v386 = vmul.f32 %v186, %v381
    %v388 = vlaneseq
    %v389 = vshrl.u32 %v388, 7
    %v390 = vsub.s32 0, %v389
    %v391 = vrot.slane %v376, %v390
    %v393 = vadd.f32 %v383, %v391
    %v394 = vadd.f32 %v384, %v391
    %v395 = vadd.f32 %v385, %v391
    %v396 = vadd.f32 %v386, %v391
    %v397 = vmax.f32 %v393, 0.0
    %v398 = vmax.f32 %v394, 0.0
    %v399 = vmax.f32 %v395, 0.0
    %v400 = vmax.f32 %v396, 0.0
    %v401 = vpack.c.bf16 %v398, %v397
    %v402 = vpack.c.bf16 %v400, %v399
    %v405 = vunpack.c.l.b16 %v401
    %v406 = vunpack.c.h.b16 %v401
    %v407 = vunpack.c.l.b16 %v402
    %v408 = vunpack.c.h.b16 %v402
    %v409 = vpack.c.b16 %v405, %v405
    %v410 = vpack.c.b16 %v406, %v406
    %v411 = vpack.c.b16 %v407, %v407
    %v412 = vpack.c.b16 %v408, %v408
    %417 = vst [vmem:[%s5] sm:$0xf] %v409
    %418 = vst [vmem:[%s5 + $0x4] sm:$0xf] %v410
    %419 = vst [vmem:[%s5 + $0x8] sm:$0xf] %v411
    %420 = vst [vmem:[%s5 + $0xc] sm:$0xf] %v412
    // Predicated region
    $region34: #{a_call__.12} parent=1 // pred_check
      _
    $region35: #{a_call__.12} parent=1 // pred_check_branch
      %422 = sbr.rel (0) target = $region37
    $region36: #{a_call__.12} parent=1 // pred_region
      _
    $region37: #{a_call__.12} parent=1 // pred_fallthru
      _
    // Predicated region
    $region38: #{a_call__.12} parent=1 // pred_check
      _
    $region39: #{a_call__.12} parent=1 // pred_check_branch
      %424 = sbr.rel (0) target = $region41
    $region40: #{a_call__.12} parent=1 // pred_region
      _
    $region41: #{a_call__.12} parent=1 // pred_fallthru
      _
    %425 = vsyncpa [#allocation3], 1
    %426 = vsyncpa [#allocation5], 1

// kernel: a_call__.15
$region0: #{a_call__.15}
  #allocation0 [shape = 'u32[]', space=smem, size = 0x4, offset = 0x4, fixed_abs, tag = 'smem constant byte address 0x4 - core index']
  #allocation1 [shape = 'u32[144,128]{1,0:T(1,128)}', space=vmem, size = 0x12000, scoped, tag = 'internal scratch']
  %s0 = inlined_call_operand.vmem [shape: bf16[32,640], index: 0, kind: input, shape index: {}]
  %s1 = inlined_call_operand.hbm [shape: bf16[640,128], index: 1, kind: input, shape index: {}]
  %s2 = inlined_call_operand.hbm [shape: f32[128,128], index: 2, kind: input, shape index: {}]
  %s3 = inlined_call_operand.hbm [shape: f32[1,128], index: 3, kind: input, shape index: {}]
  %s4 = inlined_call_operand.vmem [shape: f32[1,128], index: 4, kind: input, shape index: {}]
  %s5 = inlined_call_operand.vmem [shape: bf16[32,128], index: 5, kind: output, shape index: {}]
  %s6 = sld [smem:[#allocation0]]
  $region42: #{a_call__.15} parent=0
    _
  %s8 = ssub.s32 1, %s6
  %s9 = scalar_select 0, %s8, %s6
  $region1: #{a_call__.15} parent=0
    #allocation2 [shape = 'u8[163840]{0}', space=vmem, size = 0x28000, scoped, tag = 'input window, operand 1, single buffered']
    #allocation3 [shape = 's32[1]{0}', space=sflag, size = 0x4, scoped, tag = 'scoped memory for a_call__.15']
    #allocation4 [shape = 'u8[65536]{0}', space=vmem, size = 0x10000, scoped, tag = 'input window, operand 2, single buffered']
    #allocation5 [shape = 's32[1]{0}', space=sflag, size = 0x4, scoped, tag = 'scoped memory for a_call__.15']
    #allocation6 [shape = 'u8[512]{0}', space=vmem, size = 0x400, scoped, tag = 'input window, operand 3, single buffered']
    %10 = vsyncpa [#allocation3], 0
    %11 = vsyncpa [#allocation5], 0
    // Predicated region
    $region2: #{a_call__.15} parent=1 // pred_check
      _
    $region3: #{a_call__.15} parent=1 // pred_check_branch
      %13 = sbr.rel (0) target = $region5
    $region4: #{a_call__.15} parent=1 // pred_region
      _
    $region5: #{a_call__.15} parent=1 // pred_fallthru
      _
    // Predicated region
    $region6: #{a_call__.15} parent=1 // pred_check
      _
    $region7: #{a_call__.15} parent=1 // pred_check_branch
      %15 = sbr.rel (0) target = $region9
    $region8: #{a_call__.15} parent=1 // pred_region
      %s17 = ssub.s32 5120, 5120
      %18 = vsyncadd [#allocation3], %s17
      %s19 = sshll.u32 [#allocation2], 4
      %s20 = int_to_ptr.vmem [resolvable:$true] %s19
      %25 = dma.hbm_to_vmem [thread:$0]  %s1, 5120, %s20, [#allocation3], 64, 64, 4
    $region9: #{a_call__.15} parent=1 // pred_fallthru
      _
    // Predicated region
    $region10: #{a_call__.15} parent=1 // pred_check
      _
    $region11: #{a_call__.15} parent=1 // pred_check_branch
      %27 = sbr.rel (0) target = $region13
    $region12: #{a_call__.15} parent=1 // pred_region
      %s29 = ssub.s32 2048, 2048
      %30 = vsyncadd [#allocation5], %s29
      %s31 = sshll.u32 [#allocation4], 4
      %s32 = int_to_ptr.vmem [resolvable:$true] %s31
      %37 = dma.hbm_to_vmem [thread:$0]  %s2, 2048, %s32, [#allocation5], 128, 128, 8
    $region13: #{a_call__.15} parent=1 // pred_fallthru
      _
    // Predicated region
    $region14: #{a_call__.15} parent=1 // pred_check
      _
    $region15: #{a_call__.15} parent=1 // pred_check_branch
      %39 = sbr.rel (0) target = $region17
    $region16: #{a_call__.15} parent=1 // pred_region
      %s41 = ssub.s32 16, 16
      %42 = vsyncadd [#allocation5], %s41
      %s44 = sshll.u32 [#allocation6], 4
      %s45 = int_to_ptr.vmem [resolvable:$true] %s44
      %47 = dma.hbm_to_vmem [thread:$0]  %s3, 16, %s45, [#allocation5]
    $region17: #{a_call__.15} parent=1 // pred_fallthru
      _
    // Predicated region
    $region18: #{a_call__.15} parent=1 // pred_check
      _
    $region19: #{a_call__.15} parent=1 // pred_check_branch
      %49 = sbr.rel (0) target = $region21
    $region20: #{a_call__.15} parent=1 // pred_region
      _
    $region21: #{a_call__.15} parent=1 // pred_fallthru
      _
    // Predicated region
    $region22: #{a_call__.15} parent=1 // pred_check
      _
    $region23: #{a_call__.15} parent=1 // pred_check_branch
      %51 = sbr.rel (0) target = $region25
    $region24: #{a_call__.15} parent=1 // pred_region
      %52 = dma.done [#allocation3], 5120
    $region25: #{a_call__.15} parent=1 // pred_fallthru
      _
    // Predicated region
    $region26: #{a_call__.15} parent=1 // pred_check
      _
    $region27: #{a_call__.15} parent=1 // pred_check_branch
      %54 = sbr.rel (0) target = $region29
    $region28: #{a_call__.15} parent=1 // pred_region
      %55 = dma.done [#allocation5], 2048
    $region29: #{a_call__.15} parent=1 // pred_fallthru
      _
    // Predicated region
    $region30: #{a_call__.15} parent=1 // pred_check
      _
    $region31: #{a_call__.15} parent=1 // pred_check_branch
      %57 = sbr.rel (0) target = $region33
    $region32: #{a_call__.15} parent=1 // pred_region
      %58 = dma.done [#allocation5], 16
    $region33: #{a_call__.15} parent=1 // pred_fallthru
      _
    %v60 = vld [vmem:[%s0] sm:$0xff]
    %v61 = vld [vmem:[%s0 + $0x8] sm:$0xff]
    %v62 = vld [vmem:[%s0 + $0x10] sm:$0xf]
    %v63 = vld [vmem:[%s0 + $0x14] sm:$0xff]
    %v64 = vld [vmem:[%s0 + $0x1c] sm:$0xff]
    %v65 = vld [vmem:[%s0 + $0x24] sm:$0xf]
    %v66 = vld [vmem:[%s0 + $0x28] sm:$0xff]
    %v67 = vld [vmem:[%s0 + $0x30] sm:$0xff]
    %v68 = vld [vmem:[%s0 + $0x38] sm:$0xf]
    %v69 = vld [vmem:[%s0 + $0x3c] sm:$0xff]
    %v70 = vld [vmem:[%s0 + $0x44] sm:$0xff]
    %v71 = vld [vmem:[%s0 + $0x4c] sm:$0xf]
    %v72 = vld [vmem:[#allocation2] sm:$0xf]
    %v73 = vld [vmem:[#allocation2 + $0x4] sm:$0xf]
    %v74 = vld [vmem:[#allocation2 + $0x8] sm:$0xf]
    %v75 = vld [vmem:[#allocation2 + $0xc] sm:$0xf]
    %v76 = vld [vmem:[#allocation2 + $0x10] sm:$0xf]
    %v77 = vld [vmem:[#allocation2 + $0x14] sm:$0xf]
    %v78 = vld [vmem:[#allocation2 + $0x18] sm:$0xf]
    %v79 = vld [vmem:[#allocation2 + $0x1c] sm:$0xf]
    %v80 = vld [vmem:[#allocation2 + $0x20] sm:$0xf]
    %v81 = vld [vmem:[#allocation2 + $0x24] sm:$0xf]
    %v82 = vld [vmem:[#allocation2 + $0x28] sm:$0xf]
    %v83 = vld [vmem:[#allocation2 + $0x2c] sm:$0xf]
    %v84 = vld [vmem:[#allocation2 + $0x30] sm:$0xf]
    %v85 = vld [vmem:[#allocation2 + $0x34] sm:$0xf]
    %v86 = vld [vmem:[#allocation2 + $0x38] sm:$0xf]
    %v87 = vld [vmem:[#allocation2 + $0x3c] sm:$0xf]
    %v88 = vld [vmem:[#allocation2 + $0x40] sm:$0xf]
    %v89 = vld [vmem:[#allocation2 + $0x44] sm:$0xf]
    %v90 = vld [vmem:[#allocation2 + $0x48] sm:$0xf]
    %v91 = vld [vmem:[#allocation2 + $0x4c] sm:$0xf]
    %v92 = vld [vmem:[#allocation2 + $0x50] sm:$0xf]
    %v93 = vld [vmem:[#allocation2 + $0x54] sm:$0xf]
    %v94 = vld [vmem:[#allocation2 + $0x58] sm:$0xf]
    %v95 = vld [vmem:[#allocation2 + $0x5c] sm:$0xf]
    %v96 = vld [vmem:[#allocation2 + $0x60] sm:$0xf]
    %v97 = vld [vmem:[#allocation2 + $0x64] sm:$0xf]
    %v98 = vld [vmem:[#allocation2 + $0x68] sm:$0xf]
    %v99 = vld [vmem:[#allocation2 + $0x6c] sm:$0xf]
    %v100 = vld [vmem:[#allocation2 + $0x70] sm:$0xf]
    %v101 = vld [vmem:[#allocation2 + $0x74] sm:$0xf]
    %v102 = vld [vmem:[#allocation2 + $0x78] sm:$0xf]
    %v103 = vld [vmem:[#allocation2 + $0x7c] sm:$0xf]
    %v104 = vld [vmem:[#allocation2 + $0x80] sm:$0xf]
    %v105 = vld [vmem:[#allocation2 + $0x84] sm:$0xf]
    %v106 = vld [vmem:[#allocation2 + $0x88] sm:$0xf]
    %v107 = vld [vmem:[#allocation2 + $0x8c] sm:$0xf]
    %v108 = vld [vmem:[#allocation2 + $0x90] sm:$0xf]
    %v109 = vld [vmem:[#allocation2 + $0x94] sm:$0xf]
    %v110 = vld [vmem:[#allocation2 + $0x98] sm:$0xf]
    %v111 = vld [vmem:[#allocation2 + $0x9c] sm:$0xf]
    %v112 = vld [vmem:[#allocation2 + $0xa0] sm:$0xf]
    %v113 = vld [vmem:[#allocation2 + $0xa4] sm:$0xf]
    %v114 = vld [vmem:[#allocation2 + $0xa8] sm:$0xf]
    %v115 = vld [vmem:[#allocation2 + $0xac] sm:$0xf]
    %v116 = vld [vmem:[#allocation2 + $0xb0] sm:$0xf]
    %v117 = vld [vmem:[#allocation2 + $0xb4] sm:$0xf]
    %v118 = vld [vmem:[#allocation2 + $0xb8] sm:$0xf]
    %v119 = vld [vmem:[#allocation2 + $0xbc] sm:$0xf]
    %v120 = vld [vmem:[#allocation2 + $0xc0] sm:$0xf]
    %v121 = vld [vmem:[#allocation2 + $0xc4] sm:$0xf]
    %v122 = vld [vmem:[#allocation2 + $0xc8] sm:$0xf]
    %v123 = vld [vmem:[#allocation2 + $0xcc] sm:$0xf]
    %v124 = vld [vmem:[#allocation2 + $0xd0] sm:$0xf]
    %v125 = vld [vmem:[#allocation2 + $0xd4] sm:$0xf]
    %v126 = vld [vmem:[#allocation2 + $0xd8] sm:$0xf]
    %v127 = vld [vmem:[#allocation2 + $0xdc] sm:$0xf]
    %v128 = vld [vmem:[#allocation2 + $0xe0] sm:$0xf]
    %v129 = vld [vmem:[#allocation2 + $0xe4] sm:$0xf]
    %v130 = vld [vmem:[#allocation2 + $0xe8] sm:$0xf]
    %v131 = vld [vmem:[#allocation2 + $0xec] sm:$0xf]
    %v132 = vld [vmem:[#allocation2 + $0xf0] sm:$0xf]
    %v133 = vld [vmem:[#allocation2 + $0xf4] sm:$0xf]
    %v134 = vld [vmem:[#allocation2 + $0xf8] sm:$0xf]
    %v135 = vld [vmem:[#allocation2 + $0xfc] sm:$0xf]
    %v136 = vld [vmem:[#allocation2 + $0x100] sm:$0xf]
    %v137 = vld [vmem:[#allocation2 + $0x104] sm:$0xf]
    %v138 = vld [vmem:[#allocation2 + $0x108] sm:$0xf]
    %v139 = vld [vmem:[#allocation2 + $0x10c] sm:$0xf]
    %v140 = vld [vmem:[#allocation2 + $0x110] sm:$0xf]
    %v141 = vld [vmem:[#allocation2 + $0x114] sm:$0xf]
    %v142 = vld [vmem:[#allocation2 + $0x118] sm:$0xf]
    %v143 = vld [vmem:[#allocation2 + $0x11c] sm:$0xf]
    %v144 = vld [vmem:[#allocation2 + $0x120] sm:$0xf]
    %v145 = vld [vmem:[#allocation2 + $0x124] sm:$0xf]
    %v146 = vld [vmem:[#allocation2 + $0x128] sm:$0xf]
    %v147 = vld [vmem:[#allocation2 + $0x12c] sm:$0xf]
    %v148 = vld [vmem:[#allocation2 + $0x130] sm:$0xf]
    %v149 = vld [vmem:[#allocation2 + $0x134] sm:$0xf]
    %v150 = vld [vmem:[#allocation2 + $0x138] sm:$0xf]
    %v151 = vld [vmem:[#allocation2 + $0x13c] sm:$0xf]
    %v164 = vunpack.c.l.b16 %v60
    %v165 = vunpack.c.h.b16 %v60
    %v166 = vunpack.c.l.b16 %v61
    %v167 = vunpack.c.h.b16 %v61
    %v168 = vunpack.c.l.b16 %v62
    %v169 = vunpack.c.l.b16 %v63
    %v170 = vunpack.c.h.b16 %v63
    %v171 = vunpack.c.l.b16 %v64
    %v172 = vunpack.c.h.b16 %v64
    %v173 = vunpack.c.l.b16 %v65
    %v174 = vunpack.c.l.b16 %v66
    %v175 = vunpack.c.h.b16 %v66
    %v176 = vunpack.c.l.b16 %v67
    %v177 = vunpack.c.h.b16 %v67
    %v178 = vunpack.c.l.b16 %v68
    %v179 = vunpack.c.l.b16 %v69
    %v180 = vunpack.c.h.b16 %v69
    %v181 = vunpack.c.l.b16 %v70
    %v182 = vunpack.c.h.b16 %v70
    %v183 = vunpack.c.l.b16 %v71
    %v184 = vpack.c.b16 %v169, %v164
    %v185 = vpack.c.b16 %v170, %v165
    %v186 = vpack.c.b16 %v171, %v166
    %v187 = vpack.c.b16 %v172, %v167
    %v188 = vpack.c.b16 %v173, %v168
    %v189 = vpack.c.b16 %v179, %v174
    %v190 = vpack.c.b16 %v180, %v175
    %v191 = vpack.c.b16 %v181, %v176
    %v192 = vpack.c.b16 %v182, %v177
    %v193 = vpack.c.b16 %v183, %v178
    %v284 = vunpack.c.l.b16 %v72
    %v285 = vunpack.c.l.b16 %v73
    %v286 = vunpack.c.l.b16 %v74
    %v287 = vunpack.c.l.b16 %v75
    %v288 = vunpack.c.l.b16 %v76
    %v289 = vunpack.c.l.b16 %v77
    %v290 = vunpack.c.l.b16 %v78
    %v291 = vunpack.c.l.b16 %v79
    %v292 = vunpack.c.l.b16 %v80
    %v293 = vunpack.c.l.b16 %v81
    %v294 = vunpack.c.l.b16 %v82
    %v295 = vunpack.c.l.b16 %v83
    %v296 = vunpack.c.l.b16 %v84
    %v297 = vunpack.c.l.b16 %v85
    %v298 = vunpack.c.l.b16 %v86
    %v299 = vunpack.c.l.b16 %v87
    %v300 = vunpack.c.l.b16 %v88
    %v301 = vunpack.c.l.b16 %v89
    %v302 = vunpack.c.l.b16 %v90
    %v303 = vunpack.c.l.b16 %v91
    %v304 = vunpack.c.l.b16 %v92
    %v305 = vunpack.c.l.b16 %v93
    %v306 = vunpack.c.l.b16 %v94
    %v307 = vunpack.c.l.b16 %v95
    %v308 = vunpack.c.l.b16 %v96
    %v309 = vunpack.c.l.b16 %v97
    %v310 = vunpack.c.l.b16 %v98
    %v311 = vunpack.c.l.b16 %v99
    %v312 = vunpack.c.l.b16 %v100
    %v313 = vunpack.c.l.b16 %v101
    %v314 = vunpack.c.l.b16 %v102
    %v315 = vunpack.c.l.b16 %v103
    %v316 = vunpack.c.l.b16 %v104
    %v317 = vunpack.c.l.b16 %v105
    %v318 = vunpack.c.l.b16 %v106
    %v319 = vunpack.c.l.b16 %v107
    %v320 = vunpack.c.l.b16 %v108
    %v321 = vunpack.c.l.b16 %v109
    %v322 = vunpack.c.l.b16 %v110
    %v323 = vunpack.c.l.b16 %v111
    %v324 = vunpack.c.l.b16 %v112
    %v325 = vunpack.c.l.b16 %v113
    %v326 = vunpack.c.l.b16 %v114
    %v327 = vunpack.c.l.b16 %v115
    %v328 = vunpack.c.l.b16 %v116
    %v329 = vunpack.c.l.b16 %v117
    %v330 = vunpack.c.l.b16 %v118
    %v331 = vunpack.c.l.b16 %v119
    %v332 = vunpack.c.l.b16 %v120
    %v333 = vunpack.c.l.b16 %v121
    %v334 = vunpack.c.l.b16 %v122
    %v335 = vunpack.c.l.b16 %v123
    %v336 = vunpack.c.l.b16 %v124
    %v337 = vunpack.c.l.b16 %v125
    %v338 = vunpack.c.l.b16 %v126
    %v339 = vunpack.c.l.b16 %v127
    %v340 = vunpack.c.l.b16 %v128
    %v341 = vunpack.c.l.b16 %v129
    %v342 = vunpack.c.l.b16 %v130
    %v343 = vunpack.c.l.b16 %v131
    %v344 = vunpack.c.l.b16 %v132
    %v345 = vunpack.c.l.b16 %v133
    %v346 = vunpack.c.l.b16 %v134
    %v347 = vunpack.c.l.b16 %v135
    %v348 = vunpack.c.l.b16 %v136
    %v349 = vunpack.c.l.b16 %v137
    %v350 = vunpack.c.l.b16 %v138
    %v351 = vunpack.c.l.b16 %v139
    %v352 = vunpack.c.l.b16 %v140
    %v353 = vunpack.c.l.b16 %v141
    %v354 = vunpack.c.l.b16 %v142
    %v355 = vunpack.c.l.b16 %v143
    %v356 = vunpack.c.l.b16 %v144
    %v357 = vunpack.c.l.b16 %v145
    %v358 = vunpack.c.l.b16 %v146
    %v359 = vunpack.c.l.b16 %v147
    %v360 = vunpack.c.l.b16 %v148
    %v361 = vunpack.c.l.b16 %v149
    %v362 = vunpack.c.l.b16 %v150
    %v363 = vunpack.c.l.b16 %v151
    %v364 = vpack.c.b16 %v285, %v284
    %v365 = vpack.c.b16 %v287, %v286
    %v366 = vpack.c.b16 %v289, %v288
    %v367 = vpack.c.b16 %v291, %v290
    %v368 = vpack.c.b16 %v293, %v292
    %v369 = vpack.c.b16 %v295, %v294
    %v370 = vpack.c.b16 %v297, %v296
    %v371 = vpack.c.b16 %v299, %v298
    %v372 = vpack.c.b16 %v301, %v300
    %v373 = vpack.c.b16 %v303, %v302
    %v374 = vpack.c.b16 %v305, %v304
    %v375 = vpack.c.b16 %v307, %v306
    %v376 = vpack.c.b16 %v309, %v308
    %v377 = vpack.c.b16 %v311, %v310
    %v378 = vpack.c.b16 %v313, %v312
    %v379 = vpack.c.b16 %v315, %v314
    %v380 = vpack.c.b16 %v317, %v316
    %v381 = vpack.c.b16 %v319, %v318
    %v382 = vpack.c.b16 %v321, %v320
    %v383 = vpack.c.b16 %v323, %v322
    %v384 = vpack.c.b16 %v325, %v324
    %v385 = vpack.c.b16 %v327, %v326
    %v386 = vpack.c.b16 %v329, %v328
    %v387 = vpack.c.b16 %v331, %v330
    %v388 = vpack.c.b16 %v333, %v332
    %v389 = vpack.c.b16 %v335, %v334
    %v390 = vpack.c.b16 %v337, %v336
    %v391 = vpack.c.b16 %v339, %v338
    %v392 = vpack.c.b16 %v341, %v340
    %v393 = vpack.c.b16 %v343, %v342
    %v394 = vpack.c.b16 %v345, %v344
    %v395 = vpack.c.b16 %v347, %v346
    %v396 = vpack.c.b16 %v349, %v348
    %v397 = vpack.c.b16 %v351, %v350
    %v398 = vpack.c.b16 %v353, %v352
    %v399 = vpack.c.b16 %v355, %v354
    %v400 = vpack.c.b16 %v357, %v356
    %v401 = vpack.c.b16 %v359, %v358
    %v402 = vpack.c.b16 %v361, %v360
    %v403 = vpack.c.b16 %v363, %v362
    %444 = vmatprep.subr.bf16.mxu0 0
    %445 = vmatpush1.bf16.msra.mxu0 %v371
    %446 = vmatprep.subr.bf16.mxu0 0
    %447 = vmatpush1.bf16.msra.mxu0 %v370
    %448 = vmatprep.subr.bf16.mxu0 0
    %449 = vmatpush1.bf16.msra.mxu0 %v369
    %450 = vmatprep.subr.bf16.mxu0 0
    %451 = vmatpush1.bf16.msra.mxu0 %v368
    %452 = vmatprep.subr.bf16.mxu0 0
    %453 = vmatpush1.bf16.msra.mxu0 %v367
    %454 = vmatprep.subr.bf16.mxu0 0
    %455 = vmatpush1.bf16.msra.mxu0 %v366
    %456 = vmatprep.subr.bf16.mxu0 0
    %457 = vmatpush1.bf16.msra.mxu0 %v365
    %458 = vmatprep.subr.bf16.mxu0 0
    %459 = vmatpush1.bf16.msra.mxu0 %v364
    %460 = vmatprep.subr.bf16.mxu0 0
    %461 = vmatpush2.bf16.msra.mxu0 %v379
    %462 = vmatprep.subr.bf16.mxu0 0
    %463 = vmatpush2.bf16.msra.mxu0 %v378
    %464 = vmatprep.subr.bf16.mxu0 0
    %465 = vmatpush2.bf16.msra.mxu0 %v377
    %466 = vmatprep.subr.bf16.mxu0 0
    %467 = vmatpush2.bf16.msra.mxu0 %v376
    %468 = vmatprep.subr.bf16.mxu0 0
    %469 = vmatpush2.bf16.msra.mxu0 %v375
    %470 = vmatprep.subr.bf16.mxu0 0
    %471 = vmatpush2.bf16.msra.mxu0 %v374
    %472 = vmatprep.subr.bf16.mxu0 0
    %473 = vmatpush2.bf16.msra.mxu0 %v373
    %474 = vmatprep.subr.bf16.mxu0 0
    %475 = vmatpush2.bf16.msra.mxu0 %v372
    %476 = vmatprep.mubr.bf16.mxu0 %v185
    %477 = vmatmul.mubr.bf16.gmra.mxu0 %v184
    %v478 = vpop.f32.mrf.mxu0
    %v479 = vadd.f32 0.0, %v478
    %v480 = vpop.f32.mrf.mxu0
    %v481 = vpop.f32.mrf.mxu0
    %v482 = vadd.f32 0.0, %v481
    %v483 = vpop.f32.mrf.mxu0
    %484 = vmatprep.mubr.bf16.mxu0 %v190
    %485 = vmatmul.mubr.bf16.gmra.mxu0 %v189
    %v486 = vpop.f32.mrf.mxu0
    %v487 = vadd.f32 0.0, %v486
    %v488 = vpop.f32.mrf.mxu0
    %v489 = vpop.f32.mrf.mxu0
    %v490 = vadd.f32 0.0, %v489
    %v491 = vpop.f32.mrf.mxu0
    %492 = vdwg.mxu0
    %493 = vmatprep.subr.bf16.mxu0 0
    %494 = vmatpush1.bf16.msra.mxu0 %v387
    %495 = vmatprep.subr.bf16.mxu0 0
    %496 = vmatpush1.bf16.msra.mxu0 %v386
    %497 = vmatprep.subr.bf16.mxu0 0
    %498 = vmatpush1.bf16.msra.mxu0 %v385
    %499 = vmatprep.subr.bf16.mxu0 0
    %500 = vmatpush1.bf16.msra.mxu0 %v384
    %501 = vmatprep.subr.bf16.mxu0 0
    %502 = vmatpush1.bf16.msra.mxu0 %v383
    %503 = vmatprep.subr.bf16.mxu0 0
    %504 = vmatpush1.bf16.msra.mxu0 %v382
    %505 = vmatprep.subr.bf16.mxu0 0
    %506 = vmatpush1.bf16.msra.mxu0 %v381
    %507 = vmatprep.subr.bf16.mxu0 0
    %508 = vmatpush1.bf16.msra.mxu0 %v380
    %509 = vmatprep.subr.bf16.mxu0 0
    %510 = vmatpush2.bf16.msra.mxu0 %v395
    %511 = vmatprep.subr.bf16.mxu0 0
    %512 = vmatpush2.bf16.msra.mxu0 %v394
    %513 = vmatprep.subr.bf16.mxu0 0
    %514 = vmatpush2.bf16.msra.mxu0 %v393
    %515 = vmatprep.subr.bf16.mxu0 0
    %516 = vmatpush2.bf16.msra.mxu0 %v392
    %517 = vmatprep.subr.bf16.mxu0 0
    %518 = vmatpush2.bf16.msra.mxu0 %v391
    %519 = vmatprep.subr.bf16.mxu0 0
    %520 = vmatpush2.bf16.msra.mxu0 %v390
    %521 = vmatprep.subr.bf16.mxu0 0
    %522 = vmatpush2.bf16.msra.mxu0 %v389
    %523 = vmatprep.subr.bf16.mxu0 0
    %524 = vmatpush2.bf16.msra.mxu0 %v388
    %525 = vmatprep.mubr.bf16.mxu0 %v187
    %526 = vmatmul.mubr.bf16.gmra.mxu0 %v186
    %v527 = vpop.f32.mrf.mxu0
    %v528 = vadd.f32 %v479, %v527
    %v529 = vpop.f32.mrf.mxu0
    %v530 = vpop.f32.mrf.mxu0
    %v531 = vadd.f32 %v482, %v530
    %v532 = vpop.f32.mrf.mxu0
    %533 = vmatprep.mubr.bf16.mxu0 %v192
    %534 = vmatmul.mubr.bf16.gmra.mxu0 %v191
    %v535 = vpop.f32.mrf.mxu0
    %v536 = vadd.f32 %v487, %v535
    %v537 = vpop.f32.mrf.mxu0
    %v538 = vpop.f32.mrf.mxu0
    %v539 = vadd.f32 %v490, %v538
    %v540 = vpop.f32.mrf.mxu0
    %541 = vdwg.mxu0
    %542 = vmatprep.subr.bf16.mxu0 0
    %543 = vmatpush1.bf16.msra.mxu0 %v403
    %544 = vmatprep.subr.bf16.mxu0 0
    %545 = vmatpush1.bf16.msra.mxu0 %v402
    %546 = vmatprep.subr.bf16.mxu0 0
    %547 = vmatpush1.bf16.msra.mxu0 %v401
    %548 = vmatprep.subr.bf16.mxu0 0
    %549 = vmatpush1.bf16.msra.mxu0 %v400
    %550 = vmatprep.subr.bf16.mxu0 0
    %551 = vmatpush1.bf16.msra.mxu0 %v399
    %552 = vmatprep.subr.bf16.mxu0 0
    %553 = vmatpush1.bf16.msra.mxu0 %v398
    %554 = vmatprep.subr.bf16.mxu0 0
    %555 = vmatpush1.bf16.msra.mxu0 %v397
    %556 = vmatprep.subr.bf16.mxu0 0
    %557 = vmatpush1.bf16.msra.mxu0 %v396
    %558 = vmatprep.subr.bf16.mxu0 0
    %559 = vmatpush2.bf16.msra.mxu0 0
    %560 = vmatprep.subr.bf16.mxu0 0
    %561 = vmatpush2.bf16.msra.mxu0 0
    %562 = vmatprep.subr.bf16.mxu0 0
    %563 = vmatpush2.bf16.msra.mxu0 0
    %564 = vmatprep.subr.bf16.mxu0 0
    %565 = vmatpush2.bf16.msra.mxu0 0
    %566 = vmatprep.subr.bf16.mxu0 0
    %567 = vmatpush2.bf16.msra.mxu0 0
    %568 = vmatprep.subr.bf16.mxu0 0
    %569 = vmatpush2.bf16.msra.mxu0 0
    %570 = vmatprep.subr.bf16.mxu0 0
    %571 = vmatpush2.bf16.msra.mxu0 0
    %572 = vmatprep.subr.bf16.mxu0 0
    %573 = vmatpush2.bf16.msra.mxu0 0
    %574 = vmatprep.mubr.bf16.mxu0 0
    %575 = vmatmul.mubr.bf16.gmra.mxu0 %v188
    %v576 = vpop.f32.mrf.mxu0
    %v577 = vadd.f32 %v528, %v576
    %v578 = vpop.f32.mrf.mxu0
    %v579 = vpop.f32.mrf.mxu0
    %v580 = vadd.f32 %v531, %v579
    %v581 = vpop.f32.mrf.mxu0
    %582 = vmatprep.mubr.bf16.mxu0 0
    %583 = vmatmul.mubr.bf16.gmra.mxu0 %v193
    %v584 = vpop.f32.mrf.mxu0
    %v585 = vadd.f32 %v536, %v584
    %v586 = vpop.f32.mrf.mxu0
    %v587 = vpop.f32.mrf.mxu0
    %v588 = vadd.f32 %v539, %v587
    %v589 = vpop.f32.mrf.mxu0
    %590 = vdwg.mxu0
    %v591 = vadd.f32 %v577, %v580
    %v592 = vadd.f32 %v591, %v585
    %v593 = vadd.f32 %v592, %v588
    %v594 = vrot.slane %v593, 4
    %v595 = vadd.f32 %v593, %v594
    %v596 = vrot.slane %v595, 2
    %v597 = vadd.f32 %v595, %v596
    %v598 = vrot.slane %v597, 1
    %v599 = vadd.f32 %v597, %v598
    %v600 = vmul.f32 %v577, %v577
    %v601 = vmul.f32 %v580, %v580
    %v602 = vmul.f32 %v585, %v585
    %v603 = vmul.f32 %v588, %v588
    %v604 = vadd.f32 %v600, %v601
    %v605 = vadd.f32 %v604, %v602
    %v606 = vadd.f32 %v605, %v603
    %v607 = vrot.slane %v606, 4
    %v608 = vadd.f32 %v606, %v607
    %v609 = vrot.slane %v608, 2
    %v610 = vadd.f32 %v608, %v609
    %v611 = vrot.slane %v610, 1
    %v612 = vadd.f32 %v610, %v611
    %v613 = vld [vmem:[#allocation4] sm:$0xff]
    %v614 = vld [vmem:[#allocation4 + $0x8] sm:$0xff]
    %v615 = vld [vmem:[#allocation4 + $0x10] sm:$0xff]
    %v616 = vld [vmem:[#allocation4 + $0x18] sm:$0xff]
    %v617 = vld [vmem:[#allocation4 + $0x20] sm:$0xff]
    %v618 = vld [vmem:[#allocation4 + $0x28] sm:$0xff]
    %v619 = vld [vmem:[#allocation4 + $0x30] sm:$0xff]
    %v620 = vld [vmem:[#allocation4 + $0x38] sm:$0xff]
    %v621 = vld [vmem:[#allocation4 + $0x40] sm:$0xff]
    %v622 = vld [vmem:[#allocation4 + $0x48] sm:$0xff]
    %v623 = vld [vmem:[#allocation4 + $0x50] sm:$0xff]
    %v624 = vld [vmem:[#allocation4 + $0x58] sm:$0xff]
    %v625 = vld [vmem:[#allocation4 + $0x60] sm:$0xff]
    %v626 = vld [vmem:[#allocation4 + $0x68] sm:$0xff]
    %v627 = vld [vmem:[#allocation4 + $0x70] sm:$0xff]
    %v628 = vld [vmem:[#allocation4 + $0x78] sm:$0xff]
    %629 = vmatprep.subr.mxu0 0.0
    %630 = vmatpush1.msra.mxu0 %v628
    %631 = vmatprep.subr.mxu0 0.0
    %632 = vmatpush1.msra.mxu0 %v627
    %633 = vmatprep.subr.mxu0 0.0
    %634 = vmatpush1.msra.mxu0 %v626
    %635 = vmatprep.subr.mxu0 0.0
    %636 = vmatpush1.msra.mxu0 %v625
    %637 = vmatprep.subr.mxu0 0.0
    %638 = vmatpush1.msra.mxu0 %v624
    %639 = vmatprep.subr.mxu0 0.0
    %640 = vmatpush1.msra.mxu0 %v623
    %641 = vmatprep.subr.mxu0 0.0
    %642 = vmatpush1.msra.mxu0 %v622
    %643 = vmatprep.subr.mxu0 0.0
    %644 = vmatpush1.msra.mxu0 %v621
    %645 = vmatprep.subr.mxu0 0.0
    %646 = vmatpush1.msra.mxu0 %v620
    %647 = vmatprep.subr.mxu0 0.0
    %648 = vmatpush1.msra.mxu0 %v619
    %649 = vmatprep.subr.mxu0 0.0
    %650 = vmatpush1.msra.mxu0 %v618
    %651 = vmatprep.subr.mxu0 0.0
    %652 = vmatpush1.msra.mxu0 %v617
    %653 = vmatprep.subr.mxu0 0.0
    %654 = vmatpush1.msra.mxu0 %v616
    %655 = vmatprep.subr.mxu0 0.0
    %656 = vmatpush1.msra.mxu0 %v615
    %657 = vmatprep.subr.mxu0 0.0
    %658 = vmatpush1.msra.mxu0 %v614
    %659 = vmatprep.subr.mxu0 0.0
    %660 = vmatpush1.msra.mxu0 %v613
    %661 = vmatprep.subr.mxu0 0.0
    %662 = vmatpush2.msra.mxu0 0.0
    %663 = vmatprep.subr.mxu0 0.0
    %664 = vmatpush2.msra.mxu0 0.0
    %665 = vmatprep.subr.mxu0 0.0
    %666 = vmatpush2.msra.mxu0 0.0
    %667 = vmatprep.subr.mxu0 0.0
    %668 = vmatpush2.msra.mxu0 0.0
    %669 = vmatprep.subr.mxu0 0.0
    %670 = vmatpush2.msra.mxu0 0.0
    %671 = vmatprep.subr.mxu0 0.0
    %672 = vmatpush2.msra.mxu0 0.0
    %673 = vmatprep.subr.mxu0 0.0
    %674 = vmatpush2.msra.mxu0 0.0
    %675 = vmatprep.subr.mxu0 0.0
    %676 = vmatpush2.msra.mxu0 0.0
    %677 = vmatprep.subr.mxu0 0.0
    %678 = vmatpush2.msra.mxu0 0.0
    %679 = vmatprep.subr.mxu0 0.0
    %680 = vmatpush2.msra.mxu0 0.0
    %681 = vmatprep.subr.mxu0 0.0
    %682 = vmatpush2.msra.mxu0 0.0
    %683 = vmatprep.subr.mxu0 0.0
    %684 = vmatpush2.msra.mxu0 0.0
    %685 = vmatprep.subr.mxu0 0.0
    %686 = vmatpush2.msra.mxu0 0.0
    %687 = vmatprep.subr.mxu0 0.0
    %688 = vmatpush2.msra.mxu0 0.0
    %689 = vmatprep.subr.mxu0 0.0
    %690 = vmatpush2.msra.mxu0 0.0
    %691 = vmatprep.subr.mxu0 0.0
    %692 = vmatpush2.msra.mxu0 0.0
    %693 = vmatprep.mubr.f32.mxu0 0.0
    %694 = vmatmul.mubr.f32.gmra.mxu0 %v599
    %v695 = vpop.f32.mrf.mxu0
    %v696 = vadd.f32 0.0, %v695
    %v697 = vpop.f32.mrf.mxu0
    %698 = vdwg.mxu0
    %699 = vmatprep.subr.mxu0 0.0
    %700 = vmatpush1.msra.mxu0 %v628
    %701 = vmatprep.subr.mxu0 0.0
    %702 = vmatpush1.msra.mxu0 %v627
    %703 = vmatprep.subr.mxu0 0.0
    %704 = vmatpush1.msra.mxu0 %v626
    %705 = vmatprep.subr.mxu0 0.0
    %706 = vmatpush1.msra.mxu0 %v625
    %707 = vmatprep.subr.mxu0 0.0
    %708 = vmatpush1.msra.mxu0 %v624
    %709 = vmatprep.subr.mxu0 0.0
    %710 = vmatpush1.msra.mxu0 %v623
    %711 = vmatprep.subr.mxu0 0.0
    %712 = vmatpush1.msra.mxu0 %v622
    %713 = vmatprep.subr.mxu0 0.0
    %714 = vmatpush1.msra.mxu0 %v621
    %715 = vmatprep.subr.mxu0 0.0
    %716 = vmatpush1.msra.mxu0 %v620
    %717 = vmatprep.subr.mxu0 0.0
    %718 = vmatpush1.msra.mxu0 %v619
    %719 = vmatprep.subr.mxu0 0.0
    %720 = vmatpush1.msra.mxu0 %v618
    %721 = vmatprep.subr.mxu0 0.0
    %722 = vmatpush1.msra.mxu0 %v617
    %723 = vmatprep.subr.mxu0 0.0
    %724 = vmatpush1.msra.mxu0 %v616
    %725 = vmatprep.subr.mxu0 0.0
    %726 = vmatpush1.msra.mxu0 %v615
    %727 = vmatprep.subr.mxu0 0.0
    %728 = vmatpush1.msra.mxu0 %v614
    %729 = vmatprep.subr.mxu0 0.0
    %730 = vmatpush1.msra.mxu0 %v613
    %731 = vmatprep.subr.mxu0 0.0
    %732 = vmatpush2.msra.mxu0 0.0
    %733 = vmatprep.subr.mxu0 0.0
    %734 = vmatpush2.msra.mxu0 0.0
    %735 = vmatprep.subr.mxu0 0.0
    %736 = vmatpush2.msra.mxu0 0.0
    %737 = vmatprep.subr.mxu0 0.0
    %738 = vmatpush2.msra.mxu0 0.0
    %739 = vmatprep.subr.mxu0 0.0
    %740 = vmatpush2.msra.mxu0 0.0
    %741 = vmatprep.subr.mxu0 0.0
    %742 = vmatpush2.msra.mxu0 0.0
    %743 = vmatprep.subr.mxu0 0.0
    %744 = vmatpush2.msra.mxu0 0.0
    %745 = vmatprep.subr.mxu0 0.0
    %746 = vmatpush2.msra.mxu0 0.0
    %747 = vmatprep.subr.mxu0 0.0
    %748 = vmatpush2.msra.mxu0 0.0
    %749 = vmatprep.subr.mxu0 0.0
    %750 = vmatpush2.msra.mxu0 0.0
    %751 = vmatprep.subr.mxu0 0.0
    %752 = vmatpush2.msra.mxu0 0.0
    %753 = vmatprep.subr.mxu0 0.0
    %754 = vmatpush2.msra.mxu0 0.0
    %755 = vmatprep.subr.mxu0 0.0
    %756 = vmatpush2.msra.mxu0 0.0
    %757 = vmatprep.subr.mxu0 0.0
    %758 = vmatpush2.msra.mxu0 0.0
    %759 = vmatprep.subr.mxu0 0.0
    %760 = vmatpush2.msra.mxu0 0.0
    %761 = vmatprep.subr.mxu0 0.0
    %762 = vmatpush2.msra.mxu0 0.0
    %763 = vmatprep.mubr.f32.mxu0 0.0
    %764 = vmatmul.mubr.f32.gmra.mxu0 %v612
    %v765 = vpop.f32.mrf.mxu0
    %v766 = vadd.f32 0.0, %v765
    %v767 = vpop.f32.mrf.mxu0
    %768 = vdwg.mxu0
    %v769 = vmul.f32 %v696, %v696
    %v770 = vsub.f32 %v766, %v769
    %v771 = vmax.f32 %v770, 0.0
    %v772 = vld [vmem:[#allocation6] sm:$0x1]
    %v773 = vadd.f32 %v771, 1e-05
    %v774 = vrsqrt.pop %v773
    %v775 = vmul.f32 %v772, %v774
    %v776 = vld [vmem:[%s4] sm:$0x1]
    %v777 = vmul.f32 %v696, %v775
    %v778 = vsub.f32 %v776, %v777
    %v780 = vlaneseq
    %v781 = vshrl.u32 %v780, 7
    %v782 = vsub.s32 0, %v781
    %v783 = vrot.slane %v775, %v782
    %v785 = vmul.f32 %v577, %v783
    %v786 = vmul.f32 %v580, %v783
    %v787 = vmul.f32 %v585, %v783
    %v788 = vmul.f32 %v588, %v783
    %v790 = vlaneseq
    %v791 = vshrl.u32 %v790, 7
    %v792 = vsub.s32 0, %v791
    %v793 = vrot.slane %v778, %v792
    %v795 = vadd.f32 %v785, %v793
    %v796 = vadd.f32 %v786, %v793
    %v797 = vadd.f32 %v787, %v793
    %v798 = vadd.f32 %v788, %v793
    %v799 = vmax.f32 %v795, 0.0
    %v800 = vmax.f32 %v796, 0.0
    %v801 = vmax.f32 %v797, 0.0
    %v802 = vmax.f32 %v798, 0.0
    %v803 = vpack.c.bf16 %v800, %v799
    %v804 = vpack.c.bf16 %v802, %v801
    %v807 = vunpack.c.l.b16 %v803
    %v808 = vunpack.c.h.b16 %v803
    %v809 = vunpack.c.l.b16 %v804
    %v810 = vunpack.c.h.b16 %v804
    %v811 = vpack.c.b16 %v807, %v807
    %v812 = vpack.c.b16 %v808, %v808
    %v813 = vpack.c.b16 %v809, %v809
    %v814 = vpack.c.b16 %v810, %v810
    %819 = vst [vmem:[%s5] sm:$0xf] %v811
    %820 = vst [vmem:[%s5 + $0x4] sm:$0xf] %v812
    %821 = vst [vmem:[%s5 + $0x8] sm:$0xf] %v813
    %822 = vst [vmem:[%s5 + $0xc] sm:$0xf] %v814
    // Predicated region
    $region34: #{a_call__.15} parent=1 // pred_check
      _
    $region35: #{a_call__.15} parent=1 // pred_check_branch
      %824 = sbr.rel (0) target = $region37
    $region36: #{a_call__.15} parent=1 // pred_region
      _
    $region37: #{a_call__.15} parent=1 // pred_fallthru
      _
    // Predicated region
    $region38: #{a_call__.15} parent=1 // pred_check
      _
    $region39: #{a_call__.15} parent=1 // pred_check_branch
      %826 = sbr.rel (0) target = $region41
    $region40: #{a_call__.15} parent=1 // pred_region
      _
    $region41: #{a_call__.15} parent=1 // pred_fallthru
      _
    %827 = vsyncpa [#allocation3], 1
    %828 = vsyncpa [#allocation5], 1

// kernel: a_call__.16
$region0: #{a_call__.16}
  #allocation0 [shape = 'u32[]', space=smem, size = 0x4, offset = 0x4, fixed_abs, tag = 'smem constant byte address 0x4 - core index']
  #allocation1 [shape = 'u32[144,128]{1,0:T(1,128)}', space=vmem, size = 0x12000, scoped, tag = 'internal scratch']
  %s0 = inlined_call_operand.vmem [shape: bf16[128,128], index: 0, kind: input, shape index: {}]
  %s1 = inlined_call_operand.hbm [shape: bf16[128,128], index: 1, kind: input, shape index: {}]
  %s2 = inlined_call_operand.hbm [shape: f32[128,128], index: 2, kind: input, shape index: {}]
  %s3 = inlined_call_operand.hbm [shape: f32[1,128], index: 3, kind: input, shape index: {}]
  %s4 = inlined_call_operand.vmem [shape: f32[1,128], index: 4, kind: input, shape index: {}]
  %s5 = inlined_call_operand.vmem [shape: bf16[128,128], index: 5, kind: output, shape index: {}]
  %s6 = sld [smem:[#allocation0]]
  $region42: #{a_call__.16} parent=0
    _
  %s8 = ssub.s32 1, %s6
  %s9 = scalar_select 0, %s8, %s6
  $region1: #{a_call__.16} parent=0
    #allocation2 [shape = 'u8[32768]{0}', space=vmem, size = 0x8000, scoped, tag = 'input window, operand 1, single buffered']
    #allocation3 [shape = 's32[1]{0}', space=sflag, size = 0x4, scoped, tag = 'scoped memory for a_call__.16']
    #allocation4 [shape = 'u8[65536]{0}', space=vmem, size = 0x10000, scoped, tag = 'input window, operand 2, single buffered']
    #allocation5 [shape = 's32[1]{0}', space=sflag, size = 0x4, scoped, tag = 'scoped memory for a_call__.16']
    #allocation6 [shape = 'u8[512]{0}', space=vmem, size = 0x400, scoped, tag = 'input window, operand 3, single buffered']
    %10 = vsyncpa [#allocation3], 0
    %11 = vsyncpa [#allocation5], 0
    // Predicated region
    $region2: #{a_call__.16} parent=1 // pred_check
      _
    $region3: #{a_call__.16} parent=1 // pred_check_branch
      %13 = sbr.rel (0) target = $region5
    $region4: #{a_call__.16} parent=1 // pred_region
      _
    $region5: #{a_call__.16} parent=1 // pred_fallthru
      _
    // Predicated region
    $region6: #{a_call__.16} parent=1 // pred_check
      _
    $region7: #{a_call__.16} parent=1 // pred_check_branch
      %15 = sbr.rel (0) target = $region9
    $region8: #{a_call__.16} parent=1 // pred_region
      %s17 = ssub.s32 1024, 1024
      %18 = vsyncadd [#allocation3], %s17
      %s19 = sshll.u32 [#allocation2], 4
      %s20 = int_to_ptr.vmem [resolvable:$true] %s19
      %25 = dma.hbm_to_vmem [thread:$0]  %s1, 1024, %s20, [#allocation3], 64, 64, 4
    $region9: #{a_call__.16} parent=1 // pred_fallthru
      _
    // Predicated region
    $region10: #{a_call__.16} parent=1 // pred_check
      _
    $region11: #{a_call__.16} parent=1 // pred_check_branch
      %27 = sbr.rel (0) target = $region13
    $region12: #{a_call__.16} parent=1 // pred_region
      %s29 = ssub.s32 2048, 2048
      %30 = vsyncadd [#allocation5], %s29
      %s31 = sshll.u32 [#allocation4], 4
      %s32 = int_to_ptr.vmem [resolvable:$true] %s31
      %37 = dma.hbm_to_vmem [thread:$0]  %s2, 2048, %s32, [#allocation5], 128, 128, 8
    $region13: #{a_call__.16} parent=1 // pred_fallthru
      _
    // Predicated region
    $region14: #{a_call__.16} parent=1 // pred_check
      _
    $region15: #{a_call__.16} parent=1 // pred_check_branch
      %39 = sbr.rel (0) target = $region17
    $region16: #{a_call__.16} parent=1 // pred_region
      %s41 = ssub.s32 16, 16
      %42 = vsyncadd [#allocation5], %s41
      %s44 = sshll.u32 [#allocation6], 4
      %s45 = int_to_ptr.vmem [resolvable:$true] %s44
      %47 = dma.hbm_to_vmem [thread:$0]  %s3, 16, %s45, [#allocation5]
    $region17: #{a_call__.16} parent=1 // pred_fallthru
      _
    // Predicated region
    $region18: #{a_call__.16} parent=1 // pred_check
      _
    $region19: #{a_call__.16} parent=1 // pred_check_branch
      %49 = sbr.rel (0) target = $region21
    $region20: #{a_call__.16} parent=1 // pred_region
      _
    $region21: #{a_call__.16} parent=1 // pred_fallthru
      _
    // Predicated region
    $region22: #{a_call__.16} parent=1 // pred_check
      _
    $region23: #{a_call__.16} parent=1 // pred_check_branch
      %51 = sbr.rel (0) target = $region25
    $region24: #{a_call__.16} parent=1 // pred_region
      %52 = dma.done [#allocation3], 1024
    $region25: #{a_call__.16} parent=1 // pred_fallthru
      _
    // Predicated region
    $region26: #{a_call__.16} parent=1 // pred_check
      _
    $region27: #{a_call__.16} parent=1 // pred_check_branch
      %54 = sbr.rel (0) target = $region29
    $region28: #{a_call__.16} parent=1 // pred_region
      %55 = dma.done [#allocation5], 2048
    $region29: #{a_call__.16} parent=1 // pred_fallthru
      _
    // Predicated region
    $region30: #{a_call__.16} parent=1 // pred_check
      _
    $region31: #{a_call__.16} parent=1 // pred_check_branch
      %57 = sbr.rel (0) target = $region33
    $region32: #{a_call__.16} parent=1 // pred_region
      %58 = dma.done [#allocation5], 16
    $region33: #{a_call__.16} parent=1 // pred_fallthru
      _
    %v60 = vld [vmem:[%s0] sm:$0xf]
    %v61 = vld [vmem:[%s0 + $0x4] sm:$0xf]
    %v62 = vld [vmem:[%s0 + $0x8] sm:$0xf]
    %v63 = vld [vmem:[%s0 + $0xc] sm:$0xf]
    %v64 = vld [vmem:[%s0 + $0x10] sm:$0xf]
    %v65 = vld [vmem:[%s0 + $0x14] sm:$0xf]
    %v66 = vld [vmem:[%s0 + $0x18] sm:$0xf]
    %v67 = vld [vmem:[%s0 + $0x1c] sm:$0xf]
    %v68 = vld [vmem:[%s0 + $0x20] sm:$0xf]
    %v69 = vld [vmem:[%s0 + $0x24] sm:$0xf]
    %v70 = vld [vmem:[%s0 + $0x28] sm:$0xf]
    %v71 = vld [vmem:[%s0 + $0x2c] sm:$0xf]
    %v72 = vld [vmem:[%s0 + $0x30] sm:$0xf]
    %v73 = vld [vmem:[%s0 + $0x34] sm:$0xf]
    %v74 = vld [vmem:[%s0 + $0x38] sm:$0xf]
    %v75 = vld [vmem:[%s0 + $0x3c] sm:$0xf]
    %v76 = vld [vmem:[#allocation2] sm:$0xf]
    %v77 = vld [vmem:[#allocation2 + $0x4] sm:$0xf]
    %v78 = vld [vmem:[#allocation2 + $0x8] sm:$0xf]
    %v79 = vld [vmem:[#allocation2 + $0xc] sm:$0xf]
    %v80 = vld [vmem:[#allocation2 + $0x10] sm:$0xf]
    %v81 = vld [vmem:[#allocation2 + $0x14] sm:$0xf]
    %v82 = vld [vmem:[#allocation2 + $0x18] sm:$0xf]
    %v83 = vld [vmem:[#allocation2 + $0x1c] sm:$0xf]
    %v84 = vld [vmem:[#allocation2 + $0x20] sm:$0xf]
    %v85 = vld [vmem:[#allocation2 + $0x24] sm:$0xf]
    %v86 = vld [vmem:[#allocation2 + $0x28] sm:$0xf]
    %v87 = vld [vmem:[#allocation2 + $0x2c] sm:$0xf]
    %v88 = vld [vmem:[#allocation2 + $0x30] sm:$0xf]
    %v89 = vld [vmem:[#allocation2 + $0x34] sm:$0xf]
    %v90 = vld [vmem:[#allocation2 + $0x38] sm:$0xf]
    %v91 = vld [vmem:[#allocation2 + $0x3c] sm:$0xf]
    %v108 = vunpack.c.l.b16 %v60
    %v109 = vunpack.c.l.b16 %v61
    %v110 = vunpack.c.l.b16 %v62
    %v111 = vunpack.c.l.b16 %v63
    %v112 = vunpack.c.l.b16 %v64
    %v113 = vunpack.c.l.b16 %v65
    %v114 = vunpack.c.l.b16 %v66
    %v115 = vunpack.c.l.b16 %v67
    %v116 = vunpack.c.l.b16 %v68
    %v117 = vunpack.c.l.b16 %v69
    %v118 = vunpack.c.l.b16 %v70
    %v119 = vunpack.c.l.b16 %v71
    %v120 = vunpack.c.l.b16 %v72
    %v121 = vunpack.c.l.b16 %v73
    %v122 = vunpack.c.l.b16 %v74
    %v123 = vunpack.c.l.b16 %v75
    %v124 = vpack.c.b16 %v109, %v108
    %v125 = vpack.c.b16 %v111, %v110
    %v126 = vpack.c.b16 %v113, %v112
    %v127 = vpack.c.b16 %v115, %v114
    %v128 = vpack.c.b16 %v117, %v116
    %v129 = vpack.c.b16 %v119, %v118
    %v130 = vpack.c.b16 %v121, %v120
    %v131 = vpack.c.b16 %v123, %v122
    %v156 = vunpack.c.l.b16 %v76
    %v157 = vunpack.c.l.b16 %v77
    %v158 = vunpack.c.l.b16 %v78
    %v159 = vunpack.c.l.b16 %v79
    %v160 = vunpack.c.l.b16 %v80
    %v161 = vunpack.c.l.b16 %v81
    %v162 = vunpack.c.l.b16 %v82
    %v163 = vunpack.c.l.b16 %v83
    %v164 = vunpack.c.l.b16 %v84
    %v165 = vunpack.c.l.b16 %v85
    %v166 = vunpack.c.l.b16 %v86
    %v167 = vunpack.c.l.b16 %v87
    %v168 = vunpack.c.l.b16 %v88
    %v169 = vunpack.c.l.b16 %v89
    %v170 = vunpack.c.l.b16 %v90
    %v171 = vunpack.c.l.b16 %v91
    %v172 = vpack.c.b16 %v157, %v156
    %v173 = vpack.c.b16 %v159, %v158
    %v174 = vpack.c.b16 %v161, %v160
    %v175 = vpack.c.b16 %v163, %v162
    %v176 = vpack.c.b16 %v165, %v164
    %v177 = vpack.c.b16 %v167, %v166
    %v178 = vpack.c.b16 %v169, %v168
    %v179 = vpack.c.b16 %v171, %v170
    %188 = vmatprep.subr.bf16.mxu0 0
    %189 = vmatpush1.bf16.msra.mxu0 %v179
    %190 = vmatprep.subr.bf16.mxu0 0
    %191 = vmatpush1.bf16.msra.mxu0 %v178
    %192 = vmatprep.subr.bf16.mxu0 0
    %193 = vmatpush1.bf16.msra.mxu0 %v177
    %194 = vmatprep.subr.bf16.mxu0 0
    %195 = vmatpush1.bf16.msra.mxu0 %v176
    %196 = vmatprep.subr.bf16.mxu0 0
    %197 = vmatpush1.bf16.msra.mxu0 %v175
    %198 = vmatprep.subr.bf16.mxu0 0
    %199 = vmatpush1.bf16.msra.mxu0 %v174
    %200 = vmatprep.subr.bf16.mxu0 0
    %201 = vmatpush1.bf16.msra.mxu0 %v173
    %202 = vmatprep.subr.bf16.mxu0 0
    %203 = vmatpush1.bf16.msra.mxu0 %v172
    %204 = vmatprep.subr.bf16.mxu0 0
    %205 = vmatpush2.bf16.msra.mxu0 0
    %206 = vmatprep.subr.bf16.mxu0 0
    %207 = vmatpush2.bf16.msra.mxu0 0
    %208 = vmatprep.subr.bf16.mxu0 0
    %209 = vmatpush2.bf16.msra.mxu0 0
    %210 = vmatprep.subr.bf16.mxu0 0
    %211 = vmatpush2.bf16.msra.mxu0 0
    %212 = vmatprep.subr.bf16.mxu0 0
    %213 = vmatpush2.bf16.msra.mxu0 0
    %214 = vmatprep.subr.bf16.mxu0 0
    %215 = vmatpush2.bf16.msra.mxu0 0
    %216 = vmatprep.subr.bf16.mxu0 0
    %217 = vmatpush2.bf16.msra.mxu0 0
    %218 = vmatprep.subr.bf16.mxu0 0
    %219 = vmatpush2.bf16.msra.mxu0 0
    %220 = vmatprep.mubr.bf16.mxu0 0
    %221 = vmatmul.mubr.bf16.gmra.mxu0 %v124
    %v222 = vpop.f32.mrf.mxu0
    %v223 = vadd.f32 0.0, %v222
    %v224 = vpop.f32.mrf.mxu0
    %v225 = vpop.f32.mrf.mxu0
    %v226 = vadd.f32 0.0, %v225
    %v227 = vpop.f32.mrf.mxu0
    %228 = vmatprep.mubr.bf16.mxu0 0
    %229 = vmatmul.mubr.bf16.gmra.mxu0 %v125
    %v230 = vpop.f32.mrf.mxu0
    %v231 = vadd.f32 0.0, %v230
    %v232 = vpop.f32.mrf.mxu0
    %v233 = vpop.f32.mrf.mxu0
    %v234 = vadd.f32 0.0, %v233
    %v235 = vpop.f32.mrf.mxu0
    %236 = vmatprep.mubr.bf16.mxu0 0
    %237 = vmatmul.mubr.bf16.gmra.mxu0 %v126
    %v238 = vpop.f32.mrf.mxu0
    %v239 = vadd.f32 0.0, %v238
    %v240 = vpop.f32.mrf.mxu0
    %v241 = vpop.f32.mrf.mxu0
    %v242 = vadd.f32 0.0, %v241
    %v243 = vpop.f32.mrf.mxu0
    %244 = vmatprep.mubr.bf16.mxu0 0
    %245 = vmatmul.mubr.bf16.gmra.mxu0 %v127
    %v246 = vpop.f32.mrf.mxu0
    %v247 = vadd.f32 0.0, %v246
    %v248 = vpop.f32.mrf.mxu0
    %v249 = vpop.f32.mrf.mxu0
    %v250 = vadd.f32 0.0, %v249
    %v251 = vpop.f32.mrf.mxu0
    %252 = vmatprep.mubr.bf16.mxu0 0
    %253 = vmatmul.mubr.bf16.gmra.mxu0 %v128
    %v254 = vpop.f32.mrf.mxu0
    %v255 = vadd.f32 0.0, %v254
    %v256 = vpop.f32.mrf.mxu0
    %v257 = vpop.f32.mrf.mxu0
    %v258 = vadd.f32 0.0, %v257
    %v259 = vpop.f32.mrf.mxu0
    %260 = vmatprep.mubr.bf16.mxu0 0
    %261 = vmatmul.mubr.bf16.gmra.mxu0 %v129
    %v262 = vpop.f32.mrf.mxu0
    %v263 = vadd.f32 0.0, %v262
    %v264 = vpop.f32.mrf.mxu0
    %v265 = vpop.f32.mrf.mxu0
    %v266 = vadd.f32 0.0, %v265
    %v267 = vpop.f32.mrf.mxu0
    %268 = vmatprep.mubr.bf16.mxu0 0
    %269 = vmatmul.mubr.bf16.gmra.mxu0 %v130
    %v270 = vpop.f32.mrf.mxu0
    %v271 = vadd.f32 0.0, %v270
    %v272 = vpop.f32.mrf.mxu0
    %v273 = vpop.f32.mrf.mxu0
    %v274 = vadd.f32 0.0, %v273
    %v275 = vpop.f32.mrf.mxu0
    %276 = vmatprep.mubr.bf16.mxu0 0
    %277 = vmatmul.mubr.bf16.gmra.mxu0 %v131
    %v278 = vpop.f32.mrf.mxu0
    %v279 = vadd.f32 0.0, %v278
    %v280 = vpop.f32.mrf.mxu0
    %v281 = vpop.f32.mrf.mxu0
    %v282 = vadd.f32 0.0, %v281
    %v283 = vpop.f32.mrf.mxu0
    %284 = vdwg.mxu0
    %v285 = vadd.f32 %v223, %v226
    %v286 = vadd.f32 %v285, %v231
    %v287 = vadd.f32 %v286, %v234
    %v288 = vadd.f32 %v287, %v239
    %v289 = vadd.f32 %v288, %v242
    %v290 = vadd.f32 %v289, %v247
    %v291 = vadd.f32 %v290, %v250
    %v292 = vadd.f32 %v291, %v255
    %v293 = vadd.f32 %v292, %v258
    %v294 = vadd.f32 %v293, %v263
    %v295 = vadd.f32 %v294, %v266
    %v296 = vadd.f32 %v295, %v271
    %v297 = vadd.f32 %v296, %v274
    %v298 = vadd.f32 %v297, %v279
    %v299 = vadd.f32 %v298, %v282
    %v300 = vrot.slane %v299, 4
    %v301 = vadd.f32 %v299, %v300
    %v302 = vrot.slane %v301, 2
    %v303 = vadd.f32 %v301, %v302
    %v304 = vrot.slane %v303, 1
    %v305 = vadd.f32 %v303, %v304
    %v306 = vmul.f32 %v223, %v223
    %v307 = vmul.f32 %v226, %v226
    %v308 = vmul.f32 %v231, %v231
    %v309 = vmul.f32 %v234, %v234
    %v310 = vmul.f32 %v239, %v239
    %v311 = vmul.f32 %v242, %v242
    %v312 = vmul.f32 %v247, %v247
    %v313 = vmul.f32 %v250, %v250
    %v314 = vmul.f32 %v255, %v255
    %v315 = vmul.f32 %v258, %v258
    %v316 = vmul.f32 %v263, %v263
    %v317 = vmul.f32 %v266, %v266
    %v318 = vmul.f32 %v271, %v271
    %v319 = vmul.f32 %v274, %v274
    %v320 = vmul.f32 %v279, %v279
    %v321 = vmul.f32 %v282, %v282
    %v322 = vadd.f32 %v306, %v307
    %v323 = vadd.f32 %v322, %v308
    %v324 = vadd.f32 %v323, %v309
    %v325 = vadd.f32 %v324, %v310
    %v326 = vadd.f32 %v325, %v311
    %v327 = vadd.f32 %v326, %v312
    %v328 = vadd.f32 %v327, %v313
    %v329 = vadd.f32 %v328, %v314
    %v330 = vadd.f32 %v329, %v315
    %v331 = vadd.f32 %v330, %v316
    %v332 = vadd.f32 %v331, %v317
    %v333 = vadd.f32 %v332, %v318
    %v334 = vadd.f32 %v333, %v319
    %v335 = vadd.f32 %v334, %v320
    %v336 = vadd.f32 %v335, %v321
    %v337 = vrot.slane %v336, 4
    %v338 = vadd.f32 %v336, %v337
    %v339 = vrot.slane %v338, 2
    %v340 = vadd.f32 %v338, %v339
    %v341 = vrot.slane %v340, 1
    %v342 = vadd.f32 %v340, %v341
    %v343 = vld [vmem:[#allocation4] sm:$0xff]
    %v344 = vld [vmem:[#allocation4 + $0x8] sm:$0xff]
    %v345 = vld [vmem:[#allocation4 + $0x10] sm:$0xff]
    %v346 = vld [vmem:[#allocation4 + $0x18] sm:$0xff]
    %v347 = vld [vmem:[#allocation4 + $0x20] sm:$0xff]
    %v348 = vld [vmem:[#allocation4 + $0x28] sm:$0xff]
    %v349 = vld [vmem:[#allocation4 + $0x30] sm:$0xff]
    %v350 = vld [vmem:[#allocation4 + $0x38] sm:$0xff]
    %v351 = vld [vmem:[#allocation4 + $0x40] sm:$0xff]
    %v352 = vld [vmem:[#allocation4 + $0x48] sm:$0xff]
    %v353 = vld [vmem:[#allocation4 + $0x50] sm:$0xff]
    %v354 = vld [vmem:[#allocation4 + $0x58] sm:$0xff]
    %v355 = vld [vmem:[#allocation4 + $0x60] sm:$0xff]
    %v356 = vld [vmem:[#allocation4 + $0x68] sm:$0xff]
    %v357 = vld [vmem:[#allocation4 + $0x70] sm:$0xff]
    %v358 = vld [vmem:[#allocation4 + $0x78] sm:$0xff]
    %359 = vmatprep.subr.mxu0 0.0
    %360 = vmatpush1.msra.mxu0 %v358
    %361 = vmatprep.subr.mxu0 0.0
    %362 = vmatpush1.msra.mxu0 %v357
    %363 = vmatprep.subr.mxu0 0.0
    %364 = vmatpush1.msra.mxu0 %v356
    %365 = vmatprep.subr.mxu0 0.0
    %366 = vmatpush1.msra.mxu0 %v355
    %367 = vmatprep.subr.mxu0 0.0
    %368 = vmatpush1.msra.mxu0 %v354
    %369 = vmatprep.subr.mxu0 0.0
    %370 = vmatpush1.msra.mxu0 %v353
    %371 = vmatprep.subr.mxu0 0.0
    %372 = vmatpush1.msra.mxu0 %v352
    %373 = vmatprep.subr.mxu0 0.0
    %374 = vmatpush1.msra.mxu0 %v351
    %375 = vmatprep.subr.mxu0 0.0
    %376 = vmatpush1.msra.mxu0 %v350
    %377 = vmatprep.subr.mxu0 0.0
    %378 = vmatpush1.msra.mxu0 %v349
    %379 = vmatprep.subr.mxu0 0.0
    %380 = vmatpush1.msra.mxu0 %v348
    %381 = vmatprep.subr.mxu0 0.0
    %382 = vmatpush1.msra.mxu0 %v347
    %383 = vmatprep.subr.mxu0 0.0
    %384 = vmatpush1.msra.mxu0 %v346
    %385 = vmatprep.subr.mxu0 0.0
    %386 = vmatpush1.msra.mxu0 %v345
    %387 = vmatprep.subr.mxu0 0.0
    %388 = vmatpush1.msra.mxu0 %v344
    %389 = vmatprep.subr.mxu0 0.0
    %390 = vmatpush1.msra.mxu0 %v343
    %391 = vmatprep.subr.mxu0 0.0
    %392 = vmatpush2.msra.mxu0 0.0
    %393 = vmatprep.subr.mxu0 0.0
    %394 = vmatpush2.msra.mxu0 0.0
    %395 = vmatprep.subr.mxu0 0.0
    %396 = vmatpush2.msra.mxu0 0.0
    %397 = vmatprep.subr.mxu0 0.0
    %398 = vmatpush2.msra.mxu0 0.0
    %399 = vmatprep.subr.mxu0 0.0
    %400 = vmatpush2.msra.mxu0 0.0
    %401 = vmatprep.subr.mxu0 0.0
    %402 = vmatpush2.msra.mxu0 0.0
    %403 = vmatprep.subr.mxu0 0.0
    %404 = vmatpush2.msra.mxu0 0.0
    %405 = vmatprep.subr.mxu0 0.0
    %406 = vmatpush2.msra.mxu0 0.0
    %407 = vmatprep.subr.mxu0 0.0
    %408 = vmatpush2.msra.mxu0 0.0
    %409 = vmatprep.subr.mxu0 0.0
    %410 = vmatpush2.msra.mxu0 0.0
    %411 = vmatprep.subr.mxu0 0.0
    %412 = vmatpush2.msra.mxu0 0.0
    %413 = vmatprep.subr.mxu0 0.0
    %414 = vmatpush2.msra.mxu0 0.0
    %415 = vmatprep.subr.mxu0 0.0
    %416 = vmatpush2.msra.mxu0 0.0
    %417 = vmatprep.subr.mxu0 0.0
    %418 = vmatpush2.msra.mxu0 0.0
    %419 = vmatprep.subr.mxu0 0.0
    %420 = vmatpush2.msra.mxu0 0.0
    %421 = vmatprep.subr.mxu0 0.0
    %422 = vmatpush2.msra.mxu0 0.0
    %423 = vmatprep.mubr.f32.mxu0 0.0
    %424 = vmatmul.mubr.f32.gmra.mxu0 %v305
    %v425 = vpop.f32.mrf.mxu0
    %v426 = vadd.f32 0.0, %v425
    %v427 = vpop.f32.mrf.mxu0
    %428 = vdwg.mxu0
    %429 = vmatprep.subr.mxu0 0.0
    %430 = vmatpush1.msra.mxu0 %v358
    %431 = vmatprep.subr.mxu0 0.0
    %432 = vmatpush1.msra.mxu0 %v357
    %433 = vmatprep.subr.mxu0 0.0
    %434 = vmatpush1.msra.mxu0 %v356
    %435 = vmatprep.subr.mxu0 0.0
    %436 = vmatpush1.msra.mxu0 %v355
    %437 = vmatprep.subr.mxu0 0.0
    %438 = vmatpush1.msra.mxu0 %v354
    %439 = vmatprep.subr.mxu0 0.0
    %440 = vmatpush1.msra.mxu0 %v353
    %441 = vmatprep.subr.mxu0 0.0
    %442 = vmatpush1.msra.mxu0 %v352
    %443 = vmatprep.subr.mxu0 0.0
    %444 = vmatpush1.msra.mxu0 %v351
    %445 = vmatprep.subr.mxu0 0.0
    %446 = vmatpush1.msra.mxu0 %v350
    %447 = vmatprep.subr.mxu0 0.0
    %448 = vmatpush1.msra.mxu0 %v349
    %449 = vmatprep.subr.mxu0 0.0
    %450 = vmatpush1.msra.mxu0 %v348
    %451 = vmatprep.subr.mxu0 0.0
    %452 = vmatpush1.msra.mxu0 %v347
    %453 = vmatprep.subr.mxu0 0.0
    %454 = vmatpush1.msra.mxu0 %v346
    %455 = vmatprep.subr.mxu0 0.0
    %456 = vmatpush1.msra.mxu0 %v345
    %457 = vmatprep.subr.mxu0 0.0
    %458 = vmatpush1.msra.mxu0 %v344
    %459 = vmatprep.subr.mxu0 0.0
    %460 = vmatpush1.msra.mxu0 %v343
    %461 = vmatprep.subr.mxu0 0.0
    %462 = vmatpush2.msra.mxu0 0.0
    %463 = vmatprep.subr.mxu0 0.0
    %464 = vmatpush2.msra.mxu0 0.0
    %465 = vmatprep.subr.mxu0 0.0
    %466 = vmatpush2.msra.mxu0 0.0
    %467 = vmatprep.subr.mxu0 0.0
    %468 = vmatpush2.msra.mxu0 0.0
    %469 = vmatprep.subr.mxu0 0.0
    %470 = vmatpush2.msra.mxu0 0.0
    %471 = vmatprep.subr.mxu0 0.0
    %472 = vmatpush2.msra.mxu0 0.0
    %473 = vmatprep.subr.mxu0 0.0
    %474 = vmatpush2.msra.mxu0 0.0
    %475 = vmatprep.subr.mxu0 0.0
    %476 = vmatpush2.msra.mxu0 0.0
    %477 = vmatprep.subr.mxu0 0.0
    %478 = vmatpush2.msra.mxu0 0.0
    %479 = vmatprep.subr.mxu0 0.0
    %480 = vmatpush2.msra.mxu0 0.0
    %481 = vmatprep.subr.mxu0 0.0
    %482 = vmatpush2.msra.mxu0 0.0
    %483 = vmatprep.subr.mxu0 0.0
    %484 = vmatpush2.msra.mxu0 0.0
    %485 = vmatprep.subr.mxu0 0.0
    %486 = vmatpush2.msra.mxu0 0.0
    %487 = vmatprep.subr.mxu0 0.0
    %488 = vmatpush2.msra.mxu0 0.0
    %489 = vmatprep.subr.mxu0 0.0
    %490 = vmatpush2.msra.mxu0 0.0
    %491 = vmatprep.subr.mxu0 0.0
    %492 = vmatpush2.msra.mxu0 0.0
    %493 = vmatprep.mubr.f32.mxu0 0.0
    %494 = vmatmul.mubr.f32.gmra.mxu0 %v342
    %v495 = vpop.f32.mrf.mxu0
    %v496 = vadd.f32 0.0, %v495
    %v497 = vpop.f32.mrf.mxu0
    %498 = vdwg.mxu0
    %v499 = vmul.f32 %v426, %v426
    %v500 = vsub.f32 %v496, %v499
    %v501 = vmax.f32 %v500, 0.0
    %v502 = vld [vmem:[#allocation6] sm:$0x1]
    %v503 = vadd.f32 %v501, 1e-05
    %v504 = vrsqrt.pop %v503
    %v505 = vmul.f32 %v502, %v504
    %v506 = vld [vmem:[%s4] sm:$0x1]
    %v507 = vmul.f32 %v426, %v505
    %v508 = vsub.f32 %v506, %v507
    %v510 = vlaneseq
    %v511 = vshrl.u32 %v510, 7
    %v512 = vsub.s32 0, %v511
    %v513 = vrot.slane %v505, %v512
    %v515 = vmul.f32 %v223, %v513
    %v516 = vmul.f32 %v226, %v513
    %v517 = vmul.f32 %v231, %v513
    %v518 = vmul.f32 %v234, %v513
    %v519 = vmul.f32 %v239, %v513
    %v520 = vmul.f32 %v242, %v513
    %v521 = vmul.f32 %v247, %v513
    %v522 = vmul.f32 %v250, %v513
    %v523 = vmul.f32 %v255, %v513
    %v524 = vmul.f32 %v258, %v513
    %v525 = vmul.f32 %v263, %v513
    %v526 = vmul.f32 %v266, %v513
    %v527 = vmul.f32 %v271, %v513
    %v528 = vmul.f32 %v274, %v513
    %v529 = vmul.f32 %v279, %v513
    %v530 = vmul.f32 %v282, %v513
    %v532 = vlaneseq
    %v533 = vshrl.u32 %v532, 7
    %v534 = vsub.s32 0, %v533
    %v535 = vrot.slane %v508, %v534
    %v537 = vadd.f32 %v515, %v535
    %v538 = vadd.f32 %v516, %v535
    %v539 = vadd.f32 %v517, %v535
    %v540 = vadd.f32 %v518, %v535
    %v541 = vadd.f32 %v519, %v535
    %v542 = vadd.f32 %v520, %v535
    %v543 = vadd.f32 %v521, %v535
    %v544 = vadd.f32 %v522, %v535
    %v545 = vadd.f32 %v523, %v535
    %v546 = vadd.f32 %v524, %v535
    %v547 = vadd.f32 %v525, %v535
    %v548 = vadd.f32 %v526, %v535
    %v549 = vadd.f32 %v527, %v535
    %v550 = vadd.f32 %v528, %v535
    %v551 = vadd.f32 %v529, %v535
    %v552 = vadd.f32 %v530, %v535
    %v553 = vmax.f32 %v537, 0.0
    %v554 = vmax.f32 %v538, 0.0
    %v555 = vmax.f32 %v539, 0.0
    %v556 = vmax.f32 %v540, 0.0
    %v557 = vmax.f32 %v541, 0.0
    %v558 = vmax.f32 %v542, 0.0
    %v559 = vmax.f32 %v543, 0.0
    %v560 = vmax.f32 %v544, 0.0
    %v561 = vmax.f32 %v545, 0.0
    %v562 = vmax.f32 %v546, 0.0
    %v563 = vmax.f32 %v547, 0.0
    %v564 = vmax.f32 %v548, 0.0
    %v565 = vmax.f32 %v549, 0.0
    %v566 = vmax.f32 %v550, 0.0
    %v567 = vmax.f32 %v551, 0.0
    %v568 = vmax.f32 %v552, 0.0
    %v569 = vpack.c.bf16 %v554, %v553
    %v570 = vpack.c.bf16 %v556, %v555
    %v571 = vpack.c.bf16 %v558, %v557
    %v572 = vpack.c.bf16 %v560, %v559
    %v573 = vpack.c.bf16 %v562, %v561
    %v574 = vpack.c.bf16 %v564, %v563
    %v575 = vpack.c.bf16 %v566, %v565
    %v576 = vpack.c.bf16 %v568, %v567
    %v585 = vunpack.c.l.b16 %v569
    %v586 = vunpack.c.h.b16 %v569
    %v587 = vunpack.c.l.b16 %v570
    %v588 = vunpack.c.h.b16 %v570
    %v589 = vunpack.c.l.b16 %v571
    %v590 = vunpack.c.h.b16 %v571
    %v591 = vunpack.c.l.b16 %v572
    %v592 = vunpack.c.h.b16 %v572
    %v593 = vunpack.c.l.b16 %v573
    %v594 = vunpack.c.h.b16 %v573
    %v595 = vunpack.c.l.b16 %v574
    %v596 = vunpack.c.h.b16 %v574
    %v597 = vunpack.c.l.b16 %v575
    %v598 = vunpack.c.h.b16 %v575
    %v599 = vunpack.c.l.b16 %v576
    %v600 = vunpack.c.h.b16 %v576
    %v601 = vpack.c.b16 %v585, %v585
    %v602 = vpack.c.b16 %v586, %v586
    %v603 = vpack.c.b16 %v587, %v587
    %v604 = vpack.c.b16 %v588, %v588
    %v605 = vpack.c.b16 %v589, %v589
    %v606 = vpack.c.b16 %v590, %v590
    %v607 = vpack.c.b16 %v591, %v591
    %v608 = vpack.c.b16 %v592, %v592
    %v609 = vpack.c.b16 %v593, %v593
    %v610 = vpack.c.b16 %v594, %v594
    %v611 = vpack.c.b16 %v595, %v595
    %v612 = vpack.c.b16 %v596, %v596
    %v613 = vpack.c.b16 %v597, %v597
    %v614 = vpack.c.b16 %v598, %v598
    %v615 = vpack.c.b16 %v599, %v599
    %v616 = vpack.c.b16 %v600, %v600
    %633 = vst [vmem:[%s5] sm:$0xf] %v601
    %634 = vst [vmem:[%s5 + $0x4] sm:$0xf] %v602
    %635 = vst [vmem:[%s5 + $0x8] sm:$0xf] %v603
    %636 = vst [vmem:[%s5 + $0xc] sm:$0xf] %v604
    %637 = vst [vmem:[%s5 + $0x10] sm:$0xf] %v605
    %638 = vst [vmem:[%s5 + $0x14] sm:$0xf] %v606
    %639 = vst [vmem:[%s5 + $0x18] sm:$0xf] %v607
    %640 = vst [vmem:[%s5 + $0x1c] sm:$0xf] %v608
    %641 = vst [vmem:[%s5 + $0x20] sm:$0xf] %v609
    %642 = vst [vmem:[%s5 + $0x24] sm:$0xf] %v610
    %643 = vst [vmem:[%s5 + $0x28] sm:$0xf] %v611
    %644 = vst [vmem:[%s5 + $0x2c] sm:$0xf] %v612
    %645 = vst [vmem:[%s5 + $0x30] sm:$0xf] %v613
    %646 = vst [vmem:[%s5 + $0x34] sm:$0xf] %v614
    %647 = vst [vmem:[%s5 + $0x38] sm:$0xf] %v615
    %648 = vst [vmem:[%s5 + $0x3c] sm:$0xf] %v616
    // Predicated region
    $region34: #{a_call__.16} parent=1 // pred_check
      _
    $region35: #{a_call__.16} parent=1 // pred_check_branch
      %650 = sbr.rel (0) target = $region37
    $region36: #{a_call__.16} parent=1 // pred_region
      _
    $region37: #{a_call__.16} parent=1 // pred_fallthru
      _
    // Predicated region
    $region38: #{a_call__.16} parent=1 // pred_check
      _
    $region39: #{a_call__.16} parent=1 // pred_check_branch
      %652 = sbr.rel (0) target = $region41
    $region40: #{a_call__.16} parent=1 // pred_region
      _
    $region41: #{a_call__.16} parent=1 // pred_fallthru
      _
    %653 = vsyncpa [#allocation3], 1
    %654 = vsyncpa [#allocation5], 1

// kernel: a_call__.19
$region0: #{a_call__.19}
  #allocation0 [shape = 'u32[]', space=smem, size = 0x4, offset = 0x4, fixed_abs, tag = 'smem constant byte address 0x4 - core index']
  #allocation1 [shape = 'u32[144,128]{1,0:T(1,128)}', space=vmem, size = 0x12000, scoped, tag = 'internal scratch']
  %s0 = inlined_call_operand.vmem [shape: bf16[128,384], index: 0, kind: input, shape index: {}]
  %s1 = inlined_call_operand.hbm [shape: bf16[384,128], index: 1, kind: input, shape index: {}]
  %s2 = inlined_call_operand.hbm [shape: f32[128,128], index: 2, kind: input, shape index: {}]
  %s3 = inlined_call_operand.hbm [shape: f32[1,128], index: 3, kind: input, shape index: {}]
  %s4 = inlined_call_operand.vmem [shape: f32[1,128], index: 4, kind: input, shape index: {}]
  %s5 = inlined_call_operand.vmem [shape: bf16[128,128], index: 5, kind: output, shape index: {}]
  %s6 = sld [smem:[#allocation0]]
  $region42: #{a_call__.19} parent=0
    _
  %s8 = ssub.s32 1, %s6
  %s9 = scalar_select 0, %s8, %s6
  $region1: #{a_call__.19} parent=0
    #allocation2 [shape = 'u8[98304]{0}', space=vmem, size = 0x18000, scoped, tag = 'input window, operand 1, single buffered']
    #allocation3 [shape = 's32[1]{0}', space=sflag, size = 0x4, scoped, tag = 'scoped memory for a_call__.19']
    #allocation4 [shape = 'u8[65536]{0}', space=vmem, size = 0x10000, scoped, tag = 'input window, operand 2, single buffered']
    #allocation5 [shape = 's32[1]{0}', space=sflag, size = 0x4, scoped, tag = 'scoped memory for a_call__.19']
    #allocation6 [shape = 'u8[512]{0}', space=vmem, size = 0x400, scoped, tag = 'input window, operand 3, single buffered']
    %10 = vsyncpa [#allocation3], 0
    %11 = vsyncpa [#allocation5], 0
    // Predicated region
    $region2: #{a_call__.19} parent=1 // pred_check
      _
    $region3: #{a_call__.19} parent=1 // pred_check_branch
      %13 = sbr.rel (0) target = $region5
    $region4: #{a_call__.19} parent=1 // pred_region
      _
    $region5: #{a_call__.19} parent=1 // pred_fallthru
      _
    // Predicated region
    $region6: #{a_call__.19} parent=1 // pred_check
      _
    $region7: #{a_call__.19} parent=1 // pred_check_branch
      %15 = sbr.rel (0) target = $region9
    $region8: #{a_call__.19} parent=1 // pred_region
      %s17 = ssub.s32 3072, 3072
      %18 = vsyncadd [#allocation3], %s17
      %s19 = sshll.u32 [#allocation2], 4
      %s20 = int_to_ptr.vmem [resolvable:$true] %s19
      %25 = dma.hbm_to_vmem [thread:$0]  %s1, 3072, %s20, [#allocation3], 64, 64, 4
    $region9: #{a_call__.19} parent=1 // pred_fallthru
      _
    // Predicated region
    $region10: #{a_call__.19} parent=1 // pred_check
      _
    $region11: #{a_call__.19} parent=1 // pred_check_branch
      %27 = sbr.rel (0) target = $region13
    $region12: #{a_call__.19} parent=1 // pred_region
      %s29 = ssub.s32 2048, 2048
      %30 = vsyncadd [#allocation5], %s29
      %s31 = sshll.u32 [#allocation4], 4
      %s32 = int_to_ptr.vmem [resolvable:$true] %s31
      %37 = dma.hbm_to_vmem [thread:$0]  %s2, 2048, %s32, [#allocation5], 128, 128, 8
    $region13: #{a_call__.19} parent=1 // pred_fallthru
      _
    // Predicated region
    $region14: #{a_call__.19} parent=1 // pred_check
      _
    $region15: #{a_call__.19} parent=1 // pred_check_branch
      %39 = sbr.rel (0) target = $region17
    $region16: #{a_call__.19} parent=1 // pred_region
      %s41 = ssub.s32 16, 16
      %42 = vsyncadd [#allocation5], %s41
      %s44 = sshll.u32 [#allocation6], 4
      %s45 = int_to_ptr.vmem [resolvable:$true] %s44
      %47 = dma.hbm_to_vmem [thread:$0]  %s3, 16, %s45, [#allocation5]
    $region17: #{a_call__.19} parent=1 // pred_fallthru
      _
    // Predicated region
    $region18: #{a_call__.19} parent=1 // pred_check
      _
    $region19: #{a_call__.19} parent=1 // pred_check_branch
      %49 = sbr.rel (0) target = $region21
    $region20: #{a_call__.19} parent=1 // pred_region
      _
    $region21: #{a_call__.19} parent=1 // pred_fallthru
      _
    // Predicated region
    $region22: #{a_call__.19} parent=1 // pred_check
      _
    $region23: #{a_call__.19} parent=1 // pred_check_branch
      %51 = sbr.rel (0) target = $region25
    $region24: #{a_call__.19} parent=1 // pred_region
      %52 = dma.done [#allocation3], 3072
    $region25: #{a_call__.19} parent=1 // pred_fallthru
      _
    // Predicated region
    $region26: #{a_call__.19} parent=1 // pred_check
      _
    $region27: #{a_call__.19} parent=1 // pred_check_branch
      %54 = sbr.rel (0) target = $region29
    $region28: #{a_call__.19} parent=1 // pred_region
      %55 = dma.done [#allocation5], 2048
    $region29: #{a_call__.19} parent=1 // pred_fallthru
      _
    // Predicated region
    $region30: #{a_call__.19} parent=1 // pred_check
      _
    $region31: #{a_call__.19} parent=1 // pred_check_branch
      %57 = sbr.rel (0) target = $region33
    $region32: #{a_call__.19} parent=1 // pred_region
      %58 = dma.done [#allocation5], 16
    $region33: #{a_call__.19} parent=1 // pred_fallthru
      _
    %v60 = vld [vmem:[%s0] sm:$0xff]
    %v61 = vld [vmem:[%s0 + $0x8] sm:$0xf]
    %v62 = vld [vmem:[%s0 + $0xc] sm:$0xff]
    %v63 = vld [vmem:[%s0 + $0x14] sm:$0xf]
    %v64 = vld [vmem:[%s0 + $0x18] sm:$0xff]
    %v65 = vld [vmem:[%s0 + $0x20] sm:$0xf]
    %v66 = vld [vmem:[%s0 + $0x24] sm:$0xff]
    %v67 = vld [vmem:[%s0 + $0x2c] sm:$0xf]
    %v68 = vld [vmem:[%s0 + $0x30] sm:$0xff]
    %v69 = vld [vmem:[%s0 + $0x38] sm:$0xf]
    %v70 = vld [vmem:[%s0 + $0x3c] sm:$0xff]
    %v71 = vld [vmem:[%s0 + $0x44] sm:$0xf]
    %v72 = vld [vmem:[%s0 + $0x48] sm:$0xff]
    %v73 = vld [vmem:[%s0 + $0x50] sm:$0xf]
    %v74 = vld [vmem:[%s0 + $0x54] sm:$0xff]
    %v75 = vld [vmem:[%s0 + $0x5c] sm:$0xf]
    %v76 = vld [vmem:[%s0 + $0x60] sm:$0xff]
    %v77 = vld [vmem:[%s0 + $0x68] sm:$0xf]
    %v78 = vld [vmem:[%s0 + $0x6c] sm:$0xff]
    %v79 = vld [vmem:[%s0 + $0x74] sm:$0xf]
    %v80 = vld [vmem:[%s0 + $0x78] sm:$0xff]
    %v81 = vld [vmem:[%s0 + $0x80] sm:$0xf]
    %v82 = vld [vmem:[%s0 + $0x84] sm:$0xff]
    %v83 = vld [vmem:[%s0 + $0x8c] sm:$0xf]
    %v84 = vld [vmem:[%s0 + $0x90] sm:$0xff]
    %v85 = vld [vmem:[%s0 + $0x98] sm:$0xf]
    %v86 = vld [vmem:[%s0 + $0x9c] sm:$0xff]
    %v87 = vld [vmem:[%s0 + $0xa4] sm:$0xf]
    %v88 = vld [vmem:[%s0 + $0xa8] sm:$0xff]
    %v89 = vld [vmem:[%s0 + $0xb0] sm:$0xf]
    %v90 = vld [vmem:[%s0 + $0xb4] sm:$0xff]
    %v91 = vld [vmem:[%s0 + $0xbc] sm:$0xf]
    %v92 = vld [vmem:[#allocation2] sm:$0xf]
    %v93 = vld [vmem:[#allocation2 + $0x4] sm:$0xf]
    %v94 = vld [vmem:[#allocation2 + $0x8] sm:$0xf]
    %v95 = vld [vmem:[#allocation2 + $0xc] sm:$0xf]
    %v96 = vld [vmem:[#allocation2 + $0x10] sm:$0xf]
    %v97 = vld [vmem:[#allocation2 + $0x14] sm:$0xf]
    %v98 = vld [vmem:[#allocation2 + $0x18] sm:$0xf]
    %v99 = vld [vmem:[#allocation2 + $0x1c] sm:$0xf]
    %v100 = vld [vmem:[#allocation2 + $0x20] sm:$0xf]
    %v101 = vld [vmem:[#allocation2 + $0x24] sm:$0xf]
    %v102 = vld [vmem:[#allocation2 + $0x28] sm:$0xf]
    %v103 = vld [vmem:[#allocation2 + $0x2c] sm:$0xf]
    %v104 = vld [vmem:[#allocation2 + $0x30] sm:$0xf]
    %v105 = vld [vmem:[#allocation2 + $0x34] sm:$0xf]
    %v106 = vld [vmem:[#allocation2 + $0x38] sm:$0xf]
    %v107 = vld [vmem:[#allocation2 + $0x3c] sm:$0xf]
    %v108 = vld [vmem:[#allocation2 + $0x40] sm:$0xf]
    %v109 = vld [vmem:[#allocation2 + $0x44] sm:$0xf]
    %v110 = vld [vmem:[#allocation2 + $0x48] sm:$0xf]
    %v111 = vld [vmem:[#allocation2 + $0x4c] sm:$0xf]
    %v112 = vld [vmem:[#allocation2 + $0x50] sm:$0xf]
    %v113 = vld [vmem:[#allocation2 + $0x54] sm:$0xf]
    %v114 = vld [vmem:[#allocation2 + $0x58] sm:$0xf]
    %v115 = vld [vmem:[#allocation2 + $0x5c] sm:$0xf]
    %v116 = vld [vmem:[#allocation2 + $0x60] sm:$0xf]
    %v117 = vld [vmem:[#allocation2 + $0x64] sm:$0xf]
    %v118 = vld [vmem:[#allocation2 + $0x68] sm:$0xf]
    %v119 = vld [vmem:[#allocation2 + $0x6c] sm:$0xf]
    %v120 = vld [vmem:[#allocation2 + $0x70] sm:$0xf]
    %v121 = vld [vmem:[#allocation2 + $0x74] sm:$0xf]
    %v122 = vld [vmem:[#allocation2 + $0x78] sm:$0xf]
    %v123 = vld [vmem:[#allocation2 + $0x7c] sm:$0xf]
    %v124 = vld [vmem:[#allocation2 + $0x80] sm:$0xf]
    %v125 = vld [vmem:[#allocation2 + $0x84] sm:$0xf]
    %v126 = vld [vmem:[#allocation2 + $0x88] sm:$0xf]
    %v127 = vld [vmem:[#allocation2 + $0x8c] sm:$0xf]
    %v128 = vld [vmem:[#allocation2 + $0x90] sm:$0xf]
    %v129 = vld [vmem:[#allocation2 + $0x94] sm:$0xf]
    %v130 = vld [vmem:[#allocation2 + $0x98] sm:$0xf]
    %v131 = vld [vmem:[#allocation2 + $0x9c] sm:$0xf]
    %v132 = vld [vmem:[#allocation2 + $0xa0] sm:$0xf]
    %v133 = vld [vmem:[#allocation2 + $0xa4] sm:$0xf]
    %v134 = vld [vmem:[#allocation2 + $0xa8] sm:$0xf]
    %v135 = vld [vmem:[#allocation2 + $0xac] sm:$0xf]
    %v136 = vld [vmem:[#allocation2 + $0xb0] sm:$0xf]
    %v137 = vld [vmem:[#allocation2 + $0xb4] sm:$0xf]
    %v138 = vld [vmem:[#allocation2 + $0xb8] sm:$0xf]
    %v139 = vld [vmem:[#allocation2 + $0xbc] sm:$0xf]
    %v172 = vunpack.c.l.b16 %v60
    %v173 = vunpack.c.h.b16 %v60
    %v174 = vunpack.c.l.b16 %v61
    %v175 = vunpack.c.l.b16 %v62
    %v176 = vunpack.c.h.b16 %v62
    %v177 = vunpack.c.l.b16 %v63
    %v178 = vunpack.c.l.b16 %v64
    %v179 = vunpack.c.h.b16 %v64
    %v180 = vunpack.c.l.b16 %v65
    %v181 = vunpack.c.l.b16 %v66
    %v182 = vunpack.c.h.b16 %v66
    %v183 = vunpack.c.l.b16 %v67
    %v184 = vunpack.c.l.b16 %v68
    %v185 = vunpack.c.h.b16 %v68
    %v186 = vunpack.c.l.b16 %v69
    %v187 = vunpack.c.l.b16 %v70
    %v188 = vunpack.c.h.b16 %v70
    %v189 = vunpack.c.l.b16 %v71
    %v190 = vunpack.c.l.b16 %v72
    %v191 = vunpack.c.h.b16 %v72
    %v192 = vunpack.c.l.b16 %v73
    %v193 = vunpack.c.l.b16 %v74
    %v194 = vunpack.c.h.b16 %v74
    %v195 = vunpack.c.l.b16 %v75
    %v196 = vunpack.c.l.b16 %v76
    %v197 = vunpack.c.h.b16 %v76
    %v198 = vunpack.c.l.b16 %v77
    %v199 = vunpack.c.l.b16 %v78
    %v200 = vunpack.c.h.b16 %v78
    %v201 = vunpack.c.l.b16 %v79
    %v202 = vunpack.c.l.b16 %v80
    %v203 = vunpack.c.h.b16 %v80
    %v204 = vunpack.c.l.b16 %v81
    %v205 = vunpack.c.l.b16 %v82
    %v206 = vunpack.c.h.b16 %v82
    %v207 = vunpack.c.l.b16 %v83
    %v208 = vunpack.c.l.b16 %v84
    %v209 = vunpack.c.h.b16 %v84
    %v210 = vunpack.c.l.b16 %v85
    %v211 = vunpack.c.l.b16 %v86
    %v212 = vunpack.c.h.b16 %v86
    %v213 = vunpack.c.l.b16 %v87
    %v214 = vunpack.c.l.b16 %v88
    %v215 = vunpack.c.h.b16 %v88
    %v216 = vunpack.c.l.b16 %v89
    %v217 = vunpack.c.l.b16 %v90
    %v218 = vunpack.c.h.b16 %v90
    %v219 = vunpack.c.l.b16 %v91
    %v220 = vpack.c.b16 %v175, %v172
    %v221 = vpack.c.b16 %v176, %v173
    %v222 = vpack.c.b16 %v177, %v174
    %v223 = vpack.c.b16 %v181, %v178
    %v224 = vpack.c.b16 %v182, %v179
    %v225 = vpack.c.b16 %v183, %v180
    %v226 = vpack.c.b16 %v187, %v184
    %v227 = vpack.c.b16 %v188, %v185
    %v228 = vpack.c.b16 %v189, %v186
    %v229 = vpack.c.b16 %v193, %v190
    %v230 = vpack.c.b16 %v194, %v191
    %v231 = vpack.c.b16 %v195, %v192
    %v232 = vpack.c.b16 %v199, %v196
    %v233 = vpack.c.b16 %v200, %v197
    %v234 = vpack.c.b16 %v201, %v198
    %v235 = vpack.c.b16 %v205, %v202
    %v236 = vpack.c.b16 %v206, %v203
    %v237 = vpack.c.b16 %v207, %v204
    %v238 = vpack.c.b16 %v211, %v208
    %v239 = vpack.c.b16 %v212, %v209
    %v240 = vpack.c.b16 %v213, %v210
    %v241 = vpack.c.b16 %v217, %v214
    %v242 = vpack.c.b16 %v218, %v215
    %v243 = vpack.c.b16 %v219, %v216
    %v316 = vunpack.c.l.b16 %v92
    %v317 = vunpack.c.l.b16 %v93
    %v318 = vunpack.c.l.b16 %v94
    %v319 = vunpack.c.l.b16 %v95
    %v320 = vunpack.c.l.b16 %v96
    %v321 = vunpack.c.l.b16 %v97
    %v322 = vunpack.c.l.b16 %v98
    %v323 = vunpack.c.l.b16 %v99
    %v324 = vunpack.c.l.b16 %v100
    %v325 = vunpack.c.l.b16 %v101
    %v326 = vunpack.c.l.b16 %v102
    %v327 = vunpack.c.l.b16 %v103
    %v328 = vunpack.c.l.b16 %v104
    %v329 = vunpack.c.l.b16 %v105
    %v330 = vunpack.c.l.b16 %v106
    %v331 = vunpack.c.l.b16 %v107
    %v332 = vunpack.c.l.b16 %v108
    %v333 = vunpack.c.l.b16 %v109
    %v334 = vunpack.c.l.b16 %v110
    %v335 = vunpack.c.l.b16 %v111
    %v336 = vunpack.c.l.b16 %v112
    %v337 = vunpack.c.l.b16 %v113
    %v338 = vunpack.c.l.b16 %v114
    %v339 = vunpack.c.l.b16 %v115
    %v340 = vunpack.c.l.b16 %v116
    %v341 = vunpack.c.l.b16 %v117
    %v342 = vunpack.c.l.b16 %v118
    %v343 = vunpack.c.l.b16 %v119
    %v344 = vunpack.c.l.b16 %v120
    %v345 = vunpack.c.l.b16 %v121
    %v346 = vunpack.c.l.b16 %v122
    %v347 = vunpack.c.l.b16 %v123
    %v348 = vunpack.c.l.b16 %v124
    %v349 = vunpack.c.l.b16 %v125
    %v350 = vunpack.c.l.b16 %v126
    %v351 = vunpack.c.l.b16 %v127
    %v352 = vunpack.c.l.b16 %v128
    %v353 = vunpack.c.l.b16 %v129
    %v354 = vunpack.c.l.b16 %v130
    %v355 = vunpack.c.l.b16 %v131
    %v356 = vunpack.c.l.b16 %v132
    %v357 = vunpack.c.l.b16 %v133
    %v358 = vunpack.c.l.b16 %v134
    %v359 = vunpack.c.l.b16 %v135
    %v360 = vunpack.c.l.b16 %v136
    %v361 = vunpack.c.l.b16 %v137
    %v362 = vunpack.c.l.b16 %v138
    %v363 = vunpack.c.l.b16 %v139
    %v364 = vpack.c.b16 %v317, %v316
    %v365 = vpack.c.b16 %v319, %v318
    %v366 = vpack.c.b16 %v321, %v320
    %v367 = vpack.c.b16 %v323, %v322
    %v368 = vpack.c.b16 %v325, %v324
    %v369 = vpack.c.b16 %v327, %v326
    %v370 = vpack.c.b16 %v329, %v328
    %v371 = vpack.c.b16 %v331, %v330
    %v372 = vpack.c.b16 %v333, %v332
    %v373 = vpack.c.b16 %v335, %v334
    %v374 = vpack.c.b16 %v337, %v336
    %v375 = vpack.c.b16 %v339, %v338
    %v376 = vpack.c.b16 %v341, %v340
    %v377 = vpack.c.b16 %v343, %v342
    %v378 = vpack.c.b16 %v345, %v344
    %v379 = vpack.c.b16 %v347, %v346
    %v380 = vpack.c.b16 %v349, %v348
    %v381 = vpack.c.b16 %v351, %v350
    %v382 = vpack.c.b16 %v353, %v352
    %v383 = vpack.c.b16 %v355, %v354
    %v384 = vpack.c.b16 %v357, %v356
    %v385 = vpack.c.b16 %v359, %v358
    %v386 = vpack.c.b16 %v361, %v360
    %v387 = vpack.c.b16 %v363, %v362
    %412 = vmatprep.subr.bf16.mxu0 0
    %413 = vmatpush1.bf16.msra.mxu0 %v371
    %414 = vmatprep.subr.bf16.mxu0 0
    %415 = vmatpush1.bf16.msra.mxu0 %v370
    %416 = vmatprep.subr.bf16.mxu0 0
    %417 = vmatpush1.bf16.msra.mxu0 %v369
    %418 = vmatprep.subr.bf16.mxu0 0
    %419 = vmatpush1.bf16.msra.mxu0 %v368
    %420 = vmatprep.subr.bf16.mxu0 0
    %421 = vmatpush1.bf16.msra.mxu0 %v367
    %422 = vmatprep.subr.bf16.mxu0 0
    %423 = vmatpush1.bf16.msra.mxu0 %v366
    %424 = vmatprep.subr.bf16.mxu0 0
    %425 = vmatpush1.bf16.msra.mxu0 %v365
    %426 = vmatprep.subr.bf16.mxu0 0
    %427 = vmatpush1.bf16.msra.mxu0 %v364
    %428 = vmatprep.subr.bf16.mxu0 0
    %429 = vmatpush2.bf16.msra.mxu0 %v379
    %430 = vmatprep.subr.bf16.mxu0 0
    %431 = vmatpush2.bf16.msra.mxu0 %v378
    %432 = vmatprep.subr.bf16.mxu0 0
    %433 = vmatpush2.bf16.msra.mxu0 %v377
    %434 = vmatprep.subr.bf16.mxu0 0
    %435 = vmatpush2.bf16.msra.mxu0 %v376
    %436 = vmatprep.subr.bf16.mxu0 0
    %437 = vmatpush2.bf16.msra.mxu0 %v375
    %438 = vmatprep.subr.bf16.mxu0 0
    %439 = vmatpush2.bf16.msra.mxu0 %v374
    %440 = vmatprep.subr.bf16.mxu0 0
    %441 = vmatpush2.bf16.msra.mxu0 %v373
    %442 = vmatprep.subr.bf16.mxu0 0
    %443 = vmatpush2.bf16.msra.mxu0 %v372
    %444 = vmatprep.mubr.bf16.mxu0 %v221
    %445 = vmatmul.mubr.bf16.gmra.mxu0 %v220
    %v446 = vpop.f32.mrf.mxu0
    %v447 = vadd.f32 0.0, %v446
    %v448 = vpop.f32.mrf.mxu0
    %v449 = vpop.f32.mrf.mxu0
    %v450 = vadd.f32 0.0, %v449
    %v451 = vpop.f32.mrf.mxu0
    %452 = vmatprep.mubr.bf16.mxu0 %v224
    %453 = vmatmul.mubr.bf16.gmra.mxu0 %v223
    %v454 = vpop.f32.mrf.mxu0
    %v455 = vadd.f32 0.0, %v454
    %v456 = vpop.f32.mrf.mxu0
    %v457 = vpop.f32.mrf.mxu0
    %v458 = vadd.f32 0.0, %v457
    %v459 = vpop.f32.mrf.mxu0
    %460 = vmatprep.mubr.bf16.mxu0 %v227
    %461 = vmatmul.mubr.bf16.gmra.mxu0 %v226
    %v462 = vpop.f32.mrf.mxu0
    %v463 = vadd.f32 0.0, %v462
    %v464 = vpop.f32.mrf.mxu0
    %v465 = vpop.f32.mrf.mxu0
    %v466 = vadd.f32 0.0, %v465
    %v467 = vpop.f32.mrf.mxu0
    %468 = vmatprep.mubr.bf16.mxu0 %v230
    %469 = vmatmul.mubr.bf16.gmra.mxu0 %v229
    %v470 = vpop.f32.mrf.mxu0
    %v471 = vadd.f32 0.0, %v470
    %v472 = vpop.f32.mrf.mxu0
    %v473 = vpop.f32.mrf.mxu0
    %v474 = vadd.f32 0.0, %v473
    %v475 = vpop.f32.mrf.mxu0
    %476 = vmatprep.mubr.bf16.mxu0 %v233
    %477 = vmatmul.mubr.bf16.gmra.mxu0 %v232
    %v478 = vpop.f32.mrf.mxu0
    %v479 = vadd.f32 0.0, %v478
    %v480 = vpop.f32.mrf.mxu0
    %v481 = vpop.f32.mrf.mxu0
    %v482 = vadd.f32 0.0, %v481
    %v483 = vpop.f32.mrf.mxu0
    %484 = vmatprep.mubr.bf16.mxu0 %v236
    %485 = vmatmul.mubr.bf16.gmra.mxu0 %v235
    %v486 = vpop.f32.mrf.mxu0
    %v487 = vadd.f32 0.0, %v486
    %v488 = vpop.f32.mrf.mxu0
    %v489 = vpop.f32.mrf.mxu0
    %v490 = vadd.f32 0.0, %v489
    %v491 = vpop.f32.mrf.mxu0
    %492 = vmatprep.mubr.bf16.mxu0 %v239
    %493 = vmatmul.mubr.bf16.gmra.mxu0 %v238
    %v494 = vpop.f32.mrf.mxu0
    %v495 = vadd.f32 0.0, %v494
    %v496 = vpop.f32.mrf.mxu0
    %v497 = vpop.f32.mrf.mxu0
    %v498 = vadd.f32 0.0, %v497
    %v499 = vpop.f32.mrf.mxu0
    %500 = vmatprep.mubr.bf16.mxu0 %v242
    %501 = vmatmul.mubr.bf16.gmra.mxu0 %v241
    %v502 = vpop.f32.mrf.mxu0
    %v503 = vadd.f32 0.0, %v502
    %v504 = vpop.f32.mrf.mxu0
    %v505 = vpop.f32.mrf.mxu0
    %v506 = vadd.f32 0.0, %v505
    %v507 = vpop.f32.mrf.mxu0
    %508 = vdwg.mxu0
    %509 = vmatprep.subr.bf16.mxu0 0
    %510 = vmatpush1.bf16.msra.mxu0 %v387
    %511 = vmatprep.subr.bf16.mxu0 0
    %512 = vmatpush1.bf16.msra.mxu0 %v386
    %513 = vmatprep.subr.bf16.mxu0 0
    %514 = vmatpush1.bf16.msra.mxu0 %v385
    %515 = vmatprep.subr.bf16.mxu0 0
    %516 = vmatpush1.bf16.msra.mxu0 %v384
    %517 = vmatprep.subr.bf16.mxu0 0
    %518 = vmatpush1.bf16.msra.mxu0 %v383
    %519 = vmatprep.subr.bf16.mxu0 0
    %520 = vmatpush1.bf16.msra.mxu0 %v382
    %521 = vmatprep.subr.bf16.mxu0 0
    %522 = vmatpush1.bf16.msra.mxu0 %v381
    %523 = vmatprep.subr.bf16.mxu0 0
    %524 = vmatpush1.bf16.msra.mxu0 %v380
    %525 = vmatprep.subr.bf16.mxu0 0
    %526 = vmatpush2.bf16.msra.mxu0 0
    %527 = vmatprep.subr.bf16.mxu0 0
    %528 = vmatpush2.bf16.msra.mxu0 0
    %529 = vmatprep.subr.bf16.mxu0 0
    %530 = vmatpush2.bf16.msra.mxu0 0
    %531 = vmatprep.subr.bf16.mxu0 0
    %532 = vmatpush2.bf16.msra.mxu0 0
    %533 = vmatprep.subr.bf16.mxu0 0
    %534 = vmatpush2.bf16.msra.mxu0 0
    %535 = vmatprep.subr.bf16.mxu0 0
    %536 = vmatpush2.bf16.msra.mxu0 0
    %537 = vmatprep.subr.bf16.mxu0 0
    %538 = vmatpush2.bf16.msra.mxu0 0
    %539 = vmatprep.subr.bf16.mxu0 0
    %540 = vmatpush2.bf16.msra.mxu0 0
    %541 = vmatprep.mubr.bf16.mxu0 0
    %542 = vmatmul.mubr.bf16.gmra.mxu0 %v222
    %v543 = vpop.f32.mrf.mxu0
    %v544 = vadd.f32 %v447, %v543
    %v545 = vpop.f32.mrf.mxu0
    %v546 = vpop.f32.mrf.mxu0
    %v547 = vadd.f32 %v450, %v546
    %v548 = vpop.f32.mrf.mxu0
    %549 = vmatprep.mubr.bf16.mxu0 0
    %550 = vmatmul.mubr.bf16.gmra.mxu0 %v225
    %v551 = vpop.f32.mrf.mxu0
    %v552 = vadd.f32 %v455, %v551
    %v553 = vpop.f32.mrf.mxu0
    %v554 = vpop.f32.mrf.mxu0
    %v555 = vadd.f32 %v458, %v554
    %v556 = vpop.f32.mrf.mxu0
    %557 = vmatprep.mubr.bf16.mxu0 0
    %558 = vmatmul.mubr.bf16.gmra.mxu0 %v228
    %v559 = vpop.f32.mrf.mxu0
    %v560 = vadd.f32 %v463, %v559
    %v561 = vpop.f32.mrf.mxu0
    %v562 = vpop.f32.mrf.mxu0
    %v563 = vadd.f32 %v466, %v562
    %v564 = vpop.f32.mrf.mxu0
    %565 = vmatprep.mubr.bf16.mxu0 0
    %566 = vmatmul.mubr.bf16.gmra.mxu0 %v231
    %v567 = vpop.f32.mrf.mxu0
    %v568 = vadd.f32 %v471, %v567
    %v569 = vpop.f32.mrf.mxu0
    %v570 = vpop.f32.mrf.mxu0
    %v571 = vadd.f32 %v474, %v570
    %v572 = vpop.f32.mrf.mxu0
    %573 = vmatprep.mubr.bf16.mxu0 0
    %574 = vmatmul.mubr.bf16.gmra.mxu0 %v234
    %v575 = vpop.f32.mrf.mxu0
    %v576 = vadd.f32 %v479, %v575
    %v577 = vpop.f32.mrf.mxu0
    %v578 = vpop.f32.mrf.mxu0
    %v579 = vadd.f32 %v482, %v578
    %v580 = vpop.f32.mrf.mxu0
    %581 = vmatprep.mubr.bf16.mxu0 0
    %582 = vmatmul.mubr.bf16.gmra.mxu0 %v237
    %v583 = vpop.f32.mrf.mxu0
    %v584 = vadd.f32 %v487, %v583
    %v585 = vpop.f32.mrf.mxu0
    %v586 = vpop.f32.mrf.mxu0
    %v587 = vadd.f32 %v490, %v586
    %v588 = vpop.f32.mrf.mxu0
    %589 = vmatprep.mubr.bf16.mxu0 0
    %590 = vmatmul.mubr.bf16.gmra.mxu0 %v240
    %v591 = vpop.f32.mrf.mxu0
    %v592 = vadd.f32 %v495, %v591
    %v593 = vpop.f32.mrf.mxu0
    %v594 = vpop.f32.mrf.mxu0
    %v595 = vadd.f32 %v498, %v594
    %v596 = vpop.f32.mrf.mxu0
    %597 = vmatprep.mubr.bf16.mxu0 0
    %598 = vmatmul.mubr.bf16.gmra.mxu0 %v243
    %v599 = vpop.f32.mrf.mxu0
    %v600 = vadd.f32 %v503, %v599
    %v601 = vpop.f32.mrf.mxu0
    %v602 = vpop.f32.mrf.mxu0
    %v603 = vadd.f32 %v506, %v602
    %v604 = vpop.f32.mrf.mxu0
    %605 = vdwg.mxu0
    %v606 = vadd.f32 %v544, %v547
    %v607 = vadd.f32 %v606, %v552
    %v608 = vadd.f32 %v607, %v555
    %v609 = vadd.f32 %v608, %v560
    %v610 = vadd.f32 %v609, %v563
    %v611 = vadd.f32 %v610, %v568
    %v612 = vadd.f32 %v611, %v571
    %v613 = vadd.f32 %v612, %v576
    %v614 = vadd.f32 %v613, %v579
    %v615 = vadd.f32 %v614, %v584
    %v616 = vadd.f32 %v615, %v587
    %v617 = vadd.f32 %v616, %v592
    %v618 = vadd.f32 %v617, %v595
    %v619 = vadd.f32 %v618, %v600
    %v620 = vadd.f32 %v619, %v603
    %v621 = vrot.slane %v620, 4
    %v622 = vadd.f32 %v620, %v621
    %v623 = vrot.slane %v622, 2
    %v624 = vadd.f32 %v622, %v623
    %v625 = vrot.slane %v624, 1
    %v626 = vadd.f32 %v624, %v625
    %v627 = vmul.f32 %v544, %v544
    %v628 = vmul.f32 %v547, %v547
    %v629 = vmul.f32 %v552, %v552
    %v630 = vmul.f32 %v555, %v555
    %v631 = vmul.f32 %v560, %v560
    %v632 = vmul.f32 %v563, %v563
    %v633 = vmul.f32 %v568, %v568
    %v634 = vmul.f32 %v571, %v571
    %v635 = vmul.f32 %v576, %v576
    %v636 = vmul.f32 %v579, %v579
    %v637 = vmul.f32 %v584, %v584
    %v638 = vmul.f32 %v587, %v587
    %v639 = vmul.f32 %v592, %v592
    %v640 = vmul.f32 %v595, %v595
    %v641 = vmul.f32 %v600, %v600
    %v642 = vmul.f32 %v603, %v603
    %v643 = vadd.f32 %v627, %v628
    %v644 = vadd.f32 %v643, %v629
    %v645 = vadd.f32 %v644, %v630
    %v646 = vadd.f32 %v645, %v631
    %v647 = vadd.f32 %v646, %v632
    %v648 = vadd.f32 %v647, %v633
    %v649 = vadd.f32 %v648, %v634
    %v650 = vadd.f32 %v649, %v635
    %v651 = vadd.f32 %v650, %v636
    %v652 = vadd.f32 %v651, %v637
    %v653 = vadd.f32 %v652, %v638
    %v654 = vadd.f32 %v653, %v639
    %v655 = vadd.f32 %v654, %v640
    %v656 = vadd.f32 %v655, %v641
    %v657 = vadd.f32 %v656, %v642
    %v658 = vrot.slane %v657, 4
    %v659 = vadd.f32 %v657, %v658
    %v660 = vrot.slane %v659, 2
    %v661 = vadd.f32 %v659, %v660
    %v662 = vrot.slane %v661, 1
    %v663 = vadd.f32 %v661, %v662
    %v664 = vld [vmem:[#allocation4] sm:$0xff]
    %v665 = vld [vmem:[#allocation4 + $0x8] sm:$0xff]
    %v666 = vld [vmem:[#allocation4 + $0x10] sm:$0xff]
    %v667 = vld [vmem:[#allocation4 + $0x18] sm:$0xff]
    %v668 = vld [vmem:[#allocation4 + $0x20] sm:$0xff]
    %v669 = vld [vmem:[#allocation4 + $0x28] sm:$0xff]
    %v670 = vld [vmem:[#allocation4 + $0x30] sm:$0xff]
    %v671 = vld [vmem:[#allocation4 + $0x38] sm:$0xff]
    %v672 = vld [vmem:[#allocation4 + $0x40] sm:$0xff]
    %v673 = vld [vmem:[#allocation4 + $0x48] sm:$0xff]
    %v674 = vld [vmem:[#allocation4 + $0x50] sm:$0xff]
    %v675 = vld [vmem:[#allocation4 + $0x58] sm:$0xff]
    %v676 = vld [vmem:[#allocation4 + $0x60] sm:$0xff]
    %v677 = vld [vmem:[#allocation4 + $0x68] sm:$0xff]
    %v678 = vld [vmem:[#allocation4 + $0x70] sm:$0xff]
    %v679 = vld [vmem:[#allocation4 + $0x78] sm:$0xff]
    %680 = vmatprep.subr.mxu0 0.0
    %681 = vmatpush1.msra.mxu0 %v679
    %682 = vmatprep.subr.mxu0 0.0
    %683 = vmatpush1.msra.mxu0 %v678
    %684 = vmatprep.subr.mxu0 0.0
    %685 = vmatpush1.msra.mxu0 %v677
    %686 = vmatprep.subr.mxu0 0.0
    %687 = vmatpush1.msra.mxu0 %v676
    %688 = vmatprep.subr.mxu0 0.0
    %689 = vmatpush1.msra.mxu0 %v675
    %690 = vmatprep.subr.mxu0 0.0
    %691 = vmatpush1.msra.mxu0 %v674
    %692 = vmatprep.subr.mxu0 0.0
    %693 = vmatpush1.msra.mxu0 %v673
    %694 = vmatprep.subr.mxu0 0.0
    %695 = vmatpush1.msra.mxu0 %v672
    %696 = vmatprep.subr.mxu0 0.0
    %697 = vmatpush1.msra.mxu0 %v671
    %698 = vmatprep.subr.mxu0 0.0
    %699 = vmatpush1.msra.mxu0 %v670
    %700 = vmatprep.subr.mxu0 0.0
    %701 = vmatpush1.msra.mxu0 %v669
    %702 = vmatprep.subr.mxu0 0.0
    %703 = vmatpush1.msra.mxu0 %v668
    %704 = vmatprep.subr.mxu0 0.0
    %705 = vmatpush1.msra.mxu0 %v667
    %706 = vmatprep.subr.mxu0 0.0
    %707 = vmatpush1.msra.mxu0 %v666
    %708 = vmatprep.subr.mxu0 0.0
    %709 = vmatpush1.msra.mxu0 %v665
    %710 = vmatprep.subr.mxu0 0.0
    %711 = vmatpush1.msra.mxu0 %v664
    %712 = vmatprep.subr.mxu0 0.0
    %713 = vmatpush2.msra.mxu0 0.0
    %714 = vmatprep.subr.mxu0 0.0
    %715 = vmatpush2.msra.mxu0 0.0
    %716 = vmatprep.subr.mxu0 0.0
    %717 = vmatpush2.msra.mxu0 0.0
    %718 = vmatprep.subr.mxu0 0.0
    %719 = vmatpush2.msra.mxu0 0.0
    %720 = vmatprep.subr.mxu0 0.0
    %721 = vmatpush2.msra.mxu0 0.0
    %722 = vmatprep.subr.mxu0 0.0
    %723 = vmatpush2.msra.mxu0 0.0
    %724 = vmatprep.subr.mxu0 0.0
    %725 = vmatpush2.msra.mxu0 0.0
    %726 = vmatprep.subr.mxu0 0.0
    %727 = vmatpush2.msra.mxu0 0.0
    %728 = vmatprep.subr.mxu0 0.0
    %729 = vmatpush2.msra.mxu0 0.0
    %730 = vmatprep.subr.mxu0 0.0
    %731 = vmatpush2.msra.mxu0 0.0
    %732 = vmatprep.subr.mxu0 0.0
    %733 = vmatpush2.msra.mxu0 0.0
    %734 = vmatprep.subr.mxu0 0.0
    %735 = vmatpush2.msra.mxu0 0.0
    %736 = vmatprep.subr.mxu0 0.0
    %737 = vmatpush2.msra.mxu0 0.0
    %738 = vmatprep.subr.mxu0 0.0
    %739 = vmatpush2.msra.mxu0 0.0
    %740 = vmatprep.subr.mxu0 0.0
    %741 = vmatpush2.msra.mxu0 0.0
    %742 = vmatprep.subr.mxu0 0.0
    %743 = vmatpush2.msra.mxu0 0.0
    %744 = vmatprep.mubr.f32.mxu0 0.0
    %745 = vmatmul.mubr.f32.gmra.mxu0 %v626
    %v746 = vpop.f32.mrf.mxu0
    %v747 = vadd.f32 0.0, %v746
    %v748 = vpop.f32.mrf.mxu0
    %749 = vdwg.mxu0
    %750 = vmatprep.subr.mxu0 0.0
    %751 = vmatpush1.msra.mxu0 %v679
    %752 = vmatprep.subr.mxu0 0.0
    %753 = vmatpush1.msra.mxu0 %v678
    %754 = vmatprep.subr.mxu0 0.0
    %755 = vmatpush1.msra.mxu0 %v677
    %756 = vmatprep.subr.mxu0 0.0
    %757 = vmatpush1.msra.mxu0 %v676
    %758 = vmatprep.subr.mxu0 0.0
    %759 = vmatpush1.msra.mxu0 %v675
    %760 = vmatprep.subr.mxu0 0.0
    %761 = vmatpush1.msra.mxu0 %v674
    %762 = vmatprep.subr.mxu0 0.0
    %763 = vmatpush1.msra.mxu0 %v673
    %764 = vmatprep.subr.mxu0 0.0
    %765 = vmatpush1.msra.mxu0 %v672
    %766 = vmatprep.subr.mxu0 0.0
    %767 = vmatpush1.msra.mxu0 %v671
    %768 = vmatprep.subr.mxu0 0.0
    %769 = vmatpush1.msra.mxu0 %v670
    %770 = vmatprep.subr.mxu0 0.0
    %771 = vmatpush1.msra.mxu0 %v669
    %772 = vmatprep.subr.mxu0 0.0
    %773 = vmatpush1.msra.mxu0 %v668
    %774 = vmatprep.subr.mxu0 0.0
    %775 = vmatpush1.msra.mxu0 %v667
    %776 = vmatprep.subr.mxu0 0.0
    %777 = vmatpush1.msra.mxu0 %v666
    %778 = vmatprep.subr.mxu0 0.0
    %779 = vmatpush1.msra.mxu0 %v665
    %780 = vmatprep.subr.mxu0 0.0
    %781 = vmatpush1.msra.mxu0 %v664
    %782 = vmatprep.subr.mxu0 0.0
    %783 = vmatpush2.msra.mxu0 0.0
    %784 = vmatprep.subr.mxu0 0.0
    %785 = vmatpush2.msra.mxu0 0.0
    %786 = vmatprep.subr.mxu0 0.0
    %787 = vmatpush2.msra.mxu0 0.0
    %788 = vmatprep.subr.mxu0 0.0
    %789 = vmatpush2.msra.mxu0 0.0
    %790 = vmatprep.subr.mxu0 0.0
    %791 = vmatpush2.msra.mxu0 0.0
    %792 = vmatprep.subr.mxu0 0.0
    %793 = vmatpush2.msra.mxu0 0.0
    %794 = vmatprep.subr.mxu0 0.0
    %795 = vmatpush2.msra.mxu0 0.0
    %796 = vmatprep.subr.mxu0 0.0
    %797 = vmatpush2.msra.mxu0 0.0
    %798 = vmatprep.subr.mxu0 0.0
    %799 = vmatpush2.msra.mxu0 0.0
    %800 = vmatprep.subr.mxu0 0.0
    %801 = vmatpush2.msra.mxu0 0.0
    %802 = vmatprep.subr.mxu0 0.0
    %803 = vmatpush2.msra.mxu0 0.0
    %804 = vmatprep.subr.mxu0 0.0
    %805 = vmatpush2.msra.mxu0 0.0
    %806 = vmatprep.subr.mxu0 0.0
    %807 = vmatpush2.msra.mxu0 0.0
    %808 = vmatprep.subr.mxu0 0.0
    %809 = vmatpush2.msra.mxu0 0.0
    %810 = vmatprep.subr.mxu0 0.0
    %811 = vmatpush2.msra.mxu0 0.0
    %812 = vmatprep.subr.mxu0 0.0
    %813 = vmatpush2.msra.mxu0 0.0
    %814 = vmatprep.mubr.f32.mxu0 0.0
    %815 = vmatmul.mubr.f32.gmra.mxu0 %v663
    %v816 = vpop.f32.mrf.mxu0
    %v817 = vadd.f32 0.0, %v816
    %v818 = vpop.f32.mrf.mxu0
    %819 = vdwg.mxu0
    %v820 = vmul.f32 %v747, %v747
    %v821 = vsub.f32 %v817, %v820
    %v822 = vmax.f32 %v821, 0.0
    %v823 = vld [vmem:[#allocation6] sm:$0x1]
    %v824 = vadd.f32 %v822, 1e-05
    %v825 = vrsqrt.pop %v824
    %v826 = vmul.f32 %v823, %v825
    %v827 = vld [vmem:[%s4] sm:$0x1]
    %v828 = vmul.f32 %v747, %v826
    %v829 = vsub.f32 %v827, %v828
    %v831 = vlaneseq
    %v832 = vshrl.u32 %v831, 7
    %v833 = vsub.s32 0, %v832
    %v834 = vrot.slane %v826, %v833
    %v836 = vmul.f32 %v544, %v834
    %v837 = vmul.f32 %v547, %v834
    %v838 = vmul.f32 %v552, %v834
    %v839 = vmul.f32 %v555, %v834
    %v840 = vmul.f32 %v560, %v834
    %v841 = vmul.f32 %v563, %v834
    %v842 = vmul.f32 %v568, %v834
    %v843 = vmul.f32 %v571, %v834
    %v844 = vmul.f32 %v576, %v834
    %v845 = vmul.f32 %v579, %v834
    %v846 = vmul.f32 %v584, %v834
    %v847 = vmul.f32 %v587, %v834
    %v848 = vmul.f32 %v592, %v834
    %v849 = vmul.f32 %v595, %v834
    %v850 = vmul.f32 %v600, %v834
    %v851 = vmul.f32 %v603, %v834
    %v853 = vlaneseq
    %v854 = vshrl.u32 %v853, 7
    %v855 = vsub.s32 0, %v854
    %v856 = vrot.slane %v829, %v855
    %v858 = vadd.f32 %v836, %v856
    %v859 = vadd.f32 %v837, %v856
    %v860 = vadd.f32 %v838, %v856
    %v861 = vadd.f32 %v839, %v856
    %v862 = vadd.f32 %v840, %v856
    %v863 = vadd.f32 %v841, %v856
    %v864 = vadd.f32 %v842, %v856
    %v865 = vadd.f32 %v843, %v856
    %v866 = vadd.f32 %v844, %v856
    %v867 = vadd.f32 %v845, %v856
    %v868 = vadd.f32 %v846, %v856
    %v869 = vadd.f32 %v847, %v856
    %v870 = vadd.f32 %v848, %v856
    %v871 = vadd.f32 %v849, %v856
    %v872 = vadd.f32 %v850, %v856
    %v873 = vadd.f32 %v851, %v856
    %v874 = vmax.f32 %v858, 0.0
    %v875 = vmax.f32 %v859, 0.0
    %v876 = vmax.f32 %v860, 0.0
    %v877 = vmax.f32 %v861, 0.0
    %v878 = vmax.f32 %v862, 0.0
    %v879 = vmax.f32 %v863, 0.0
    %v880 = vmax.f32 %v864, 0.0
    %v881 = vmax.f32 %v865, 0.0
    %v882 = vmax.f32 %v866, 0.0
    %v883 = vmax.f32 %v867, 0.0
    %v884 = vmax.f32 %v868, 0.0
    %v885 = vmax.f32 %v869, 0.0
    %v886 = vmax.f32 %v870, 0.0
    %v887 = vmax.f32 %v871, 0.0
    %v888 = vmax.f32 %v872, 0.0
    %v889 = vmax.f32 %v873, 0.0
    %v890 = vpack.c.bf16 %v875, %v874
    %v891 = vpack.c.bf16 %v877, %v876
    %v892 = vpack.c.bf16 %v879, %v878
    %v893 = vpack.c.bf16 %v881, %v880
    %v894 = vpack.c.bf16 %v883, %v882
    %v895 = vpack.c.bf16 %v885, %v884
    %v896 = vpack.c.bf16 %v887, %v886
    %v897 = vpack.c.bf16 %v889, %v888
    %v906 = vunpack.c.l.b16 %v890
    %v907 = vunpack.c.h.b16 %v890
    %v908 = vunpack.c.l.b16 %v891
    %v909 = vunpack.c.h.b16 %v891
    %v910 = vunpack.c.l.b16 %v892
    %v911 = vunpack.c.h.b16 %v892
    %v912 = vunpack.c.l.b16 %v893
    %v913 = vunpack.c.h.b16 %v893
    %v914 = vunpack.c.l.b16 %v894
    %v915 = vunpack.c.h.b16 %v894
    %v916 = vunpack.c.l.b16 %v895
    %v917 = vunpack.c.h.b16 %v895
    %v918 = vunpack.c.l.b16 %v896
    %v919 = vunpack.c.h.b16 %v896
    %v920 = vunpack.c.l.b16 %v897
    %v921 = vunpack.c.h.b16 %v897
    %v922 = vpack.c.b16 %v906, %v906
    %v923 = vpack.c.b16 %v907, %v907
    %v924 = vpack.c.b16 %v908, %v908
    %v925 = vpack.c.b16 %v909, %v909
    %v926 = vpack.c.b16 %v910, %v910
    %v927 = vpack.c.b16 %v911, %v911
    %v928 = vpack.c.b16 %v912, %v912
    %v929 = vpack.c.b16 %v913, %v913
    %v930 = vpack.c.b16 %v914, %v914
    %v931 = vpack.c.b16 %v915, %v915
    %v932 = vpack.c.b16 %v916, %v916
    %v933 = vpack.c.b16 %v917, %v917
    %v934 = vpack.c.b16 %v918, %v918
    %v935 = vpack.c.b16 %v919, %v919
    %v936 = vpack.c.b16 %v920, %v920
    %v937 = vpack.c.b16 %v921, %v921
    %954 = vst [vmem:[%s5] sm:$0xf] %v922
    %955 = vst [vmem:[%s5 + $0x4] sm:$0xf] %v923
    %956 = vst [vmem:[%s5 + $0x8] sm:$0xf] %v924
    %957 = vst [vmem:[%s5 + $0xc] sm:$0xf] %v925
    %958 = vst [vmem:[%s5 + $0x10] sm:$0xf] %v926
    %959 = vst [vmem:[%s5 + $0x14] sm:$0xf] %v927
    %960 = vst [vmem:[%s5 + $0x18] sm:$0xf] %v928
    %961 = vst [vmem:[%s5 + $0x1c] sm:$0xf] %v929
    %962 = vst [vmem:[%s5 + $0x20] sm:$0xf] %v930
    %963 = vst [vmem:[%s5 + $0x24] sm:$0xf] %v931
    %964 = vst [vmem:[%s5 + $0x28] sm:$0xf] %v932
    %965 = vst [vmem:[%s5 + $0x2c] sm:$0xf] %v933
    %966 = vst [vmem:[%s5 + $0x30] sm:$0xf] %v934
    %967 = vst [vmem:[%s5 + $0x34] sm:$0xf] %v935
    %968 = vst [vmem:[%s5 + $0x38] sm:$0xf] %v936
    %969 = vst [vmem:[%s5 + $0x3c] sm:$0xf] %v937
    // Predicated region
    $region34: #{a_call__.19} parent=1 // pred_check
      _
    $region35: #{a_call__.19} parent=1 // pred_check_branch
      %971 = sbr.rel (0) target = $region37
    $region36: #{a_call__.19} parent=1 // pred_region
      _
    $region37: #{a_call__.19} parent=1 // pred_fallthru
      _
    // Predicated region
    $region38: #{a_call__.19} parent=1 // pred_check
      _
    $region39: #{a_call__.19} parent=1 // pred_check_branch
      %973 = sbr.rel (0) target = $region41
    $region40: #{a_call__.19} parent=1 // pred_region
      _
    $region41: #{a_call__.19} parent=1 // pred_fallthru
      _
    %974 = vsyncpa [#allocation3], 1
    %975 = vsyncpa [#allocation5], 1

// kernel: a_call__.20
$region0: #{a_call__.20}
  #allocation0 [shape = 'u32[]', space=smem, size = 0x4, offset = 0x4, fixed_abs, tag = 'smem constant byte address 0x4 - core index']
  #allocation1 [shape = 'u32[144,128]{1,0:T(1,128)}', space=vmem, size = 0x12000, scoped, tag = 'internal scratch']
  %s0 = inlined_call_operand.vmem [shape: bf16[512,256], index: 0, kind: input, shape index: {}]
  %s1 = inlined_call_operand.vmem [shape: bf16[256,128], index: 1, kind: input, shape index: {}]
  %s2 = inlined_call_operand.vmem [shape: f32[128,128], index: 2, kind: input, shape index: {}]
  %s3 = inlined_call_operand.vmem [shape: f32[1,128], index: 3, kind: input, shape index: {}]
  %s4 = inlined_call_operand.vmem [shape: f32[1,128], index: 4, kind: input, shape index: {}]
  %s5 = inlined_call_operand.vmem [shape: bf16[512,128], index: 5, kind: output, shape index: {}]
  %s6 = sld [smem:[#allocation0]]
  $region30: #{a_call__.20} parent=0
    _
  %s8 = ssub.s32 1, %s6
  %s9 = scalar_select 0, %s8, %s6
  // Predicated region
  $region2: #{a_call__.20} parent=0 // pred_check
    _
  $region3: #{a_call__.20} parent=0 // pred_check_branch
    %11 = sbr.rel (0) target = $region5
  $region4: #{a_call__.20} parent=0 // pred_region
    _
  $region5: #{a_call__.20} parent=0 // pred_fallthru
    _
  // Predicated region
  $region6: #{a_call__.20} parent=0 // pred_check
    _
  $region7: #{a_call__.20} parent=0 // pred_check_branch
    %13 = sbr.rel (0) target = $region9
  $region8: #{a_call__.20} parent=0 // pred_region
    _
  $region9: #{a_call__.20} parent=0 // pred_fallthru
    _
  // Predicated region
  $region10: #{a_call__.20} parent=0 // pred_check
    _
  $region11: #{a_call__.20} parent=0 // pred_check_branch
    %15 = sbr.rel (0) target = $region13
  $region12: #{a_call__.20} parent=0 // pred_region
    _
  $region13: #{a_call__.20} parent=0 // pred_fallthru
    _
  // Predicated region
  $region14: #{a_call__.20} parent=0 // pred_check
    _
  $region15: #{a_call__.20} parent=0 // pred_check_branch
    %17 = sbr.rel (0) target = $region17
  $region16: #{a_call__.20} parent=0 // pred_region
    _
  $region17: #{a_call__.20} parent=0 // pred_fallthru
    _
  // Predicated region
  $region18: #{a_call__.20} parent=0 // pred_check
    _
  $region19: #{a_call__.20} parent=0 // pred_check_branch
    %19 = sbr.rel (0) target = $region21
  $region20: #{a_call__.20} parent=0 // pred_region
    _
  $region21: #{a_call__.20} parent=0 // pred_fallthru
    _
  %v21 = vld [vmem:[%s0] sm:$0xff]
  %v22 = vld [vmem:[%s0 + $0x8] sm:$0xff]
  %v23 = vld [vmem:[%s0 + $0x10] sm:$0xff]
  %v24 = vld [vmem:[%s0 + $0x18] sm:$0xff]
  %v25 = vld [vmem:[%s0 + $0x20] sm:$0xff]
  %v26 = vld [vmem:[%s0 + $0x28] sm:$0xff]
  %v27 = vld [vmem:[%s0 + $0x30] sm:$0xff]
  %v28 = vld [vmem:[%s0 + $0x38] sm:$0xff]
  %v29 = vld [vmem:[%s0 + $0x40] sm:$0xff]
  %v30 = vld [vmem:[%s0 + $0x48] sm:$0xff]
  %v31 = vld [vmem:[%s0 + $0x50] sm:$0xff]
  %v32 = vld [vmem:[%s0 + $0x58] sm:$0xff]
  %v33 = vld [vmem:[%s0 + $0x60] sm:$0xff]
  %v34 = vld [vmem:[%s0 + $0x68] sm:$0xff]
  %v35 = vld [vmem:[%s0 + $0x70] sm:$0xff]
  %v36 = vld [vmem:[%s0 + $0x78] sm:$0xff]
  %v37 = vld [vmem:[%s0 + $0x80] sm:$0xff]
  %v38 = vld [vmem:[%s0 + $0x88] sm:$0xff]
  %v39 = vld [vmem:[%s0 + $0x90] sm:$0xff]
  %v40 = vld [vmem:[%s0 + $0x98] sm:$0xff]
  %v41 = vld [vmem:[%s0 + $0xa0] sm:$0xff]
  %v42 = vld [vmem:[%s0 + $0xa8] sm:$0xff]
  %v43 = vld [vmem:[%s0 + $0xb0] sm:$0xff]
  %v44 = vld [vmem:[%s0 + $0xb8] sm:$0xff]
  %v45 = vld [vmem:[%s0 + $0xc0] sm:$0xff]
  %v46 = vld [vmem:[%s0 + $0xc8] sm:$0xff]
  %v47 = vld [vmem:[%s0 + $0xd0] sm:$0xff]
  %v48 = vld [vmem:[%s0 + $0xd8] sm:$0xff]
  %v49 = vld [vmem:[%s0 + $0xe0] sm:$0xff]
  %v50 = vld [vmem:[%s0 + $0xe8] sm:$0xff]
  %v51 = vld [vmem:[%s0 + $0xf0] sm:$0xff]
  %v52 = vld [vmem:[%s0 + $0xf8] sm:$0xff]
  %v53 = vld [vmem:[%s0 + $0x100] sm:$0xff]
  %v54 = vld [vmem:[%s0 + $0x108] sm:$0xff]
  %v55 = vld [vmem:[%s0 + $0x110] sm:$0xff]
  %v56 = vld [vmem:[%s0 + $0x118] sm:$0xff]
  %v57 = vld [vmem:[%s0 + $0x120] sm:$0xff]
  %v58 = vld [vmem:[%s0 + $0x128] sm:$0xff]
  %v59 = vld [vmem:[%s0 + $0x130] sm:$0xff]
  %v60 = vld [vmem:[%s0 + $0x138] sm:$0xff]
  %v61 = vld [vmem:[%s0 + $0x140] sm:$0xff]
  %v62 = vld [vmem:[%s0 + $0x148] sm:$0xff]
  %v63 = vld [vmem:[%s0 + $0x150] sm:$0xff]
  %v64 = vld [vmem:[%s0 + $0x158] sm:$0xff]
  %v65 = vld [vmem:[%s0 + $0x160] sm:$0xff]
  %v66 = vld [vmem:[%s0 + $0x168] sm:$0xff]
  %v67 = vld [vmem:[%s0 + $0x170] sm:$0xff]
  %v68 = vld [vmem:[%s0 + $0x178] sm:$0xff]
  %v69 = vld [vmem:[%s0 + $0x180] sm:$0xff]
  %v70 = vld [vmem:[%s0 + $0x188] sm:$0xff]
  %v71 = vld [vmem:[%s0 + $0x190] sm:$0xff]
  %v72 = vld [vmem:[%s0 + $0x198] sm:$0xff]
  %v73 = vld [vmem:[%s0 + $0x1a0] sm:$0xff]
  %v74 = vld [vmem:[%s0 + $0x1a8] sm:$0xff]
  %v75 = vld [vmem:[%s0 + $0x1b0] sm:$0xff]
  %v76 = vld [vmem:[%s0 + $0x1b8] sm:$0xff]
  %v77 = vld [vmem:[%s0 + $0x1c0] sm:$0xff]
  %v78 = vld [vmem:[%s0 + $0x1c8] sm:$0xff]
  %v79 = vld [vmem:[%s0 + $0x1d0] sm:$0xff]
  %v80 = vld [vmem:[%s0 + $0x1d8] sm:$0xff]
  %v81 = vld [vmem:[%s0 + $0x1e0] sm:$0xff]
  %v82 = vld [vmem:[%s0 + $0x1e8] sm:$0xff]
  %v83 = vld [vmem:[%s0 + $0x1f0] sm:$0xff]
  %v84 = vld [vmem:[%s0 + $0x1f8] sm:$0xff]
  %v85 = vld [vmem:[%s1] sm:$0xf]
  %v86 = vld [vmem:[%s1 + $0x4] sm:$0xf]
  %v87 = vld [vmem:[%s1 + $0x8] sm:$0xf]
  %v88 = vld [vmem:[%s1 + $0xc] sm:$0xf]
  %v89 = vld [vmem:[%s1 + $0x10] sm:$0xf]
  %v90 = vld [vmem:[%s1 + $0x14] sm:$0xf]
  %v91 = vld [vmem:[%s1 + $0x18] sm:$0xf]
  %v92 = vld [vmem:[%s1 + $0x1c] sm:$0xf]
  %v93 = vld [vmem:[%s1 + $0x20] sm:$0xf]
  %v94 = vld [vmem:[%s1 + $0x24] sm:$0xf]
  %v95 = vld [vmem:[%s1 + $0x28] sm:$0xf]
  %v96 = vld [vmem:[%s1 + $0x2c] sm:$0xf]
  %v97 = vld [vmem:[%s1 + $0x30] sm:$0xf]
  %v98 = vld [vmem:[%s1 + $0x34] sm:$0xf]
  %v99 = vld [vmem:[%s1 + $0x38] sm:$0xf]
  %v100 = vld [vmem:[%s1 + $0x3c] sm:$0xf]
  %v101 = vld [vmem:[%s1 + $0x40] sm:$0xf]
  %v102 = vld [vmem:[%s1 + $0x44] sm:$0xf]
  %v103 = vld [vmem:[%s1 + $0x48] sm:$0xf]
  %v104 = vld [vmem:[%s1 + $0x4c] sm:$0xf]
  %v105 = vld [vmem:[%s1 + $0x50] sm:$0xf]
  %v106 = vld [vmem:[%s1 + $0x54] sm:$0xf]
  %v107 = vld [vmem:[%s1 + $0x58] sm:$0xf]
  %v108 = vld [vmem:[%s1 + $0x5c] sm:$0xf]
  %v109 = vld [vmem:[%s1 + $0x60] sm:$0xf]
  %v110 = vld [vmem:[%s1 + $0x64] sm:$0xf]
  %v111 = vld [vmem:[%s1 + $0x68] sm:$0xf]
  %v112 = vld [vmem:[%s1 + $0x6c] sm:$0xf]
  %v113 = vld [vmem:[%s1 + $0x70] sm:$0xf]
  %v114 = vld [vmem:[%s1 + $0x74] sm:$0xf]
  %v115 = vld [vmem:[%s1 + $0x78] sm:$0xf]
  %v116 = vld [vmem:[%s1 + $0x7c] sm:$0xf]
  %v181 = vunpack.c.l.b16 %v21
  %v182 = vunpack.c.h.b16 %v21
  %v183 = vunpack.c.l.b16 %v22
  %v184 = vunpack.c.h.b16 %v22
  %v185 = vunpack.c.l.b16 %v23
  %v186 = vunpack.c.h.b16 %v23
  %v187 = vunpack.c.l.b16 %v24
  %v188 = vunpack.c.h.b16 %v24
  %v189 = vunpack.c.l.b16 %v25
  %v190 = vunpack.c.h.b16 %v25
  %v191 = vunpack.c.l.b16 %v26
  %v192 = vunpack.c.h.b16 %v26
  %v193 = vunpack.c.l.b16 %v27
  %v194 = vunpack.c.h.b16 %v27
  %v195 = vunpack.c.l.b16 %v28
  %v196 = vunpack.c.h.b16 %v28
  %v197 = vunpack.c.l.b16 %v29
  %v198 = vunpack.c.h.b16 %v29
  %v199 = vunpack.c.l.b16 %v30
  %v200 = vunpack.c.h.b16 %v30
  %v201 = vunpack.c.l.b16 %v31
  %v202 = vunpack.c.h.b16 %v31
  %v203 = vunpack.c.l.b16 %v32
  %v204 = vunpack.c.h.b16 %v32
  %v205 = vunpack.c.l.b16 %v33
  %v206 = vunpack.c.h.b16 %v33
  %v207 = vunpack.c.l.b16 %v34
  %v208 = vunpack.c.h.b16 %v34
  %v209 = vunpack.c.l.b16 %v35
  %v210 = vunpack.c.h.b16 %v35
  %v211 = vunpack.c.l.b16 %v36
  %v212 = vunpack.c.h.b16 %v36
  %v213 = vunpack.c.l.b16 %v37
  %v214 = vunpack.c.h.b16 %v37
  %v215 = vunpack.c.l.b16 %v38
  %v216 = vunpack.c.h.b16 %v38
  %v217 = vunpack.c.l.b16 %v39
  %v218 = vunpack.c.h.b16 %v39
  %v219 = vunpack.c.l.b16 %v40
  %v220 = vunpack.c.h.b16 %v40
  %v221 = vunpack.c.l.b16 %v41
  %v222 = vunpack.c.h.b16 %v41
  %v223 = vunpack.c.l.b16 %v42
  %v224 = vunpack.c.h.b16 %v42
  %v225 = vunpack.c.l.b16 %v43
  %v226 = vunpack.c.h.b16 %v43
  %v227 = vunpack.c.l.b16 %v44
  %v228 = vunpack.c.h.b16 %v44
  %v229 = vunpack.c.l.b16 %v45
  %v230 = vunpack.c.h.b16 %v45
  %v231 = vunpack.c.l.b16 %v46
  %v232 = vunpack.c.h.b16 %v46
  %v233 = vunpack.c.l.b16 %v47
  %v234 = vunpack.c.h.b16 %v47
  %v235 = vunpack.c.l.b16 %v48
  %v236 = vunpack.c.h.b16 %v48
  %v237 = vunpack.c.l.b16 %v49
  %v238 = vunpack.c.h.b16 %v49
  %v239 = vunpack.c.l.b16 %v50
  %v240 = vunpack.c.h.b16 %v50
  %v241 = vunpack.c.l.b16 %v51
  %v242 = vunpack.c.h.b16 %v51
  %v243 = vunpack.c.l.b16 %v52
  %v244 = vunpack.c.h.b16 %v52
  %v245 = vunpack.c.l.b16 %v53
  %v246 = vunpack.c.h.b16 %v53
  %v247 = vunpack.c.l.b16 %v54
  %v248 = vunpack.c.h.b16 %v54
  %v249 = vunpack.c.l.b16 %v55
  %v250 = vunpack.c.h.b16 %v55
  %v251 = vunpack.c.l.b16 %v56
  %v252 = vunpack.c.h.b16 %v56
  %v253 = vunpack.c.l.b16 %v57
  %v254 = vunpack.c.h.b16 %v57
  %v255 = vunpack.c.l.b16 %v58
  %v256 = vunpack.c.h.b16 %v58
  %v257 = vunpack.c.l.b16 %v59
  %v258 = vunpack.c.h.b16 %v59
  %v259 = vunpack.c.l.b16 %v60
  %v260 = vunpack.c.h.b16 %v60
  %v261 = vunpack.c.l.b16 %v61
  %v262 = vunpack.c.h.b16 %v61
  %v263 = vunpack.c.l.b16 %v62
  %v264 = vunpack.c.h.b16 %v62
  %v265 = vunpack.c.l.b16 %v63
  %v266 = vunpack.c.h.b16 %v63
  %v267 = vunpack.c.l.b16 %v64
  %v268 = vunpack.c.h.b16 %v64
  %v269 = vunpack.c.l.b16 %v65
  %v270 = vunpack.c.h.b16 %v65
  %v271 = vunpack.c.l.b16 %v66
  %v272 = vunpack.c.h.b16 %v66
  %v273 = vunpack.c.l.b16 %v67
  %v274 = vunpack.c.h.b16 %v67
  %v275 = vunpack.c.l.b16 %v68
  %v276 = vunpack.c.h.b16 %v68
  %v277 = vunpack.c.l.b16 %v69
  %v278 = vunpack.c.h.b16 %v69
  %v279 = vunpack.c.l.b16 %v70
  %v280 = vunpack.c.h.b16 %v70
  %v281 = vunpack.c.l.b16 %v71
  %v282 = vunpack.c.h.b16 %v71
  %v283 = vunpack.c.l.b16 %v72
  %v284 = vunpack.c.h.b16 %v72
  %v285 = vunpack.c.l.b16 %v73
  %v286 = vunpack.c.h.b16 %v73
  %v287 = vunpack.c.l.b16 %v74
  %v288 = vunpack.c.h.b16 %v74
  %v289 = vunpack.c.l.b16 %v75
  %v290 = vunpack.c.h.b16 %v75
  %v291 = vunpack.c.l.b16 %v76
  %v292 = vunpack.c.h.b16 %v76
  %v293 = vunpack.c.l.b16 %v77
  %v294 = vunpack.c.h.b16 %v77
  %v295 = vunpack.c.l.b16 %v78
  %v296 = vunpack.c.h.b16 %v78
  %v297 = vunpack.c.l.b16 %v79
  %v298 = vunpack.c.h.b16 %v79
  %v299 = vunpack.c.l.b16 %v80
  %v300 = vunpack.c.h.b16 %v80
  %v301 = vunpack.c.l.b16 %v81
  %v302 = vunpack.c.h.b16 %v81
  %v303 = vunpack.c.l.b16 %v82
  %v304 = vunpack.c.h.b16 %v82
  %v305 = vunpack.c.l.b16 %v83
  %v306 = vunpack.c.h.b16 %v83
  %v307 = vunpack.c.l.b16 %v84
  %v308 = vunpack.c.h.b16 %v84
  %v309 = vpack.c.b16 %v183, %v181
  %v310 = vpack.c.b16 %v184, %v182
  %v311 = vpack.c.b16 %v187, %v185
  %v312 = vpack.c.b16 %v188, %v186
  %v313 = vpack.c.b16 %v191, %v189
  %v314 = vpack.c.b16 %v192, %v190
  %v315 = vpack.c.b16 %v195, %v193
  %v316 = vpack.c.b16 %v196, %v194
  %v317 = vpack.c.b16 %v199, %v197
  %v318 = vpack.c.b16 %v200, %v198
  %v319 = vpack.c.b16 %v203, %v201
  %v320 = vpack.c.b16 %v204, %v202
  %v321 = vpack.c.b16 %v207, %v205
  %v322 = vpack.c.b16 %v208, %v206
  %v323 = vpack.c.b16 %v211, %v209
  %v324 = vpack.c.b16 %v212, %v210
  %v325 = vpack.c.b16 %v215, %v213
  %v326 = vpack.c.b16 %v216, %v214
  %v327 = vpack.c.b16 %v219, %v217
  %v328 = vpack.c.b16 %v220, %v218
  %v329 = vpack.c.b16 %v223, %v221
  %v330 = vpack.c.b16 %v224, %v222
  %v331 = vpack.c.b16 %v227, %v225
  %v332 = vpack.c.b16 %v228, %v226
  %v333 = vpack.c.b16 %v231, %v229
  %v334 = vpack.c.b16 %v232, %v230
  %v335 = vpack.c.b16 %v235, %v233
  %v336 = vpack.c.b16 %v236, %v234
  %v337 = vpack.c.b16 %v239, %v237
  %v338 = vpack.c.b16 %v240, %v238
  %v339 = vpack.c.b16 %v243, %v241
  %v340 = vpack.c.b16 %v244, %v242
  %v341 = vpack.c.b16 %v247, %v245
  %v342 = vpack.c.b16 %v248, %v246
  %v343 = vpack.c.b16 %v251, %v249
  %v344 = vpack.c.b16 %v252, %v250
  %v345 = vpack.c.b16 %v255, %v253
  %v346 = vpack.c.b16 %v256, %v254
  %v347 = vpack.c.b16 %v259, %v257
  %v348 = vpack.c.b16 %v260, %v258
  %v349 = vpack.c.b16 %v263, %v261
  %v350 = vpack.c.b16 %v264, %v262
  %v351 = vpack.c.b16 %v267, %v265
  %v352 = vpack.c.b16 %v268, %v266
  %v353 = vpack.c.b16 %v271, %v269
  %v354 = vpack.c.b16 %v272, %v270
  %v355 = vpack.c.b16 %v275, %v273
  %v356 = vpack.c.b16 %v276, %v274
  %v357 = vpack.c.b16 %v279, %v277
  %v358 = vpack.c.b16 %v280, %v278
  %v359 = vpack.c.b16 %v283, %v281
  %v360 = vpack.c.b16 %v284, %v282
  %v361 = vpack.c.b16 %v287, %v285
  %v362 = vpack.c.b16 %v288, %v286
  %v363 = vpack.c.b16 %v291, %v289
  %v364 = vpack.c.b16 %v292, %v290
  %v365 = vpack.c.b16 %v295, %v293
  %v366 = vpack.c.b16 %v296, %v294
  %v367 = vpack.c.b16 %v299, %v297
  %v368 = vpack.c.b16 %v300, %v298
  %v369 = vpack.c.b16 %v303, %v301
  %v370 = vpack.c.b16 %v304, %v302
  %v371 = vpack.c.b16 %v307, %v305
  %v372 = vpack.c.b16 %v308, %v306
  %v469 = vunpack.c.l.b16 %v85
  %v470 = vunpack.c.l.b16 %v86
  %v471 = vunpack.c.l.b16 %v87
  %v472 = vunpack.c.l.b16 %v88
  %v473 = vunpack.c.l.b16 %v89
  %v474 = vunpack.c.l.b16 %v90
  %v475 = vunpack.c.l.b16 %v91
  %v476 = vunpack.c.l.b16 %v92
  %v477 = vunpack.c.l.b16 %v93
  %v478 = vunpack.c.l.b16 %v94
  %v479 = vunpack.c.l.b16 %v95
  %v480 = vunpack.c.l.b16 %v96
  %v481 = vunpack.c.l.b16 %v97
  %v482 = vunpack.c.l.b16 %v98
  %v483 = vunpack.c.l.b16 %v99
  %v484 = vunpack.c.l.b16 %v100
  %v485 = vunpack.c.l.b16 %v101
  %v486 = vunpack.c.l.b16 %v102
  %v487 = vunpack.c.l.b16 %v103
  %v488 = vunpack.c.l.b16 %v104
  %v489 = vunpack.c.l.b16 %v105
  %v490 = vunpack.c.l.b16 %v106
  %v491 = vunpack.c.l.b16 %v107
  %v492 = vunpack.c.l.b16 %v108
  %v493 = vunpack.c.l.b16 %v109
  %v494 = vunpack.c.l.b16 %v110
  %v495 = vunpack.c.l.b16 %v111
  %v496 = vunpack.c.l.b16 %v112
  %v497 = vunpack.c.l.b16 %v113
  %v498 = vunpack.c.l.b16 %v114
  %v499 = vunpack.c.l.b16 %v115
  %v500 = vunpack.c.l.b16 %v116
  %v501 = vpack.c.b16 %v470, %v469
  %v502 = vpack.c.b16 %v472, %v471
  %v503 = vpack.c.b16 %v474, %v473
  %v504 = vpack.c.b16 %v476, %v475
  %v505 = vpack.c.b16 %v478, %v477
  %v506 = vpack.c.b16 %v480, %v479
  %v507 = vpack.c.b16 %v482, %v481
  %v508 = vpack.c.b16 %v484, %v483
  %v509 = vpack.c.b16 %v486, %v485
  %v510 = vpack.c.b16 %v488, %v487
  %v511 = vpack.c.b16 %v490, %v489
  %v512 = vpack.c.b16 %v492, %v491
  %v513 = vpack.c.b16 %v494, %v493
  %v514 = vpack.c.b16 %v496, %v495
  %v515 = vpack.c.b16 %v498, %v497
  %v516 = vpack.c.b16 %v500, %v499
  %533 = vmatprep.subr.bf16.mxu0 0
  %534 = vmatpush1.bf16.msra.mxu0 %v508
  %535 = vmatprep.subr.bf16.mxu0 0
  %536 = vmatpush1.bf16.msra.mxu0 %v507
  %537 = vmatprep.subr.bf16.mxu0 0
  %538 = vmatpush1.bf16.msra.mxu0 %v506
  %539 = vmatprep.subr.bf16.mxu0 0
  %540 = vmatpush1.bf16.msra.mxu0 %v505
  %541 = vmatprep.subr.bf16.mxu0 0
  %542 = vmatpush1.bf16.msra.mxu0 %v504
  %543 = vmatprep.subr.bf16.mxu0 0
  %544 = vmatpush1.bf16.msra.mxu0 %v503
  %545 = vmatprep.subr.bf16.mxu0 0
  %546 = vmatpush1.bf16.msra.mxu0 %v502
  %547 = vmatprep.subr.bf16.mxu0 0
  %548 = vmatpush1.bf16.msra.mxu0 %v501
  %549 = vmatprep.subr.bf16.mxu0 0
  %550 = vmatpush2.bf16.msra.mxu0 %v516
  %551 = vmatprep.subr.bf16.mxu0 0
  %552 = vmatpush2.bf16.msra.mxu0 %v515
  %553 = vmatprep.subr.bf16.mxu0 0
  %554 = vmatpush2.bf16.msra.mxu0 %v514
  %555 = vmatprep.subr.bf16.mxu0 0
  %556 = vmatpush2.bf16.msra.mxu0 %v513
  %557 = vmatprep.subr.bf16.mxu0 0
  %558 = vmatpush2.bf16.msra.mxu0 %v512
  %559 = vmatprep.subr.bf16.mxu0 0
  %560 = vmatpush2.bf16.msra.mxu0 %v511
  %561 = vmatprep.subr.bf16.mxu0 0
  %562 = vmatpush2.bf16.msra.mxu0 %v510
  %563 = vmatprep.subr.bf16.mxu0 0
  %564 = vmatpush2.bf16.msra.mxu0 %v509
  %565 = vmatprep.mubr.bf16.mxu0 %v310
  %566 = vmatmul.mubr.bf16.gmra.mxu0 %v309
  %v567 = vpop.f32.mrf.mxu0
  %v568 = vadd.f32 0.0, %v567
  %v569 = vpop.f32.mrf.mxu0
  %v570 = vpop.f32.mrf.mxu0
  %v571 = vadd.f32 0.0, %v570
  %v572 = vpop.f32.mrf.mxu0
  %573 = vmatprep.mubr.bf16.mxu0 %v312
  %574 = vmatmul.mubr.bf16.gmra.mxu0 %v311
  %v575 = vpop.f32.mrf.mxu0
  %v576 = vadd.f32 0.0, %v575
  %v577 = vpop.f32.mrf.mxu0
  %v578 = vpop.f32.mrf.mxu0
  %v579 = vadd.f32 0.0, %v578
  %v580 = vpop.f32.mrf.mxu0
  %581 = vmatprep.mubr.bf16.mxu0 %v314
  %582 = vmatmul.mubr.bf16.gmra.mxu0 %v313
  %v583 = vpop.f32.mrf.mxu0
  %v584 = vadd.f32 0.0, %v583
  %v585 = vpop.f32.mrf.mxu0
  %v586 = vpop.f32.mrf.mxu0
  %v587 = vadd.f32 0.0, %v586
  %v588 = vpop.f32.mrf.mxu0
  %589 = vmatprep.mubr.bf16.mxu0 %v316
  %590 = vmatmul.mubr.bf16.gmra.mxu0 %v315
  %v591 = vpop.f32.mrf.mxu0
  %v592 = vadd.f32 0.0, %v591
  %v593 = vpop.f32.mrf.mxu0
  %v594 = vpop.f32.mrf.mxu0
  %v595 = vadd.f32 0.0, %v594
  %v596 = vpop.f32.mrf.mxu0
  %597 = vmatprep.mubr.bf16.mxu0 %v318
  %598 = vmatmul.mubr.bf16.gmra.mxu0 %v317
  %v599 = vpop.f32.mrf.mxu0
  %v600 = vadd.f32 0.0, %v599
  %v601 = vpop.f32.mrf.mxu0
  %v602 = vpop.f32.mrf.mxu0
  %v603 = vadd.f32 0.0, %v602
  %v604 = vpop.f32.mrf.mxu0
  %605 = vmatprep.mubr.bf16.mxu0 %v320
  %606 = vmatmul.mubr.bf16.gmra.mxu0 %v319
  %v607 = vpop.f32.mrf.mxu0
  %v608 = vadd.f32 0.0, %v607
  %v609 = vpop.f32.mrf.mxu0
  %v610 = vpop.f32.mrf.mxu0
  %v611 = vadd.f32 0.0, %v610
  %v612 = vpop.f32.mrf.mxu0
  %613 = vmatprep.mubr.bf16.mxu0 %v322
  %614 = vmatmul.mubr.bf16.gmra.mxu0 %v321
  %v615 = vpop.f32.mrf.mxu0
  %v616 = vadd.f32 0.0, %v615
  %v617 = vpop.f32.mrf.mxu0
  %v618 = vpop.f32.mrf.mxu0
  %v619 = vadd.f32 0.0, %v618
  %v620 = vpop.f32.mrf.mxu0
  %621 = vmatprep.mubr.bf16.mxu0 %v324
  %622 = vmatmul.mubr.bf16.gmra.mxu0 %v323
  %v623 = vpop.f32.mrf.mxu0
  %v624 = vadd.f32 0.0, %v623
  %v625 = vpop.f32.mrf.mxu0
  %v626 = vpop.f32.mrf.mxu0
  %v627 = vadd.f32 0.0, %v626
  %v628 = vpop.f32.mrf.mxu0
  %629 = vmatprep.mubr.bf16.mxu0 %v326
  %630 = vmatmul.mubr.bf16.gmra.mxu0 %v325
  %v631 = vpop.f32.mrf.mxu0
  %v632 = vadd.f32 0.0, %v631
  %v633 = vpop.f32.mrf.mxu0
  %v634 = vpop.f32.mrf.mxu0
  %v635 = vadd.f32 0.0, %v634
  %v636 = vpop.f32.mrf.mxu0
  %637 = vmatprep.mubr.bf16.mxu0 %v328
  %638 = vmatmul.mubr.bf16.gmra.mxu0 %v327
  %v639 = vpop.f32.mrf.mxu0
  %v640 = vadd.f32 0.0, %v639
  %v641 = vpop.f32.mrf.mxu0
  %v642 = vpop.f32.mrf.mxu0
  %v643 = vadd.f32 0.0, %v642
  %v644 = vpop.f32.mrf.mxu0
  %645 = vmatprep.mubr.bf16.mxu0 %v330
  %646 = vmatmul.mubr.bf16.gmra.mxu0 %v329
  %v647 = vpop.f32.mrf.mxu0
  %v648 = vadd.f32 0.0, %v647
  %v649 = vpop.f32.mrf.mxu0
  %v650 = vpop.f32.mrf.mxu0
  %v651 = vadd.f32 0.0, %v650
  %v652 = vpop.f32.mrf.mxu0
  %653 = vmatprep.mubr.bf16.mxu0 %v332
  %654 = vmatmul.mubr.bf16.gmra.mxu0 %v331
  %v655 = vpop.f32.mrf.mxu0
  %v656 = vadd.f32 0.0, %v655
  %v657 = vpop.f32.mrf.mxu0
  %v658 = vpop.f32.mrf.mxu0
  %v659 = vadd.f32 0.0, %v658
  %v660 = vpop.f32.mrf.mxu0
  %661 = vmatprep.mubr.bf16.mxu0 %v334
  %662 = vmatmul.mubr.bf16.gmra.mxu0 %v333
  %v663 = vpop.f32.mrf.mxu0
  %v664 = vadd.f32 0.0, %v663
  %v665 = vpop.f32.mrf.mxu0
  %v666 = vpop.f32.mrf.mxu0
  %v667 = vadd.f32 0.0, %v666
  %v668 = vpop.f32.mrf.mxu0
  %669 = vmatprep.mubr.bf16.mxu0 %v336
  %670 = vmatmul.mubr.bf16.gmra.mxu0 %v335
  %v671 = vpop.f32.mrf.mxu0
  %v672 = vadd.f32 0.0, %v671
  %v673 = vpop.f32.mrf.mxu0
  %v674 = vpop.f32.mrf.mxu0
  %v675 = vadd.f32 0.0, %v674
  %v676 = vpop.f32.mrf.mxu0
  %677 = vmatprep.mubr.bf16.mxu0 %v338
  %678 = vmatmul.mubr.bf16.gmra.mxu0 %v337
  %v679 = vpop.f32.mrf.mxu0
  %v680 = vadd.f32 0.0, %v679
  %v681 = vpop.f32.mrf.mxu0
  %v682 = vpop.f32.mrf.mxu0
  %v683 = vadd.f32 0.0, %v682
  %v684 = vpop.f32.mrf.mxu0
  %685 = vmatprep.mubr.bf16.mxu0 %v340
  %686 = vmatmul.mubr.bf16.gmra.mxu0 %v339
  %v687 = vpop.f32.mrf.mxu0
  %v688 = vadd.f32 0.0, %v687
  %v689 = vpop.f32.mrf.mxu0
  %v690 = vpop.f32.mrf.mxu0
  %v691 = vadd.f32 0.0, %v690
  %v692 = vpop.f32.mrf.mxu0
  %693 = vmatprep.mubr.bf16.mxu0 %v342
  %694 = vmatmul.mubr.bf16.gmra.mxu0 %v341
  %v695 = vpop.f32.mrf.mxu0
  %v696 = vadd.f32 0.0, %v695
  %v697 = vpop.f32.mrf.mxu0
  %v698 = vpop.f32.mrf.mxu0
  %v699 = vadd.f32 0.0, %v698
  %v700 = vpop.f32.mrf.mxu0
  %701 = vmatprep.mubr.bf16.mxu0 %v344
  %702 = vmatmul.mubr.bf16.gmra.mxu0 %v343
  %v703 = vpop.f32.mrf.mxu0
  %v704 = vadd.f32 0.0, %v703
  %v705 = vpop.f32.mrf.mxu0
  %v706 = vpop.f32.mrf.mxu0
  %v707 = vadd.f32 0.0, %v706
  %v708 = vpop.f32.mrf.mxu0
  %709 = vmatprep.mubr.bf16.mxu0 %v346
  %710 = vmatmul.mubr.bf16.gmra.mxu0 %v345
  %v711 = vpop.f32.mrf.mxu0
  %v712 = vadd.f32 0.0, %v711
  %v713 = vpop.f32.mrf.mxu0
  %v714 = vpop.f32.mrf.mxu0
  %v715 = vadd.f32 0.0, %v714
  %v716 = vpop.f32.mrf.mxu0
  %717 = vmatprep.mubr.bf16.mxu0 %v348
  %718 = vmatmul.mubr.bf16.gmra.mxu0 %v347
  %v719 = vpop.f32.mrf.mxu0
  %v720 = vadd.f32 0.0, %v719
  %v721 = vpop.f32.mrf.mxu0
  %v722 = vpop.f32.mrf.mxu0
  %v723 = vadd.f32 0.0, %v722
  %v724 = vpop.f32.mrf.mxu0
  %725 = vmatprep.mubr.bf16.mxu0 %v350
  %726 = vmatmul.mubr.bf16.gmra.mxu0 %v349
  %v727 = vpop.f32.mrf.mxu0
  %v728 = vadd.f32 0.0, %v727
  %v729 = vpop.f32.mrf.mxu0
  %v730 = vpop.f32.mrf.mxu0
  %v731 = vadd.f32 0.0, %v730
  %v732 = vpop.f32.mrf.mxu0
  %733 = vmatprep.mubr.bf16.mxu0 %v352
  %734 = vmatmul.mubr.bf16.gmra.mxu0 %v351
  %v735 = vpop.f32.mrf.mxu0
  %v736 = vadd.f32 0.0, %v735
  %v737 = vpop.f32.mrf.mxu0
  %v738 = vpop.f32.mrf.mxu0
  %v739 = vadd.f32 0.0, %v738
  %v740 = vpop.f32.mrf.mxu0
  %741 = vmatprep.mubr.bf16.mxu0 %v354
  %742 = vmatmul.mubr.bf16.gmra.mxu0 %v353
  %v743 = vpop.f32.mrf.mxu0
  %v744 = vadd.f32 0.0, %v743
  %v745 = vpop.f32.mrf.mxu0
  %v746 = vpop.f32.mrf.mxu0
  %v747 = vadd.f32 0.0, %v746
  %v748 = vpop.f32.mrf.mxu0
  %749 = vmatprep.mubr.bf16.mxu0 %v356
  %750 = vmatmul.mubr.bf16.gmra.mxu0 %v355
  %v751 = vpop.f32.mrf.mxu0
  %v752 = vadd.f32 0.0, %v751
  %v753 = vpop.f32.mrf.mxu0
  %v754 = vpop.f32.mrf.mxu0
  %v755 = vadd.f32 0.0, %v754
  %v756 = vpop.f32.mrf.mxu0
  %757 = vmatprep.mubr.bf16.mxu0 %v358
  %758 = vmatmul.mubr.bf16.gmra.mxu0 %v357
  %v759 = vpop.f32.mrf.mxu0
  %v760 = vadd.f32 0.0, %v759
  %v761 = vpop.f32.mrf.mxu0
  %v762 = vpop.f32.mrf.mxu0
  %v763 = vadd.f32 0.0, %v762
  %v764 = vpop.f32.mrf.mxu0
  %765 = vmatprep.mubr.bf16.mxu0 %v360
  %766 = vmatmul.mubr.bf16.gmra.mxu0 %v359
  %v767 = vpop.f32.mrf.mxu0
  %v768 = vadd.f32 0.0, %v767
  %v769 = vpop.f32.mrf.mxu0
  %v770 = vpop.f32.mrf.mxu0
  %v771 = vadd.f32 0.0, %v770
  %v772 = vpop.f32.mrf.mxu0
  %773 = vmatprep.mubr.bf16.mxu0 %v362
  %774 = vmatmul.mubr.bf16.gmra.mxu0 %v361
  %v775 = vpop.f32.mrf.mxu0
  %v776 = vadd.f32 0.0, %v775
  %v777 = vpop.f32.mrf.mxu0
  %v778 = vpop.f32.mrf.mxu0
  %v779 = vadd.f32 0.0, %v778
  %v780 = vpop.f32.mrf.mxu0
  %781 = vmatprep.mubr.bf16.mxu0 %v364
  %782 = vmatmul.mubr.bf16.gmra.mxu0 %v363
  %v783 = vpop.f32.mrf.mxu0
  %v784 = vadd.f32 0.0, %v783
  %v785 = vpop.f32.mrf.mxu0
  %v786 = vpop.f32.mrf.mxu0
  %v787 = vadd.f32 0.0, %v786
  %v788 = vpop.f32.mrf.mxu0
  %789 = vmatprep.mubr.bf16.mxu0 %v366
  %790 = vmatmul.mubr.bf16.gmra.mxu0 %v365
  %v791 = vpop.f32.mrf.mxu0
  %v792 = vadd.f32 0.0, %v791
  %v793 = vpop.f32.mrf.mxu0
  %v794 = vpop.f32.mrf.mxu0
  %v795 = vadd.f32 0.0, %v794
  %v796 = vpop.f32.mrf.mxu0
  %797 = vmatprep.mubr.bf16.mxu0 %v368
  %798 = vmatmul.mubr.bf16.gmra.mxu0 %v367
  %v799 = vpop.f32.mrf.mxu0
  %v800 = vadd.f32 0.0, %v799
  %v801 = vpop.f32.mrf.mxu0
  %v802 = vpop.f32.mrf.mxu0
  %v803 = vadd.f32 0.0, %v802
  %v804 = vpop.f32.mrf.mxu0
  %805 = vmatprep.mubr.bf16.mxu0 %v370
  %806 = vmatmul.mubr.bf16.gmra.mxu0 %v369
  %v807 = vpop.f32.mrf.mxu0
  %v808 = vadd.f32 0.0, %v807
  %v809 = vpop.f32.mrf.mxu0
  %v810 = vpop.f32.mrf.mxu0
  %v811 = vadd.f32 0.0, %v810
  %v812 = vpop.f32.mrf.mxu0
  %813 = vmatprep.mubr.bf16.mxu0 %v372
  %814 = vmatmul.mubr.bf16.gmra.mxu0 %v371
  %v815 = vpop.f32.mrf.mxu0
  %v816 = vadd.f32 0.0, %v815
  %v817 = vpop.f32.mrf.mxu0
  %v818 = vpop.f32.mrf.mxu0
  %v819 = vadd.f32 0.0, %v818
  %v820 = vpop.f32.mrf.mxu0
  %821 = vdwg.mxu0
  %v822 = vadd.f32 %v568, %v571
  %v823 = vadd.f32 %v822, %v576
  %v824 = vadd.f32 %v823, %v579
  %v825 = vadd.f32 %v824, %v584
  %v826 = vadd.f32 %v825, %v587
  %v827 = vadd.f32 %v826, %v592
  %v828 = vadd.f32 %v827, %v595
  %v829 = vadd.f32 %v828, %v600
  %v830 = vadd.f32 %v829, %v603
  %v831 = vadd.f32 %v830, %v608
  %v832 = vadd.f32 %v831, %v611
  %v833 = vadd.f32 %v832, %v616
  %v834 = vadd.f32 %v833, %v619
  %v835 = vadd.f32 %v834, %v624
  %v836 = vadd.f32 %v835, %v627
  %v837 = vadd.f32 %v836, %v632
  %v838 = vadd.f32 %v837, %v635
  %v839 = vadd.f32 %v838, %v640
  %v840 = vadd.f32 %v839, %v643
  %v841 = vadd.f32 %v840, %v648
  %v842 = vadd.f32 %v841, %v651
  %v843 = vadd.f32 %v842, %v656
  %v844 = vadd.f32 %v843, %v659
  %v845 = vadd.f32 %v844, %v664
  %v846 = vadd.f32 %v845, %v667
  %v847 = vadd.f32 %v846, %v672
  %v848 = vadd.f32 %v847, %v675
  %v849 = vadd.f32 %v848, %v680
  %v850 = vadd.f32 %v849, %v683
  %v851 = vadd.f32 %v850, %v688
  %v852 = vadd.f32 %v851, %v691
  %v853 = vadd.f32 %v852, %v696
  %v854 = vadd.f32 %v853, %v699
  %v855 = vadd.f32 %v854, %v704
  %v856 = vadd.f32 %v855, %v707
  %v857 = vadd.f32 %v856, %v712
  %v858 = vadd.f32 %v857, %v715
  %v859 = vadd.f32 %v858, %v720
  %v860 = vadd.f32 %v859, %v723
  %v861 = vadd.f32 %v860, %v728
  %v862 = vadd.f32 %v861, %v731
  %v863 = vadd.f32 %v862, %v736
  %v864 = vadd.f32 %v863, %v739
  %v865 = vadd.f32 %v864, %v744
  %v866 = vadd.f32 %v865, %v747
  %v867 = vadd.f32 %v866, %v752
  %v868 = vadd.f32 %v867, %v755
  %v869 = vadd.f32 %v868, %v760
  %v870 = vadd.f32 %v869, %v763
  %v871 = vadd.f32 %v870, %v768
  %v872 = vadd.f32 %v871, %v771
  %v873 = vadd.f32 %v872, %v776
  %v874 = vadd.f32 %v873, %v779
  %v875 = vadd.f32 %v874, %v784
  %v876 = vadd.f32 %v875, %v787
  %v877 = vadd.f32 %v876, %v792
  %v878 = vadd.f32 %v877, %v795
  %v879 = vadd.f32 %v878, %v800
  %v880 = vadd.f32 %v879, %v803
  %v881 = vadd.f32 %v880, %v808
  %v882 = vadd.f32 %v881, %v811
  %v883 = vadd.f32 %v882, %v816
  %v884 = vadd.f32 %v883, %v819
  %v885 = vrot.slane %v884, 4
  %v886 = vadd.f32 %v884, %v885
  %v887 = vrot.slane %v886, 2
  %v888 = vadd.f32 %v886, %v887
  %v889 = vrot.slane %v888, 1
  %v890 = vadd.f32 %v888, %v889
  %v891 = vmul.f32 %v568, %v568
  %v892 = vmul.f32 %v571, %v571
  %v893 = vmul.f32 %v576, %v576
  %v894 = vmul.f32 %v579, %v579
  %v895 = vmul.f32 %v584, %v584
  %v896 = vmul.f32 %v587, %v587
  %v897 = vmul.f32 %v592, %v592
  %v898 = vmul.f32 %v595, %v595
  %v899 = vmul.f32 %v600, %v600
  %v900 = vmul.f32 %v603, %v603
  %v901 = vmul.f32 %v608, %v608
  %v902 = vmul.f32 %v611, %v611
  %v903 = vmul.f32 %v616, %v616
  %v904 = vmul.f32 %v619, %v619
  %v905 = vmul.f32 %v624, %v624
  %v906 = vmul.f32 %v627, %v627
  %v907 = vmul.f32 %v632, %v632
  %v908 = vmul.f32 %v635, %v635
  %v909 = vmul.f32 %v640, %v640
  %v910 = vmul.f32 %v643, %v643
  %v911 = vmul.f32 %v648, %v648
  %v912 = vmul.f32 %v651, %v651
  %v913 = vmul.f32 %v656, %v656
  %v914 = vmul.f32 %v659, %v659
  %v915 = vmul.f32 %v664, %v664
  %v916 = vmul.f32 %v667, %v667
  %v917 = vmul.f32 %v672, %v672
  %v918 = vmul.f32 %v675, %v675
  %v919 = vmul.f32 %v680, %v680
  %v920 = vmul.f32 %v683, %v683
  %v921 = vmul.f32 %v688, %v688
  %v922 = vmul.f32 %v691, %v691
  %v923 = vmul.f32 %v696, %v696
  %v924 = vmul.f32 %v699, %v699
  %v925 = vmul.f32 %v704, %v704
  %v926 = vmul.f32 %v707, %v707
  %v927 = vmul.f32 %v712, %v712
  %v928 = vmul.f32 %v715, %v715
  %v929 = vmul.f32 %v720, %v720
  %v930 = vmul.f32 %v723, %v723
  %v931 = vmul.f32 %v728, %v728
  %v932 = vmul.f32 %v731, %v731
  %v933 = vmul.f32 %v736, %v736
  %v934 = vmul.f32 %v739, %v739
  %v935 = vmul.f32 %v744, %v744
  %v936 = vmul.f32 %v747, %v747
  %v937 = vmul.f32 %v752, %v752
  %v938 = vmul.f32 %v755, %v755
  %v939 = vmul.f32 %v760, %v760
  %v940 = vmul.f32 %v763, %v763
  %v941 = vmul.f32 %v768, %v768
  %v942 = vmul.f32 %v771, %v771
  %v943 = vmul.f32 %v776, %v776
  %v944 = vmul.f32 %v779, %v779
  %v945 = vmul.f32 %v784, %v784
  %v946 = vmul.f32 %v787, %v787
  %v947 = vmul.f32 %v792, %v792
  %v948 = vmul.f32 %v795, %v795
  %v949 = vmul.f32 %v800, %v800
  %v950 = vmul.f32 %v803, %v803
  %v951 = vmul.f32 %v808, %v808
  %v952 = vmul.f32 %v811, %v811
  %v953 = vmul.f32 %v816, %v816
  %v954 = vmul.f32 %v819, %v819
  %v955 = vadd.f32 %v891, %v892
  %v956 = vadd.f32 %v955, %v893
  %v957 = vadd.f32 %v956, %v894
  %v958 = vadd.f32 %v957, %v895
  %v959 = vadd.f32 %v958, %v896
  %v960 = vadd.f32 %v959, %v897
  %v961 = vadd.f32 %v960, %v898
  %v962 = vadd.f32 %v961, %v899
  %v963 = vadd.f32 %v962, %v900
  %v964 = vadd.f32 %v963, %v901
  %v965 = vadd.f32 %v964, %v902
  %v966 = vadd.f32 %v965, %v903
  %v967 = vadd.f32 %v966, %v904
  %v968 = vadd.f32 %v967, %v905
  %v969 = vadd.f32 %v968, %v906
  %v970 = vadd.f32 %v969, %v907
  %v971 = vadd.f32 %v970, %v908
  %v972 = vadd.f32 %v971, %v909
  %v973 = vadd.f32 %v972, %v910
  %v974 = vadd.f32 %v973, %v911
  %v975 = vadd.f32 %v974, %v912
  %v976 = vadd.f32 %v975, %v913
  %v977 = vadd.f32 %v976, %v914
  %v978 = vadd.f32 %v977, %v915
  %v979 = vadd.f32 %v978, %v916
  %v980 = vadd.f32 %v979, %v917
  %v981 = vadd.f32 %v980, %v918
  %v982 = vadd.f32 %v981, %v919
  %v983 = vadd.f32 %v982, %v920
  %v984 = vadd.f32 %v983, %v921
  %v985 = vadd.f32 %v984, %v922
  %v986 = vadd.f32 %v985, %v923
  %v987 = vadd.f32 %v986, %v924
  %v988 = vadd.f32 %v987, %v925
  %v989 = vadd.f32 %v988, %v926
  %v990 = vadd.f32 %v989, %v927
  %v991 = vadd.f32 %v990, %v928
  %v992 = vadd.f32 %v991, %v929
  %v993 = vadd.f32 %v992, %v930
  %v994 = vadd.f32 %v993, %v931
  %v995 = vadd.f32 %v994, %v932
  %v996 = vadd.f32 %v995, %v933
  %v997 = vadd.f32 %v996, %v934
  %v998 = vadd.f32 %v997, %v935
  %v999 = vadd.f32 %v998, %v936
  %v1000 = vadd.f32 %v999, %v937
  %v1001 = vadd.f32 %v1000, %v938
  %v1002 = vadd.f32 %v1001, %v939
  %v1003 = vadd.f32 %v1002, %v940
  %v1004 = vadd.f32 %v1003, %v941
  %v1005 = vadd.f32 %v1004, %v942
  %v1006 = vadd.f32 %v1005, %v943
  %v1007 = vadd.f32 %v1006, %v944
  %v1008 = vadd.f32 %v1007, %v945
  %v1009 = vadd.f32 %v1008, %v946
  %v1010 = vadd.f32 %v1009, %v947
  %v1011 = vadd.f32 %v1010, %v948
  %v1012 = vadd.f32 %v1011, %v949
  %v1013 = vadd.f32 %v1012, %v950
  %v1014 = vadd.f32 %v1013, %v951
  %v1015 = vadd.f32 %v1014, %v952
  %v1016 = vadd.f32 %v1015, %v953
  %v1017 = vadd.f32 %v1016, %v954
  %v1018 = vrot.slane %v1017, 4
  %v1019 = vadd.f32 %v1017, %v1018
  %v1020 = vrot.slane %v1019, 2
  %v1021 = vadd.f32 %v1019, %v1020
  %v1022 = vrot.slane %v1021, 1
  %v1023 = vadd.f32 %v1021, %v1022
  %v1024 = vld [vmem:[%s2] sm:$0xff]
  %v1025 = vld [vmem:[%s2 + $0x8] sm:$0xff]
  %v1026 = vld [vmem:[%s2 + $0x10] sm:$0xff]
  %v1027 = vld [vmem:[%s2 + $0x18] sm:$0xff]
  %v1028 = vld [vmem:[%s2 + $0x20] sm:$0xff]
  %v1029 = vld [vmem:[%s2 + $0x28] sm:$0xff]
  %v1030 = vld [vmem:[%s2 + $0x30] sm:$0xff]
  %v1031 = vld [vmem:[%s2 + $0x38] sm:$0xff]
  %v1032 = vld [vmem:[%s2 + $0x40] sm:$0xff]
  %v1033 = vld [vmem:[%s2 + $0x48] sm:$0xff]
  %v1034 = vld [vmem:[%s2 + $0x50] sm:$0xff]
  %v1035 = vld [vmem:[%s2 + $0x58] sm:$0xff]
  %v1036 = vld [vmem:[%s2 + $0x60] sm:$0xff]
  %v1037 = vld [vmem:[%s2 + $0x68] sm:$0xff]
  %v1038 = vld [vmem:[%s2 + $0x70] sm:$0xff]
  %v1039 = vld [vmem:[%s2 + $0x78] sm:$0xff]
  %1040 = vmatprep.subr.mxu0 0.0
  %1041 = vmatpush1.msra.mxu0 %v1039
  %1042 = vmatprep.subr.mxu0 0.0
  %1043 = vmatpush1.msra.mxu0 %v1038
  %1044 = vmatprep.subr.mxu0 0.0
  %1045 = vmatpush1.msra.mxu0 %v1037
  %1046 = vmatprep.subr.mxu0 0.0
  %1047 = vmatpush1.msra.mxu0 %v1036
  %1048 = vmatprep.subr.mxu0 0.0
  %1049 = vmatpush1.msra.mxu0 %v1035
  %1050 = vmatprep.subr.mxu0 0.0
  %1051 = vmatpush1.msra.mxu0 %v1034
  %1052 = vmatprep.subr.mxu0 0.0
  %1053 = vmatpush1.msra.mxu0 %v1033
  %1054 = vmatprep.subr.mxu0 0.0
  %1055 = vmatpush1.msra.mxu0 %v1032
  %1056 = vmatprep.subr.mxu0 0.0
  %1057 = vmatpush1.msra.mxu0 %v1031
  %1058 = vmatprep.subr.mxu0 0.0
  %1059 = vmatpush1.msra.mxu0 %v1030
  %1060 = vmatprep.subr.mxu0 0.0
  %1061 = vmatpush1.msra.mxu0 %v1029
  %1062 = vmatprep.subr.mxu0 0.0
  %1063 = vmatpush1.msra.mxu0 %v1028
  %1064 = vmatprep.subr.mxu0 0.0
  %1065 = vmatpush1.msra.mxu0 %v1027
  %1066 = vmatprep.subr.mxu0 0.0
  %1067 = vmatpush1.msra.mxu0 %v1026
  %1068 = vmatprep.subr.mxu0 0.0
  %1069 = vmatpush1.msra.mxu0 %v1025
  %1070 = vmatprep.subr.mxu0 0.0
  %1071 = vmatpush1.msra.mxu0 %v1024
  %1072 = vmatprep.subr.mxu0 0.0
  %1073 = vmatpush2.msra.mxu0 0.0
  %1074 = vmatprep.subr.mxu0 0.0
  %1075 = vmatpush2.msra.mxu0 0.0
  %1076 = vmatprep.subr.mxu0 0.0
  %1077 = vmatpush2.msra.mxu0 0.0
  %1078 = vmatprep.subr.mxu0 0.0
  %1079 = vmatpush2.msra.mxu0 0.0
  %1080 = vmatprep.subr.mxu0 0.0
  %1081 = vmatpush2.msra.mxu0 0.0
  %1082 = vmatprep.subr.mxu0 0.0
  %1083 = vmatpush2.msra.mxu0 0.0
  %1084 = vmatprep.subr.mxu0 0.0
  %1085 = vmatpush2.msra.mxu0 0.0
  %1086 = vmatprep.subr.mxu0 0.0
  %1087 = vmatpush2.msra.mxu0 0.0
  %1088 = vmatprep.subr.mxu0 0.0
  %1089 = vmatpush2.msra.mxu0 0.0
  %1090 = vmatprep.subr.mxu0 0.0
  %1091 = vmatpush2.msra.mxu0 0.0
  %1092 = vmatprep.subr.mxu0 0.0
  %1093 = vmatpush2.msra.mxu0 0.0
  %1094 = vmatprep.subr.mxu0 0.0
  %1095 = vmatpush2.msra.mxu0 0.0
  %1096 = vmatprep.subr.mxu0 0.0
  %1097 = vmatpush2.msra.mxu0 0.0
  %1098 = vmatprep.subr.mxu0 0.0
  %1099 = vmatpush2.msra.mxu0 0.0
  %1100 = vmatprep.subr.mxu0 0.0
  %1101 = vmatpush2.msra.mxu0 0.0
  %1102 = vmatprep.subr.mxu0 0.0
  %1103 = vmatpush2.msra.mxu0 0.0
  %1104 = vmatprep.mubr.f32.mxu0 0.0
  %1105 = vmatmul.mubr.f32.gmra.mxu0 %v890
  %v1106 = vpop.f32.mrf.mxu0
  %v1107 = vadd.f32 0.0, %v1106
  %v1108 = vpop.f32.mrf.mxu0
  %1109 = vdwg.mxu0
  %1110 = vmatprep.subr.mxu0 0.0
  %1111 = vmatpush1.msra.mxu0 %v1039
  %1112 = vmatprep.subr.mxu0 0.0
  %1113 = vmatpush1.msra.mxu0 %v1038
  %1114 = vmatprep.subr.mxu0 0.0
  %1115 = vmatpush1.msra.mxu0 %v1037
  %1116 = vmatprep.subr.mxu0 0.0
  %1117 = vmatpush1.msra.mxu0 %v1036
  %1118 = vmatprep.subr.mxu0 0.0
  %1119 = vmatpush1.msra.mxu0 %v1035
  %1120 = vmatprep.subr.mxu0 0.0
  %1121 = vmatpush1.msra.mxu0 %v1034
  %1122 = vmatprep.subr.mxu0 0.0
  %1123 = vmatpush1.msra.mxu0 %v1033
  %1124 = vmatprep.subr.mxu0 0.0
  %1125 = vmatpush1.msra.mxu0 %v1032
  %1126 = vmatprep.subr.mxu0 0.0
  %1127 = vmatpush1.msra.mxu0 %v1031
  %1128 = vmatprep.subr.mxu0 0.0
  %1129 = vmatpush1.msra.mxu0 %v1030
  %1130 = vmatprep.subr.mxu0 0.0
  %1131 = vmatpush1.msra.mxu0 %v1029
  %1132 = vmatprep.subr.mxu0 0.0
  %1133 = vmatpush1.msra.mxu0 %v1028
  %1134 = vmatprep.subr.mxu0 0.0
  %1135 = vmatpush1.msra.mxu0 %v1027
  %1136 = vmatprep.subr.mxu0 0.0
  %1137 = vmatpush1.msra.mxu0 %v1026
  %1138 = vmatprep.subr.mxu0 0.0
  %1139 = vmatpush1.msra.mxu0 %v1025
  %1140 = vmatprep.subr.mxu0 0.0
  %1141 = vmatpush1.msra.mxu0 %v1024
  %1142 = vmatprep.subr.mxu0 0.0
  %1143 = vmatpush2.msra.mxu0 0.0
  %1144 = vmatprep.subr.mxu0 0.0
  %1145 = vmatpush2.msra.mxu0 0.0
  %1146 = vmatprep.subr.mxu0 0.0
  %1147 = vmatpush2.msra.mxu0 0.0
  %1148 = vmatprep.subr.mxu0 0.0
  %1149 = vmatpush2.msra.mxu0 0.0
  %1150 = vmatprep.subr.mxu0 0.0
  %1151 = vmatpush2.msra.mxu0 0.0
  %1152 = vmatprep.subr.mxu0 0.0
  %1153 = vmatpush2.msra.mxu0 0.0
  %1154 = vmatprep.subr.mxu0 0.0
  %1155 = vmatpush2.msra.mxu0 0.0
  %1156 = vmatprep.subr.mxu0 0.0
  %1157 = vmatpush2.msra.mxu0 0.0
  %1158 = vmatprep.subr.mxu0 0.0
  %1159 = vmatpush2.msra.mxu0 0.0
  %1160 = vmatprep.subr.mxu0 0.0
  %1161 = vmatpush2.msra.mxu0 0.0
  %1162 = vmatprep.subr.mxu0 0.0
  %1163 = vmatpush2.msra.mxu0 0.0
  %1164 = vmatprep.subr.mxu0 0.0
  %1165 = vmatpush2.msra.mxu0 0.0
  %1166 = vmatprep.subr.mxu0 0.0
  %1167 = vmatpush2.msra.mxu0 0.0
  %1168 = vmatprep.subr.mxu0 0.0
  %1169 = vmatpush2.msra.mxu0 0.0
  %1170 = vmatprep.subr.mxu0 0.0
  %1171 = vmatpush2.msra.mxu0 0.0
  %1172 = vmatprep.subr.mxu0 0.0
  %1173 = vmatpush2.msra.mxu0 0.0
  %1174 = vmatprep.mubr.f32.mxu0 0.0
  %1175 = vmatmul.mubr.f32.gmra.mxu0 %v1023
  %v1176 = vpop.f32.mrf.mxu0
  %v1177 = vadd.f32 0.0, %v1176
  %v1178 = vpop.f32.mrf.mxu0
  %1179 = vdwg.mxu0
  %v1180 = vmul.f32 %v1107, %v1107
  %v1181 = vsub.f32 %v1177, %v1180
  %v1182 = vmax.f32 %v1181, 0.0
  %v1183 = vld [vmem:[%s3] sm:$0x1]
  %v1184 = vadd.f32 %v1182, 1e-05
  %v1185 = vrsqrt.pop %v1184
  %v1186 = vmul.f32 %v1183, %v1185
  %v1187 = vld [vmem:[%s4] sm:$0x1]
  %v1188 = vmul.f32 %v1107, %v1186
  %v1189 = vsub.f32 %v1187, %v1188
  %v1191 = vlaneseq
  %v1192 = vshrl.u32 %v1191, 7
  %v1193 = vsub.s32 0, %v1192
  %v1194 = vrot.slane %v1186, %v1193
  %v1196 = vmul.f32 %v568, %v1194
  %v1197 = vmul.f32 %v571, %v1194
  %v1198 = vmul.f32 %v576, %v1194
  %v1199 = vmul.f32 %v579, %v1194
  %v1200 = vmul.f32 %v584, %v1194
  %v1201 = vmul.f32 %v587, %v1194
  %v1202 = vmul.f32 %v592, %v1194
  %v1203 = vmul.f32 %v595, %v1194
  %v1204 = vmul.f32 %v600, %v1194
  %v1205 = vmul.f32 %v603, %v1194
  %v1206 = vmul.f32 %v608, %v1194
  %v1207 = vmul.f32 %v611, %v1194
  %v1208 = vmul.f32 %v616, %v1194
  %v1209 = vmul.f32 %v619, %v1194
  %v1210 = vmul.f32 %v624, %v1194
  %v1211 = vmul.f32 %v627, %v1194
  %v1212 = vmul.f32 %v632, %v1194
  %v1213 = vmul.f32 %v635, %v1194
  %v1214 = vmul.f32 %v640, %v1194
  %v1215 = vmul.f32 %v643, %v1194
  %v1216 = vmul.f32 %v648, %v1194
  %v1217 = vmul.f32 %v651, %v1194
  %v1218 = vmul.f32 %v656, %v1194
  %v1219 = vmul.f32 %v659, %v1194
  %v1220 = vmul.f32 %v664, %v1194
  %v1221 = vmul.f32 %v667, %v1194
  %v1222 = vmul.f32 %v672, %v1194
  %v1223 = vmul.f32 %v675, %v1194
  %v1224 = vmul.f32 %v680, %v1194
  %v1225 = vmul.f32 %v683, %v1194
  %v1226 = vmul.f32 %v688, %v1194
  %v1227 = vmul.f32 %v691, %v1194
  %v1228 = vmul.f32 %v696, %v1194
  %v1229 = vmul.f32 %v699, %v1194
  %v1230 = vmul.f32 %v704, %v1194
  %v1231 = vmul.f32 %v707, %v1194
  %v1232 = vmul.f32 %v712, %v1194
  %v1233 = vmul.f32 %v715, %v1194
  %v1234 = vmul.f32 %v720, %v1194
  %v1235 = vmul.f32 %v723, %v1194
  %v1236 = vmul.f32 %v728, %v1194
  %v1237 = vmul.f32 %v731, %v1194
  %v1238 = vmul.f32 %v736, %v1194
  %v1239 = vmul.f32 %v739, %v1194
  %v1240 = vmul.f32 %v744, %v1194
  %v1241 = vmul.f32 %v747, %v1194
  %v1242 = vmul.f32 %v752, %v1194
  %v1243 = vmul.f32 %v755, %v1194
  %v1244 = vmul.f32 %v760, %v1194
  %v1245 = vmul.f32 %v763, %v1194
  %v1246 = vmul.f32 %v768, %v1194
  %v1247 = vmul.f32 %v771, %v1194
  %v1248 = vmul.f32 %v776, %v1194
  %v1249 = vmul.f32 %v779, %v1194
  %v1250 = vmul.f32 %v784, %v1194
  %v1251 = vmul.f32 %v787, %v1194
  %v1252 = vmul.f32 %v792, %v1194
  %v1253 = vmul.f32 %v795, %v1194
  %v1254 = vmul.f32 %v800, %v1194
  %v1255 = vmul.f32 %v803, %v1194
  %v1256 = vmul.f32 %v808, %v1194
  %v1257 = vmul.f32 %v811, %v1194
  %v1258 = vmul.f32 %v816, %v1194
  %v1259 = vmul.f32 %v819, %v1194
  %v1261 = vlaneseq
  %v1262 = vshrl.u32 %v1261, 7
  %v1263 = vsub.s32 0, %v1262
  %v1264 = vrot.slane %v1189, %v1263
  %v1266 = vadd.f32 %v1196, %v1264
  %v1267 = vadd.f32 %v1197, %v1264
  %v1268 = vadd.f32 %v1198, %v1264
  %v1269 = vadd.f32 %v1199, %v1264
  %v1270 = vadd.f32 %v1200, %v1264
  %v1271 = vadd.f32 %v1201, %v1264
  %v1272 = vadd.f32 %v1202, %v1264
  %v1273 = vadd.f32 %v1203, %v1264
  %v1274 = vadd.f32 %v1204, %v1264
  %v1275 = vadd.f32 %v1205, %v1264
  %v1276 = vadd.f32 %v1206, %v1264
  %v1277 = vadd.f32 %v1207, %v1264
  %v1278 = vadd.f32 %v1208, %v1264
  %v1279 = vadd.f32 %v1209, %v1264
  %v1280 = vadd.f32 %v1210, %v1264
  %v1281 = vadd.f32 %v1211, %v1264
  %v1282 = vadd.f32 %v1212, %v1264
  %v1283 = vadd.f32 %v1213, %v1264
  %v1284 = vadd.f32 %v1214, %v1264
  %v1285 = vadd.f32 %v1215, %v1264
  %v1286 = vadd.f32 %v1216, %v1264
  %v1287 = vadd.f32 %v1217, %v1264
  %v1288 = vadd.f32 %v1218, %v1264
  %v1289 = vadd.f32 %v1219, %v1264
  %v1290 = vadd.f32 %v1220, %v1264
  %v1291 = vadd.f32 %v1221, %v1264
  %v1292 = vadd.f32 %v1222, %v1264
  %v1293 = vadd.f32 %v1223, %v1264
  %v1294 = vadd.f32 %v1224, %v1264
  %v1295 = vadd.f32 %v1225, %v1264
  %v1296 = vadd.f32 %v1226, %v1264
  %v1297 = vadd.f32 %v1227, %v1264
  %v1298 = vadd.f32 %v1228, %v1264
  %v1299 = vadd.f32 %v1229, %v1264
  %v1300 = vadd.f32 %v1230, %v1264
  %v1301 = vadd.f32 %v1231, %v1264
  %v1302 = vadd.f32 %v1232, %v1264
  %v1303 = vadd.f32 %v1233, %v1264
  %v1304 = vadd.f32 %v1234, %v1264
  %v1305 = vadd.f32 %v1235, %v1264
  %v1306 = vadd.f32 %v1236, %v1264
  %v1307 = vadd.f32 %v1237, %v1264
  %v1308 = vadd.f32 %v1238, %v1264
  %v1309 = vadd.f32 %v1239, %v1264
  %v1310 = vadd.f32 %v1240, %v1264
  %v1311 = vadd.f32 %v1241, %v1264
  %v1312 = vadd.f32 %v1242, %v1264
  %v1313 = vadd.f32 %v1243, %v1264
  %v1314 = vadd.f32 %v1244, %v1264
  %v1315 = vadd.f32 %v1245, %v1264
  %v1316 = vadd.f32 %v1246, %v1264
  %v1317 = vadd.f32 %v1247, %v1264
  %v1318 = vadd.f32 %v1248, %v1264
  %v1319 = vadd.f32 %v1249, %v1264
  %v1320 = vadd.f32 %v1250, %v1264
  %v1321 = vadd.f32 %v1251, %v1264
  %v1322 = vadd.f32 %v1252, %v1264
  %v1323 = vadd.f32 %v1253, %v1264
  %v1324 = vadd.f32 %v1254, %v1264
  %v1325 = vadd.f32 %v1255, %v1264
  %v1326 = vadd.f32 %v1256, %v1264
  %v1327 = vadd.f32 %v1257, %v1264
  %v1328 = vadd.f32 %v1258, %v1264
  %v1329 = vadd.f32 %v1259, %v1264
  %v1330 = vmax.f32 %v1266, 0.0
  %v1331 = vmax.f32 %v1267, 0.0
  %v1332 = vmax.f32 %v1268, 0.0
  %v1333 = vmax.f32 %v1269, 0.0
  %v1334 = vmax.f32 %v1270, 0.0
  %v1335 = vmax.f32 %v1271, 0.0
  %v1336 = vmax.f32 %v1272, 0.0
  %v1337 = vmax.f32 %v1273, 0.0
  %v1338 = vmax.f32 %v1274, 0.0
  %v1339 = vmax.f32 %v1275, 0.0
  %v1340 = vmax.f32 %v1276, 0.0
  %v1341 = vmax.f32 %v1277, 0.0
  %v1342 = vmax.f32 %v1278, 0.0
  %v1343 = vmax.f32 %v1279, 0.0
  %v1344 = vmax.f32 %v1280, 0.0
  %v1345 = vmax.f32 %v1281, 0.0
  %v1346 = vmax.f32 %v1282, 0.0
  %v1347 = vmax.f32 %v1283, 0.0
  %v1348 = vmax.f32 %v1284, 0.0
  %v1349 = vmax.f32 %v1285, 0.0
  %v1350 = vmax.f32 %v1286, 0.0
  %v1351 = vmax.f32 %v1287, 0.0
  %v1352 = vmax.f32 %v1288, 0.0
  %v1353 = vmax.f32 %v1289, 0.0
  %v1354 = vmax.f32 %v1290, 0.0
  %v1355 = vmax.f32 %v1291, 0.0
  %v1356 = vmax.f32 %v1292, 0.0
  %v1357 = vmax.f32 %v1293, 0.0
  %v1358 = vmax.f32 %v1294, 0.0
  %v1359 = vmax.f32 %v1295, 0.0
  %v1360 = vmax.f32 %v1296, 0.0
  %v1361 = vmax.f32 %v1297, 0.0
  %v1362 = vmax.f32 %v1298, 0.0
  %v1363 = vmax.f32 %v1299, 0.0
  %v1364 = vmax.f32 %v1300, 0.0
  %v1365 = vmax.f32 %v1301, 0.0
  %v1366 = vmax.f32 %v1302, 0.0
  %v1367 = vmax.f32 %v1303, 0.0
  %v1368 = vmax.f32 %v1304, 0.0
  %v1369 = vmax.f32 %v1305, 0.0
  %v1370 = vmax.f32 %v1306, 0.0
  %v1371 = vmax.f32 %v1307, 0.0
  %v1372 = vmax.f32 %v1308, 0.0
  %v1373 = vmax.f32 %v1309, 0.0
  %v1374 = vmax.f32 %v1310, 0.0
  %v1375 = vmax.f32 %v1311, 0.0
  %v1376 = vmax.f32 %v1312, 0.0
  %v1377 = vmax.f32 %v1313, 0.0
  %v1378 = vmax.f32 %v1314, 0.0
  %v1379 = vmax.f32 %v1315, 0.0
  %v1380 = vmax.f32 %v1316, 0.0
  %v1381 = vmax.f32 %v1317, 0.0
  %v1382 = vmax.f32 %v1318, 0.0
  %v1383 = vmax.f32 %v1319, 0.0
  %v1384 = vmax.f32 %v1320, 0.0
  %v1385 = vmax.f32 %v1321, 0.0
  %v1386 = vmax.f32 %v1322, 0.0
  %v1387 = vmax.f32 %v1323, 0.0
  %v1388 = vmax.f32 %v1324, 0.0
  %v1389 = vmax.f32 %v1325, 0.0
  %v1390 = vmax.f32 %v1326, 0.0
  %v1391 = vmax.f32 %v1327, 0.0
  %v1392 = vmax.f32 %v1328, 0.0
  %v1393 = vmax.f32 %v1329, 0.0
  %v1394 = vpack.c.bf16 %v1331, %v1330
  %v1395 = vpack.c.bf16 %v1333, %v1332
  %v1396 = vpack.c.bf16 %v1335, %v1334
  %v1397 = vpack.c.bf16 %v1337, %v1336
  %v1398 = vpack.c.bf16 %v1339, %v1338
  %v1399 = vpack.c.bf16 %v1341, %v1340
  %v1400 = vpack.c.bf16 %v1343, %v1342
  %v1401 = vpack.c.bf16 %v1345, %v1344
  %v1402 = vpack.c.bf16 %v1347, %v1346
  %v1403 = vpack.c.bf16 %v1349, %v1348
  %v1404 = vpack.c.bf16 %v1351, %v1350
  %v1405 = vpack.c.bf16 %v1353, %v1352
  %v1406 = vpack.c.bf16 %v1355, %v1354
  %v1407 = vpack.c.bf16 %v1357, %v1356
  %v1408 = vpack.c.bf16 %v1359, %v1358
  %v1409 = vpack.c.bf16 %v1361, %v1360
  %v1410 = vpack.c.bf16 %v1363, %v1362
  %v1411 = vpack.c.bf16 %v1365, %v1364
  %v1412 = vpack.c.bf16 %v1367, %v1366
  %v1413 = vpack.c.bf16 %v1369, %v1368
  %v1414 = vpack.c.bf16 %v1371, %v1370
  %v1415 = vpack.c.bf16 %v1373, %v1372
  %v1416 = vpack.c.bf16 %v1375, %v1374
  %v1417 = vpack.c.bf16 %v1377, %v1376
  %v1418 = vpack.c.bf16 %v1379, %v1378
  %v1419 = vpack.c.bf16 %v1381, %v1380
  %v1420 = vpack.c.bf16 %v1383, %v1382
  %v1421 = vpack.c.bf16 %v1385, %v1384
  %v1422 = vpack.c.bf16 %v1387, %v1386
  %v1423 = vpack.c.bf16 %v1389, %v1388
  %v1424 = vpack.c.bf16 %v1391, %v1390
  %v1425 = vpack.c.bf16 %v1393, %v1392
  %v1458 = vunpack.c.l.b16 %v1394
  %v1459 = vunpack.c.h.b16 %v1394
  %v1460 = vunpack.c.l.b16 %v1395
  %v1461 = vunpack.c.h.b16 %v1395
  %v1462 = vunpack.c.l.b16 %v1396
  %v1463 = vunpack.c.h.b16 %v1396
  %v1464 = vunpack.c.l.b16 %v1397
  %v1465 = vunpack.c.h.b16 %v1397
  %v1466 = vunpack.c.l.b16 %v1398
  %v1467 = vunpack.c.h.b16 %v1398
  %v1468 = vunpack.c.l.b16 %v1399
  %v1469 = vunpack.c.h.b16 %v1399
  %v1470 = vunpack.c.l.b16 %v1400
  %v1471 = vunpack.c.h.b16 %v1400
  %v1472 = vunpack.c.l.b16 %v1401
  %v1473 = vunpack.c.h.b16 %v1401
  %v1474 = vunpack.c.l.b16 %v1402
  %v1475 = vunpack.c.h.b16 %v1402
  %v1476 = vunpack.c.l.b16 %v1403
  %v1477 = vunpack.c.h.b16 %v1403
  %v1478 = vunpack.c.l.b16 %v1404
  %v1479 = vunpack.c.h.b16 %v1404
  %v1480 = vunpack.c.l.b16 %v1405
  %v1481 = vunpack.c.h.b16 %v1405
  %v1482 = vunpack.c.l.b16 %v1406
  %v1483 = vunpack.c.h.b16 %v1406
  %v1484 = vunpack.c.l.b16 %v1407
  %v1485 = vunpack.c.h.b16 %v1407
  %v1486 = vunpack.c.l.b16 %v1408
  %v1487 = vunpack.c.h.b16 %v1408
  %v1488 = vunpack.c.l.b16 %v1409
  %v1489 = vunpack.c.h.b16 %v1409
  %v1490 = vunpack.c.l.b16 %v1410
  %v1491 = vunpack.c.h.b16 %v1410
  %v1492 = vunpack.c.l.b16 %v1411
  %v1493 = vunpack.c.h.b16 %v1411
  %v1494 = vunpack.c.l.b16 %v1412
  %v1495 = vunpack.c.h.b16 %v1412
  %v1496 = vunpack.c.l.b16 %v1413
  %v1497 = vunpack.c.h.b16 %v1413
  %v1498 = vunpack.c.l.b16 %v1414
  %v1499 = vunpack.c.h.b16 %v1414
  %v1500 = vunpack.c.l.b16 %v1415
  %v1501 = vunpack.c.h.b16 %v1415
  %v1502 = vunpack.c.l.b16 %v1416
  %v1503 = vunpack.c.h.b16 %v1416
  %v1504 = vunpack.c.l.b16 %v1417
  %v1505 = vunpack.c.h.b16 %v1417
  %v1506 = vunpack.c.l.b16 %v1418
  %v1507 = vunpack.c.h.b16 %v1418
  %v1508 = vunpack.c.l.b16 %v1419
  %v1509 = vunpack.c.h.b16 %v1419
  %v1510 = vunpack.c.l.b16 %v1420
  %v1511 = vunpack.c.h.b16 %v1420
  %v1512 = vunpack.c.l.b16 %v1421
  %v1513 = vunpack.c.h.b16 %v1421
  %v1514 = vunpack.c.l.b16 %v1422
  %v1515 = vunpack.c.h.b16 %v1422
  %v1516 = vunpack.c.l.b16 %v1423
  %v1517 = vunpack.c.h.b16 %v1423
  %v1518 = vunpack.c.l.b16 %v1424
  %v1519 = vunpack.c.h.b16 %v1424
  %v1520 = vunpack.c.l.b16 %v1425
  %v1521 = vunpack.c.h.b16 %v1425
  %v1522 = vpack.c.b16 %v1458, %v1458
  %v1523 = vpack.c.b16 %v1459, %v1459
  %v1524 = vpack.c.b16 %v1460, %v1460
  %v1525 = vpack.c.b16 %v1461, %v1461
  %v1526 = vpack.c.b16 %v1462, %v1462
  %v1527 = vpack.c.b16 %v1463, %v1463
  %v1528 = vpack.c.b16 %v1464, %v1464
  %v1529 = vpack.c.b16 %v1465, %v1465
  %v1530 = vpack.c.b16 %v1466, %v1466
  %v1531 = vpack.c.b16 %v1467, %v1467
  %v1532 = vpack.c.b16 %v1468, %v1468
  %v1533 = vpack.c.b16 %v1469, %v1469
  %v1534 = vpack.c.b16 %v1470, %v1470
  %v1535 = vpack.c.b16 %v1471, %v1471
  %v1536 = vpack.c.b16 %v1472, %v1472
  %v1537 = vpack.c.b16 %v1473, %v1473
  %v1538 = vpack.c.b16 %v1474, %v1474
  %v1539 = vpack.c.b16 %v1475, %v1475
  %v1540 = vpack.c.b16 %v1476, %v1476
  %v1541 = vpack.c.b16 %v1477, %v1477
  %v1542 = vpack.c.b16 %v1478, %v1478
  %v1543 = vpack.c.b16 %v1479, %v1479
  %v1544 = vpack.c.b16 %v1480, %v1480
  %v1545 = vpack.c.b16 %v1481, %v1481
  %v1546 = vpack.c.b16 %v1482, %v1482
  %v1547 = vpack.c.b16 %v1483, %v1483
  %v1548 = vpack.c.b16 %v1484, %v1484
  %v1549 = vpack.c.b16 %v1485, %v1485
  %v1550 = vpack.c.b16 %v1486, %v1486
  %v1551 = vpack.c.b16 %v1487, %v1487
  %v1552 = vpack.c.b16 %v1488, %v1488
  %v1553 = vpack.c.b16 %v1489, %v1489
  %v1554 = vpack.c.b16 %v1490, %v1490
  %v1555 = vpack.c.b16 %v1491, %v1491
  %v1556 = vpack.c.b16 %v1492, %v1492
  %v1557 = vpack.c.b16 %v1493, %v1493
  %v1558 = vpack.c.b16 %v1494, %v1494
  %v1559 = vpack.c.b16 %v1495, %v1495
  %v1560 = vpack.c.b16 %v1496, %v1496
  %v1561 = vpack.c.b16 %v1497, %v1497
  %v1562 = vpack.c.b16 %v1498, %v1498
  %v1563 = vpack.c.b16 %v1499, %v1499
  %v1564 = vpack.c.b16 %v1500, %v1500
  %v1565 = vpack.c.b16 %v1501, %v1501
  %v1566 = vpack.c.b16 %v1502, %v1502
  %v1567 = vpack.c.b16 %v1503, %v1503
  %v1568 = vpack.c.b16 %v1504, %v1504
  %v1569 = vpack.c.b16 %v1505, %v1505
  %v1570 = vpack.c.b16 %v1506, %v1506
  %v1571 = vpack.c.b16 %v1507, %v1507
  %v1572 = vpack.c.b16 %v1508, %v1508
  %v1573 = vpack.c.b16 %v1509, %v1509
  %v1574 = vpack.c.b16 %v1510, %v1510
  %v1575 = vpack.c.b16 %v1511, %v1511
  %v1576 = vpack.c.b16 %v1512, %v1512
  %v1577 = vpack.c.b16 %v1513, %v1513
  %v1578 = vpack.c.b16 %v1514, %v1514
  %v1579 = vpack.c.b16 %v1515, %v1515
  %v1580 = vpack.c.b16 %v1516, %v1516
  %v1581 = vpack.c.b16 %v1517, %v1517
  %v1582 = vpack.c.b16 %v1518, %v1518
  %v1583 = vpack.c.b16 %v1519, %v1519
  %v1584 = vpack.c.b16 %v1520, %v1520
  %v1585 = vpack.c.b16 %v1521, %v1521
  %1650 = vst [vmem:[%s5] sm:$0xf] %v1522
  %1651 = vst [vmem:[%s5 + $0x4] sm:$0xf] %v1523
  %1652 = vst [vmem:[%s5 + $0x8] sm:$0xf] %v1524
  %1653 = vst [vmem:[%s5 + $0xc] sm:$0xf] %v1525
  %1654 = vst [vmem:[%s5 + $0x10] sm:$0xf] %v1526
  %1655 = vst [vmem:[%s5 + $0x14] sm:$0xf] %v1527
  %1656 = vst [vmem:[%s5 + $0x18] sm:$0xf] %v1528
  %1657 = vst [vmem:[%s5 + $0x1c] sm:$0xf] %v1529
  %1658 = vst [vmem:[%s5 + $0x20] sm:$0xf] %v1530
  %1659 = vst [vmem:[%s5 + $0x24] sm:$0xf] %v1531
  %1660 = vst [vmem:[%s5 + $0x28] sm:$0xf] %v1532
  %1661 = vst [vmem:[%s5 + $0x2c] sm:$0xf] %v1533
  %1662 = vst [vmem:[%s5 + $0x30] sm:$0xf] %v1534
  %1663 = vst [vmem:[%s5 + $0x34] sm:$0xf] %v1535
  %1664 = vst [vmem:[%s5 + $0x38] sm:$0xf] %v1536
  %1665 = vst [vmem:[%s5 + $0x3c] sm:$0xf] %v1537
  %1666 = vst [vmem:[%s5 + $0x40] sm:$0xf] %v1538
  %1667 = vst [vmem:[%s5 + $0x44] sm:$0xf] %v1539
  %1668 = vst [vmem:[%s5 + $0x48] sm:$0xf] %v1540
  %1669 = vst [vmem:[%s5 + $0x4c] sm:$0xf] %v1541
  %1670 = vst [vmem:[%s5 + $0x50] sm:$0xf] %v1542
  %1671 = vst [vmem:[%s5 + $0x54] sm:$0xf] %v1543
  %1672 = vst [vmem:[%s5 + $0x58] sm:$0xf] %v1544
  %1673 = vst [vmem:[%s5 + $0x5c] sm:$0xf] %v1545
  %1674 = vst [vmem:[%s5 + $0x60] sm:$0xf] %v1546
  %1675 = vst [vmem:[%s5 + $0x64] sm:$0xf] %v1547
  %1676 = vst [vmem:[%s5 + $0x68] sm:$0xf] %v1548
  %1677 = vst [vmem:[%s5 + $0x6c] sm:$0xf] %v1549
  %1678 = vst [vmem:[%s5 + $0x70] sm:$0xf] %v1550
  %1679 = vst [vmem:[%s5 + $0x74] sm:$0xf] %v1551
  %1680 = vst [vmem:[%s5 + $0x78] sm:$0xf] %v1552
  %1681 = vst [vmem:[%s5 + $0x7c] sm:$0xf] %v1553
  %1682 = vst [vmem:[%s5 + $0x80] sm:$0xf] %v1554
  %1683 = vst [vmem:[%s5 + $0x84] sm:$0xf] %v1555
  %1684 = vst [vmem:[%s5 + $0x88] sm:$0xf] %v1556
  %1685 = vst [vmem:[%s5 + $0x8c] sm:$0xf] %v1557
  %1686 = vst [vmem:[%s5 + $0x90] sm:$0xf] %v1558
  %1687 = vst [vmem:[%s5 + $0x94] sm:$0xf] %v1559
  %1688 = vst [vmem:[%s5 + $0x98] sm:$0xf] %v1560
  %1689 = vst [vmem:[%s5 + $0x9c] sm:$0xf] %v1561
  %1690 = vst [vmem:[%s5 + $0xa0] sm:$0xf] %v1562
  %1691 = vst [vmem:[%s5 + $0xa4] sm:$0xf] %v1563
  %1692 = vst [vmem:[%s5 + $0xa8] sm:$0xf] %v1564
  %1693 = vst [vmem:[%s5 + $0xac] sm:$0xf] %v1565
  %1694 = vst [vmem:[%s5 + $0xb0] sm:$0xf] %v1566
  %1695 = vst [vmem:[%s5 + $0xb4] sm:$0xf] %v1567
  %1696 = vst [vmem:[%s5 + $0xb8] sm:$0xf] %v1568
  %1697 = vst [vmem:[%s5 + $0xbc] sm:$0xf] %v1569
  %1698 = vst [vmem:[%s5 + $0xc0] sm:$0xf] %v1570
  %1699 = vst [vmem:[%s5 + $0xc4] sm:$0xf] %v1571
  %1700 = vst [vmem:[%s5 + $0xc8] sm:$0xf] %v1572
  %1701 = vst [vmem:[%s5 + $0xcc] sm:$0xf] %v1573
  %1702 = vst [vmem:[%s5 + $0xd0] sm:$0xf] %v1574
  %1703 = vst [vmem:[%s5 + $0xd4] sm:$0xf] %v1575
  %1704 = vst [vmem:[%s5 + $0xd8] sm:$0xf] %v1576
  %1705 = vst [vmem:[%s5 + $0xdc] sm:$0xf] %v1577
  %1706 = vst [vmem:[%s5 + $0xe0] sm:$0xf] %v1578
  %1707 = vst [vmem:[%s5 + $0xe4] sm:$0xf] %v1579
  %1708 = vst [vmem:[%s5 + $0xe8] sm:$0xf] %v1580
  %1709 = vst [vmem:[%s5 + $0xec] sm:$0xf] %v1581
  %1710 = vst [vmem:[%s5 + $0xf0] sm:$0xf] %v1582
  %1711 = vst [vmem:[%s5 + $0xf4] sm:$0xf] %v1583
  %1712 = vst [vmem:[%s5 + $0xf8] sm:$0xf] %v1584
  %1713 = vst [vmem:[%s5 + $0xfc] sm:$0xf] %v1585
  // Predicated region
  $region22: #{a_call__.20} parent=0 // pred_check
    _
  $region23: #{a_call__.20} parent=0 // pred_check_branch
    %1715 = sbr.rel (0) target = $region25
  $region24: #{a_call__.20} parent=0 // pred_region
    _
  $region25: #{a_call__.20} parent=0 // pred_fallthru
    _
  // Predicated region
  $region26: #{a_call__.20} parent=0 // pred_check
    _
  $region27: #{a_call__.20} parent=0 // pred_check_branch
    %1717 = sbr.rel (0) target = $region29
  $region28: #{a_call__.20} parent=0 // pred_region
    _
  $region29: #{a_call__.20} parent=0 // pred_fallthru
    _

// kernel: a_call__.21
$region0: #{a_call__.21}
  #allocation0 [shape = 'u32[]', space=smem, size = 0x4, offset = 0x4, fixed_abs, tag = 'smem constant byte address 0x4 - core index']
  #allocation1 [shape = 'u32[144,128]{1,0:T(1,128)}', space=vmem, size = 0x12000, scoped, tag = 'internal scratch']
  %s0 = inlined_call_operand.vmem [shape: bf16[2048,128], index: 0, kind: input, shape index: {}]
  %s1 = inlined_call_operand.vmem [shape: bf16[128,128], index: 1, kind: input, shape index: {}]
  %s2 = inlined_call_operand.vmem [shape: bf16[2048,128], index: 2, kind: output, shape index: {}]
  %s3 = sld [smem:[#allocation0]]
  $region41: #{a_call__.21} parent=0
    _
  %s5 = ssub.s32 1, %s3
  %s6 = scalar_select 0, %s5, %s3
  loop: start=0, step=1, limit=6
  $region2: #{a_call__.21} parent=0 // loop_pre_header
    _
  $region3: #{a_call__.21} parent=0 // loop_header
    %s8 = sphi 0, %s12
    %p9 = scmp.ge.s32.totalorder %s8, 6
    %s18 = sphi 0, %s20
    %s21 = sphi 0, %s18
    %s22 = sphi 0, %s21
    %s38 = sphi 0, %s22
    %s42 = sphi 0, %s42
    %s44 = sphi 0, %s42
    %s45 = sphi 0, %s44
    %s59 = sphi 0, %s45
    %s65 = sphi 0, %s67
    %s68 = sphi 0, %s65
    %s69 = sphi 0, %s68
    %s85 = sphi 0, %s69
  $region4: #{a_call__.21} parent=0 // loop_header_branch
    %11 = sbr.rel (%p9) target = $region8
  $region5: #{a_call__.21} parent=0 // loop_body
    %s13 = ssub.s32 %s8, 1
    %s14 = ssub.s32 %s8, 2
    %s15 = sadd.s32 %s8, 1
    %s16 = ssub.s32 %s8, %s15
    %p17 = scmp.eq.s32.totalorder %s16, 0
    %s19 = sadd.s32 %s18, 1
    %s20 = scalar_select %p17, %s18, %s19
    %p23 = pneg %p17
    %p24 = scmp.eq.s32.totalorder %s8, 3
    %p25 = por %p23, %p24
    %p26 = scmp.ne.s32.totalorder %s18, %s21
    %p27 = scmp.eq.s32.totalorder %s8, 0
    %p28 = por %p26, %p27
    %p29 = scmp.ne.s32.totalorder %s18, %s21
    %p30 = scmp.eq.s32.totalorder %s13, 3
    %p31 = por %p29, %p30
    %p32 = scmp.ne.s32.totalorder %s21, %s22
    %p33 = scmp.eq.s32.totalorder %s13, 0
    %p34 = por %p32, %p33
    %p35 = scmp.ne.s32.totalorder %s21, %s22
    %p36 = scmp.eq.s32.totalorder %s14, 3
    %p37 = por %p35, %p36
    %p39 = scmp.ne.s32.totalorder %s22, %s38
    %p40 = scmp.eq.s32.totalorder %s14, 0
    %p41 = por %p39, %p40
    %s43 = sadd.s32 %s42, 1
    %p46 = scmp.eq.s32.totalorder %s8, 3
    %p47 = scmp.ne.s32.totalorder %s42, %s44
    %p48 = scmp.eq.s32.totalorder %s8, 0
    %p49 = por %p47, %p48
    %p50 = scmp.ne.s32.totalorder %s42, %s44
    %p51 = scmp.eq.s32.totalorder %s13, 3
    %p52 = por %p50, %p51
    %p53 = scmp.ne.s32.totalorder %s44, %s45
    %p54 = scmp.eq.s32.totalorder %s13, 0
    %p55 = por %p53, %p54
    %p56 = scmp.ne.s32.totalorder %s44, %s45
    %p57 = scmp.eq.s32.totalorder %s14, 3
    %p58 = por %p56, %p57
    %p60 = scmp.ne.s32.totalorder %s45, %s59
    %p61 = scmp.eq.s32.totalorder %s14, 0
    %p62 = por %p60, %p61
    %s63 = ssub.s32 %s8, %s15
    %p64 = scmp.eq.s32.totalorder %s63, 0
    %s66 = sadd.s32 %s65, 1
    %s67 = scalar_select %p64, %s65, %s66
    %p70 = pneg %p64
    %p71 = scmp.eq.s32.totalorder %s8, 3
    %p72 = por %p70, %p71
    %p73 = scmp.ne.s32.totalorder %s65, %s68
    %p74 = scmp.eq.s32.totalorder %s8, 0
    %p75 = por %p73, %p74
    %p76 = scmp.ne.s32.totalorder %s65, %s68
    %p77 = scmp.eq.s32.totalorder %s13, 3
    %p78 = por %p76, %p77
    %p79 = scmp.ne.s32.totalorder %s68, %s69
    %p80 = scmp.eq.s32.totalorder %s13, 0
    %p81 = por %p79, %p80
    %p82 = scmp.ne.s32.totalorder %s68, %s69
    %p83 = scmp.eq.s32.totalorder %s14, 3
    %p84 = por %p82, %p83
    %p86 = scmp.ne.s32.totalorder %s69, %s85
    %p87 = scmp.eq.s32.totalorder %s14, 0
    %p88 = por %p86, %p87
    %p89 = scmp.le.s32.totalorder 1, %s8
    %p90 = scmp.lt.s32.totalorder %s8, 5
    %p91 = pnand %p89, %p90
    %p92 = pneg %p91
    // Predicated region
    $region9: #{a_call__.21} parent=5 // pred_check
      _
    $region10: #{a_call__.21} parent=5 // pred_check_branch
      %94 = sbr.rel (%p91) target = $region12
    $region11: #{a_call__.21} parent=5 // pred_region
      %s95 = ssub.s32 %s8, 1
      // Predicated region
      $region13: #{a_call__.21} parent=11 // pred_check
        %p96 = pneg %p55
      $region14: #{a_call__.21} parent=11 // pred_check_branch
        %98 = sbr.rel (%p96) target = $region16
      $region15: #{a_call__.21} parent=11 // pred_region
        _
      $region16: #{a_call__.21} parent=11 // pred_fallthru
        _
    $region12: #{a_call__.21} parent=5 // pred_fallthru
      _
    %p99 = scmp.lt.s32.totalorder %s8, 4
    // Predicated region
    $region17: #{a_call__.21} parent=5 // pred_check
      %p100 = pneg %p99
    $region18: #{a_call__.21} parent=5 // pred_check_branch
      %102 = sbr.rel (%p100) target = $region20
    $region19: #{a_call__.21} parent=5 // pred_region
      // Predicated region
      $region21: #{a_call__.21} parent=19 // pred_check
        %p103 = pneg %p28
      $region22: #{a_call__.21} parent=19 // pred_check_branch
        %105 = sbr.rel (%p103) target = $region24
      $region23: #{a_call__.21} parent=19 // pred_region
        %s106 = smul.u32 64, %s8
        %p107 = scmp.lt.s32.totalorder %s106, 255
        %s108 = scalar_select %p107, %s106, 255
        %s109 = smul.addr %s108, 4
        %s110 = scalar_lea.vmem %s0, %s109
        %s111 = smul.u32 64, %s8
      $region24: #{a_call__.21} parent=19 // pred_fallthru
        _
    $region20: #{a_call__.21} parent=5 // pred_fallthru
      _
    %p112 = scmp.le.s32.totalorder 1, %s8
    %p113 = scmp.lt.s32.totalorder %s8, 5
    %p114 = pnand %p112, %p113
    %p115 = pneg %p114
    // Predicated region
    $region25: #{a_call__.21} parent=5 // pred_check
      _
    $region26: #{a_call__.21} parent=5 // pred_check_branch
      %117 = sbr.rel (%p114) target = $region28
    $region27: #{a_call__.21} parent=5 // pred_region
      %s118 = ssub.s32 %s8, 1
      %s119 = smul.u32 64, %s13
      %p120 = scmp.lt.s32.totalorder %s119, 255
      %s121 = scalar_select %p120, %s119, 255
      %s122 = smul.addr %s121, 4
      %s123 = scalar_lea.vmem %s0, %s122
      %p124 = pneg %p34
      %p125 = pneg %p31
      %p126 = pneg %p55
      %p127 = pneg %p52
      %p128 = pneg %p81
      %p129 = pneg %p78
      %s130 = smul.u32 64, %s13
      %p131 = scmp.lt.s32.totalorder %s130, 255
      %s132 = scalar_select %p131, %s130, 255
      %s133 = smul.addr %s132, 4
      %s134 = scalar_lea.vmem %s2, %s133
      %s135 = smul.u32 64, %s13
      %p136 = scmp.lt.s32.totalorder %s135, 255
      %s137 = scalar_select %p136, %s135, 255
      %s138 = smul.addr %s137, 4
      %s139 = scalar_lea.vmem %s0, %s138
      %s140 = smul.u32 64, %s13
      %s141 = smul.u32 64, %s13
      %p142 = scmp.lt.s32.totalorder %s141, 255
      %s143 = scalar_select %p142, %s141, 255
      %s144 = smul.addr %s143, 4
      %s145 = scalar_lea.vmem %s2, %s144
      %s146 = smul.u32 64, %s13
      %v148 = vld [vmem:[%s139] sm:$0xf]
      %v149 = vld [vmem:[%s139 + $0x4] sm:$0xf]
      %v150 = vld [vmem:[%s139 + $0x8] sm:$0xf]
      %v151 = vld [vmem:[%s139 + $0xc] sm:$0xf]
      %v152 = vld [vmem:[%s139 + $0x10] sm:$0xf]
      %v153 = vld [vmem:[%s139 + $0x14] sm:$0xf]
      %v154 = vld [vmem:[%s139 + $0x18] sm:$0xf]
      %v155 = vld [vmem:[%s139 + $0x1c] sm:$0xf]
      %v156 = vld [vmem:[%s139 + $0x20] sm:$0xf]
      %v157 = vld [vmem:[%s139 + $0x24] sm:$0xf]
      %v158 = vld [vmem:[%s139 + $0x28] sm:$0xf]
      %v159 = vld [vmem:[%s139 + $0x2c] sm:$0xf]
      %v160 = vld [vmem:[%s139 + $0x30] sm:$0xf]
      %v161 = vld [vmem:[%s139 + $0x34] sm:$0xf]
      %v162 = vld [vmem:[%s139 + $0x38] sm:$0xf]
      %v163 = vld [vmem:[%s139 + $0x3c] sm:$0xf]
      %v164 = vld [vmem:[%s139 + $0x40] sm:$0xf]
      %v165 = vld [vmem:[%s139 + $0x44] sm:$0xf]
      %v166 = vld [vmem:[%s139 + $0x48] sm:$0xf]
      %v167 = vld [vmem:[%s139 + $0x4c] sm:$0xf]
      %v168 = vld [vmem:[%s139 + $0x50] sm:$0xf]
      %v169 = vld [vmem:[%s139 + $0x54] sm:$0xf]
      %v170 = vld [vmem:[%s139 + $0x58] sm:$0xf]
      %v171 = vld [vmem:[%s139 + $0x5c] sm:$0xf]
      %v172 = vld [vmem:[%s139 + $0x60] sm:$0xf]
      %v173 = vld [vmem:[%s139 + $0x64] sm:$0xf]
      %v174 = vld [vmem:[%s139 + $0x68] sm:$0xf]
      %v175 = vld [vmem:[%s139 + $0x6c] sm:$0xf]
      %v176 = vld [vmem:[%s139 + $0x70] sm:$0xf]
      %v177 = vld [vmem:[%s139 + $0x74] sm:$0xf]
      %v178 = vld [vmem:[%s139 + $0x78] sm:$0xf]
      %v179 = vld [vmem:[%s139 + $0x7c] sm:$0xf]
      %v180 = vld [vmem:[%s139 + $0x80] sm:$0xf]
      %v181 = vld [vmem:[%s139 + $0x84] sm:$0xf]
      %v182 = vld [vmem:[%s139 + $0x88] sm:$0xf]
      %v183 = vld [vmem:[%s139 + $0x8c] sm:$0xf]
      %v184 = vld [vmem:[%s139 + $0x90] sm:$0xf]
      %v185 = vld [vmem:[%s139 + $0x94] sm:$0xf]
      %v186 = vld [vmem:[%s139 + $0x98] sm:$0xf]
      %v187 = vld [vmem:[%s139 + $0x9c] sm:$0xf]
      %v188 = vld [vmem:[%s139 + $0xa0] sm:$0xf]
      %v189 = vld [vmem:[%s139 + $0xa4] sm:$0xf]
      %v190 = vld [vmem:[%s139 + $0xa8] sm:$0xf]
      %v191 = vld [vmem:[%s139 + $0xac] sm:$0xf]
      %v192 = vld [vmem:[%s139 + $0xb0] sm:$0xf]
      %v193 = vld [vmem:[%s139 + $0xb4] sm:$0xf]
      %v194 = vld [vmem:[%s139 + $0xb8] sm:$0xf]
      %v195 = vld [vmem:[%s139 + $0xbc] sm:$0xf]
      %v196 = vld [vmem:[%s139 + $0xc0] sm:$0xf]
      %v197 = vld [vmem:[%s139 + $0xc4] sm:$0xf]
      %v198 = vld [vmem:[%s139 + $0xc8] sm:$0xf]
      %v199 = vld [vmem:[%s139 + $0xcc] sm:$0xf]
      %v200 = vld [vmem:[%s139 + $0xd0] sm:$0xf]
      %v201 = vld [vmem:[%s139 + $0xd4] sm:$0xf]
      %v202 = vld [vmem:[%s139 + $0xd8] sm:$0xf]
      %v203 = vld [vmem:[%s139 + $0xdc] sm:$0xf]
      %v204 = vld [vmem:[%s139 + $0xe0] sm:$0xf]
      %v205 = vld [vmem:[%s139 + $0xe4] sm:$0xf]
      %v206 = vld [vmem:[%s139 + $0xe8] sm:$0xf]
      %v207 = vld [vmem:[%s139 + $0xec] sm:$0xf]
      %v208 = vld [vmem:[%s139 + $0xf0] sm:$0xf]
      %v209 = vld [vmem:[%s139 + $0xf4] sm:$0xf]
      %v210 = vld [vmem:[%s139 + $0xf8] sm:$0xf]
      %v211 = vld [vmem:[%s139 + $0xfc] sm:$0xf]
      %v212 = vld [vmem:[%s1] sm:$0xf]
      %v213 = vld [vmem:[%s1 + $0x4] sm:$0xf]
      %v214 = vld [vmem:[%s1 + $0x8] sm:$0xf]
      %v215 = vld [vmem:[%s1 + $0xc] sm:$0xf]
      %v216 = vld [vmem:[%s1 + $0x10] sm:$0xf]
      %v217 = vld [vmem:[%s1 + $0x14] sm:$0xf]
      %v218 = vld [vmem:[%s1 + $0x18] sm:$0xf]
      %v219 = vld [vmem:[%s1 + $0x1c] sm:$0xf]
      %v220 = vld [vmem:[%s1 + $0x20] sm:$0xf]
      %v221 = vld [vmem:[%s1 + $0x24] sm:$0xf]
      %v222 = vld [vmem:[%s1 + $0x28] sm:$0xf]
      %v223 = vld [vmem:[%s1 + $0x2c] sm:$0xf]
      %v224 = vld [vmem:[%s1 + $0x30] sm:$0xf]
      %v225 = vld [vmem:[%s1 + $0x34] sm:$0xf]
      %v226 = vld [vmem:[%s1 + $0x38] sm:$0xf]
      %v227 = vld [vmem:[%s1 + $0x3c] sm:$0xf]
      %v292 = vunpack.c.l.b16 %v148
      %v293 = vunpack.c.l.b16 %v149
      %v294 = vunpack.c.l.b16 %v150
      %v295 = vunpack.c.l.b16 %v151
      %v296 = vunpack.c.l.b16 %v152
      %v297 = vunpack.c.l.b16 %v153
      %v298 = vunpack.c.l.b16 %v154
      %v299 = vunpack.c.l.b16 %v155
      %v300 = vunpack.c.l.b16 %v156
      %v301 = vunpack.c.l.b16 %v157
      %v302 = vunpack.c.l.b16 %v158
      %v303 = vunpack.c.l.b16 %v159
      %v304 = vunpack.c.l.b16 %v160
      %v305 = vunpack.c.l.b16 %v161
      %v306 = vunpack.c.l.b16 %v162
      %v307 = vunpack.c.l.b16 %v163
      %v308 = vunpack.c.l.b16 %v164
      %v309 = vunpack.c.l.b16 %v165
      %v310 = vunpack.c.l.b16 %v166
      %v311 = vunpack.c.l.b16 %v167
      %v312 = vunpack.c.l.b16 %v168
      %v313 = vunpack.c.l.b16 %v169
      %v314 = vunpack.c.l.b16 %v170
      %v315 = vunpack.c.l.b16 %v171
      %v316 = vunpack.c.l.b16 %v172
      %v317 = vunpack.c.l.b16 %v173
      %v318 = vunpack.c.l.b16 %v174
      %v319 = vunpack.c.l.b16 %v175
      %v320 = vunpack.c.l.b16 %v176
      %v321 = vunpack.c.l.b16 %v177
      %v322 = vunpack.c.l.b16 %v178
      %v323 = vunpack.c.l.b16 %v179
      %v324 = vunpack.c.l.b16 %v180
      %v325 = vunpack.c.l.b16 %v181
      %v326 = vunpack.c.l.b16 %v182
      %v327 = vunpack.c.l.b16 %v183
      %v328 = vunpack.c.l.b16 %v184
      %v329 = vunpack.c.l.b16 %v185
      %v330 = vunpack.c.l.b16 %v186
      %v331 = vunpack.c.l.b16 %v187
      %v332 = vunpack.c.l.b16 %v188
      %v333 = vunpack.c.l.b16 %v189
      %v334 = vunpack.c.l.b16 %v190
      %v335 = vunpack.c.l.b16 %v191
      %v336 = vunpack.c.l.b16 %v192
      %v337 = vunpack.c.l.b16 %v193
      %v338 = vunpack.c.l.b16 %v194
      %v339 = vunpack.c.l.b16 %v195
      %v340 = vunpack.c.l.b16 %v196
      %v341 = vunpack.c.l.b16 %v197
      %v342 = vunpack.c.l.b16 %v198
      %v343 = vunpack.c.l.b16 %v199
      %v344 = vunpack.c.l.b16 %v200
      %v345 = vunpack.c.l.b16 %v201
      %v346 = vunpack.c.l.b16 %v202
      %v347 = vunpack.c.l.b16 %v203
      %v348 = vunpack.c.l.b16 %v204
      %v349 = vunpack.c.l.b16 %v205
      %v350 = vunpack.c.l.b16 %v206
      %v351 = vunpack.c.l.b16 %v207
      %v352 = vunpack.c.l.b16 %v208
      %v353 = vunpack.c.l.b16 %v209
      %v354 = vunpack.c.l.b16 %v210
      %v355 = vunpack.c.l.b16 %v211
      %v356 = vpack.c.b16 %v293, %v292
      %v357 = vpack.c.b16 %v295, %v294
      %v358 = vpack.c.b16 %v297, %v296
      %v359 = vpack.c.b16 %v299, %v298
      %v360 = vpack.c.b16 %v301, %v300
      %v361 = vpack.c.b16 %v303, %v302
      %v362 = vpack.c.b16 %v305, %v304
      %v363 = vpack.c.b16 %v307, %v306
      %v364 = vpack.c.b16 %v309, %v308
      %v365 = vpack.c.b16 %v311, %v310
      %v366 = vpack.c.b16 %v313, %v312
      %v367 = vpack.c.b16 %v315, %v314
      %v368 = vpack.c.b16 %v317, %v316
      %v369 = vpack.c.b16 %v319, %v318
      %v370 = vpack.c.b16 %v321, %v320
      %v371 = vpack.c.b16 %v323, %v322
      %v372 = vpack.c.b16 %v325, %v324
      %v373 = vpack.c.b16 %v327, %v326
      %v374 = vpack.c.b16 %v329, %v328
      %v375 = vpack.c.b16 %v331, %v330
      %v376 = vpack.c.b16 %v333, %v332
      %v377 = vpack.c.b16 %v335, %v334
      %v378 = vpack.c.b16 %v337, %v336
      %v379 = vpack.c.b16 %v339, %v338
      %v380 = vpack.c.b16 %v341, %v340
      %v381 = vpack.c.b16 %v343, %v342
      %v382 = vpack.c.b16 %v345, %v344
      %v383 = vpack.c.b16 %v347, %v346
      %v384 = vpack.c.b16 %v349, %v348
      %v385 = vpack.c.b16 %v351, %v350
      %v386 = vpack.c.b16 %v353, %v352
      %v387 = vpack.c.b16 %v355, %v354
      %v436 = vunpack.c.l.b16 %v212
      %v437 = vunpack.c.l.b16 %v213
      %v438 = vunpack.c.l.b16 %v214
      %v439 = vunpack.c.l.b16 %v215
      %v440 = vunpack.c.l.b16 %v216
      %v441 = vunpack.c.l.b16 %v217
      %v442 = vunpack.c.l.b16 %v218
      %v443 = vunpack.c.l.b16 %v219
      %v444 = vunpack.c.l.b16 %v220
      %v445 = vunpack.c.l.b16 %v221
      %v446 = vunpack.c.l.b16 %v222
      %v447 = vunpack.c.l.b16 %v223
      %v448 = vunpack.c.l.b16 %v224
      %v449 = vunpack.c.l.b16 %v225
      %v450 = vunpack.c.l.b16 %v226
      %v451 = vunpack.c.l.b16 %v227
      %v452 = vpack.c.b16 %v437, %v436
      %v453 = vpack.c.b16 %v439, %v438
      %v454 = vpack.c.b16 %v441, %v440
      %v455 = vpack.c.b16 %v443, %v442
      %v456 = vpack.c.b16 %v445, %v444
      %v457 = vpack.c.b16 %v447, %v446
      %v458 = vpack.c.b16 %v449, %v448
      %v459 = vpack.c.b16 %v451, %v450
      %468 = vmatprep.subr.bf16.mxu0 0
      %469 = vmatpush1.bf16.msra.mxu0 %v459
      %470 = vmatprep.subr.bf16.mxu0 0
      %471 = vmatpush1.bf16.msra.mxu0 %v458
      %472 = vmatprep.subr.bf16.mxu0 0
      %473 = vmatpush1.bf16.msra.mxu0 %v457
      %474 = vmatprep.subr.bf16.mxu0 0
      %475 = vmatpush1.bf16.msra.mxu0 %v456
      %476 = vmatprep.subr.bf16.mxu0 0
      %477 = vmatpush1.bf16.msra.mxu0 %v455
      %478 = vmatprep.subr.bf16.mxu0 0
      %479 = vmatpush1.bf16.msra.mxu0 %v454
      %480 = vmatprep.subr.bf16.mxu0 0
      %481 = vmatpush1.bf16.msra.mxu0 %v453
      %482 = vmatprep.subr.bf16.mxu0 0
      %483 = vmatpush1.bf16.msra.mxu0 %v452
      %484 = vmatprep.subr.bf16.mxu0 0
      %485 = vmatpush2.bf16.msra.mxu0 0
      %486 = vmatprep.subr.bf16.mxu0 0
      %487 = vmatpush2.bf16.msra.mxu0 0
      %488 = vmatprep.subr.bf16.mxu0 0
      %489 = vmatpush2.bf16.msra.mxu0 0
      %490 = vmatprep.subr.bf16.mxu0 0
      %491 = vmatpush2.bf16.msra.mxu0 0
      %492 = vmatprep.subr.bf16.mxu0 0
      %493 = vmatpush2.bf16.msra.mxu0 0
      %494 = vmatprep.subr.bf16.mxu0 0
      %495 = vmatpush2.bf16.msra.mxu0 0
      %496 = vmatprep.subr.bf16.mxu0 0
      %497 = vmatpush2.bf16.msra.mxu0 0
      %498 = vmatprep.subr.bf16.mxu0 0
      %499 = vmatpush2.bf16.msra.mxu0 0
      %500 = vmatprep.mubr.bf16.mxu0 0
      %501 = vmatmul.mubr.bf16.gmra.mxu0 %v356
      %v502 = vpop.f32.mrf.mxu0
      %v503 = vadd.f32 0.0, %v502
      %v504 = vpop.f32.mrf.mxu0
      %v505 = vpop.f32.mrf.mxu0
      %v506 = vadd.f32 0.0, %v505
      %v507 = vpop.f32.mrf.mxu0
      %508 = vmatprep.mubr.bf16.mxu0 0
      %509 = vmatmul.mubr.bf16.gmra.mxu0 %v357
      %v510 = vpop.f32.mrf.mxu0
      %v511 = vadd.f32 0.0, %v510
      %v512 = vpop.f32.mrf.mxu0
      %v513 = vpop.f32.mrf.mxu0
      %v514 = vadd.f32 0.0, %v513
      %v515 = vpop.f32.mrf.mxu0
      %516 = vmatprep.mubr.bf16.mxu0 0
      %517 = vmatmul.mubr.bf16.gmra.mxu0 %v358
      %v518 = vpop.f32.mrf.mxu0
      %v519 = vadd.f32 0.0, %v518
      %v520 = vpop.f32.mrf.mxu0
      %v521 = vpop.f32.mrf.mxu0
      %v522 = vadd.f32 0.0, %v521
      %v523 = vpop.f32.mrf.mxu0
      %524 = vmatprep.mubr.bf16.mxu0 0
      %525 = vmatmul.mubr.bf16.gmra.mxu0 %v359
      %v526 = vpop.f32.mrf.mxu0
      %v527 = vadd.f32 0.0, %v526
      %v528 = vpop.f32.mrf.mxu0
      %v529 = vpop.f32.mrf.mxu0
      %v530 = vadd.f32 0.0, %v529
      %v531 = vpop.f32.mrf.mxu0
      %532 = vmatprep.mubr.bf16.mxu0 0
      %533 = vmatmul.mubr.bf16.gmra.mxu0 %v360
      %v534 = vpop.f32.mrf.mxu0
      %v535 = vadd.f32 0.0, %v534
      %v536 = vpop.f32.mrf.mxu0
      %v537 = vpop.f32.mrf.mxu0
      %v538 = vadd.f32 0.0, %v537
      %v539 = vpop.f32.mrf.mxu0
      %540 = vmatprep.mubr.bf16.mxu0 0
      %541 = vmatmul.mubr.bf16.gmra.mxu0 %v361
      %v542 = vpop.f32.mrf.mxu0
      %v543 = vadd.f32 0.0, %v542
      %v544 = vpop.f32.mrf.mxu0
      %v545 = vpop.f32.mrf.mxu0
      %v546 = vadd.f32 0.0, %v545
      %v547 = vpop.f32.mrf.mxu0
      %548 = vmatprep.mubr.bf16.mxu0 0
      %549 = vmatmul.mubr.bf16.gmra.mxu0 %v362
      %v550 = vpop.f32.mrf.mxu0
      %v551 = vadd.f32 0.0, %v550
      %v552 = vpop.f32.mrf.mxu0
      %v553 = vpop.f32.mrf.mxu0
      %v554 = vadd.f32 0.0, %v553
      %v555 = vpop.f32.mrf.mxu0
      %556 = vmatprep.mubr.bf16.mxu0 0
      %557 = vmatmul.mubr.bf16.gmra.mxu0 %v363
      %v558 = vpop.f32.mrf.mxu0
      %v559 = vadd.f32 0.0, %v558
      %v560 = vpop.f32.mrf.mxu0
      %v561 = vpop.f32.mrf.mxu0
      %v562 = vadd.f32 0.0, %v561
      %v563 = vpop.f32.mrf.mxu0
      %564 = vmatprep.mubr.bf16.mxu0 0
      %565 = vmatmul.mubr.bf16.gmra.mxu0 %v364
      %v566 = vpop.f32.mrf.mxu0
      %v567 = vadd.f32 0.0, %v566
      %v568 = vpop.f32.mrf.mxu0
      %v569 = vpop.f32.mrf.mxu0
      %v570 = vadd.f32 0.0, %v569
      %v571 = vpop.f32.mrf.mxu0
      %572 = vmatprep.mubr.bf16.mxu0 0
      %573 = vmatmul.mubr.bf16.gmra.mxu0 %v365
      %v574 = vpop.f32.mrf.mxu0
      %v575 = vadd.f32 0.0, %v574
      %v576 = vpop.f32.mrf.mxu0
      %v577 = vpop.f32.mrf.mxu0
      %v578 = vadd.f32 0.0, %v577
      %v579 = vpop.f32.mrf.mxu0
      %580 = vmatprep.mubr.bf16.mxu0 0
      %581 = vmatmul.mubr.bf16.gmra.mxu0 %v366
      %v582 = vpop.f32.mrf.mxu0
      %v583 = vadd.f32 0.0, %v582
      %v584 = vpop.f32.mrf.mxu0
      %v585 = vpop.f32.mrf.mxu0
      %v586 = vadd.f32 0.0, %v585
      %v587 = vpop.f32.mrf.mxu0
      %588 = vmatprep.mubr.bf16.mxu0 0
      %589 = vmatmul.mubr.bf16.gmra.mxu0 %v367
      %v590 = vpop.f32.mrf.mxu0
      %v591 = vadd.f32 0.0, %v590
      %v592 = vpop.f32.mrf.mxu0
      %v593 = vpop.f32.mrf.mxu0
      %v594 = vadd.f32 0.0, %v593
      %v595 = vpop.f32.mrf.mxu0
      %596 = vmatprep.mubr.bf16.mxu0 0
      %597 = vmatmul.mubr.bf16.gmra.mxu0 %v368
      %v598 = vpop.f32.mrf.mxu0
      %v599 = vadd.f32 0.0, %v598
      %v600 = vpop.f32.mrf.mxu0
      %v601 = vpop.f32.mrf.mxu0
      %v602 = vadd.f32 0.0, %v601
      %v603 = vpop.f32.mrf.mxu0
      %604 = vmatprep.mubr.bf16.mxu0 0
      %605 = vmatmul.mubr.bf16.gmra.mxu0 %v369
      %v606 = vpop.f32.mrf.mxu0
      %v607 = vadd.f32 0.0, %v606
      %v608 = vpop.f32.mrf.mxu0
      %v609 = vpop.f32.mrf.mxu0
      %v610 = vadd.f32 0.0, %v609
      %v611 = vpop.f32.mrf.mxu0
      %612 = vmatprep.mubr.bf16.mxu0 0
      %613 = vmatmul.mubr.bf16.gmra.mxu0 %v370
      %v614 = vpop.f32.mrf.mxu0
      %v615 = vadd.f32 0.0, %v614
      %v616 = vpop.f32.mrf.mxu0
      %v617 = vpop.f32.mrf.mxu0
      %v618 = vadd.f32 0.0, %v617
      %v619 = vpop.f32.mrf.mxu0
      %620 = vmatprep.mubr.bf16.mxu0 0
      %621 = vmatmul.mubr.bf16.gmra.mxu0 %v371
      %v622 = vpop.f32.mrf.mxu0
      %v623 = vadd.f32 0.0, %v622
      %v624 = vpop.f32.mrf.mxu0
      %v625 = vpop.f32.mrf.mxu0
      %v626 = vadd.f32 0.0, %v625
      %v627 = vpop.f32.mrf.mxu0
      %628 = vmatprep.mubr.bf16.mxu0 0
      %629 = vmatmul.mubr.bf16.gmra.mxu0 %v372
      %v630 = vpop.f32.mrf.mxu0
      %v631 = vadd.f32 0.0, %v630
      %v632 = vpop.f32.mrf.mxu0
      %v633 = vpop.f32.mrf.mxu0
      %v634 = vadd.f32 0.0, %v633
      %v635 = vpop.f32.mrf.mxu0
      %636 = vmatprep.mubr.bf16.mxu0 0
      %637 = vmatmul.mubr.bf16.gmra.mxu0 %v373
      %v638 = vpop.f32.mrf.mxu0
      %v639 = vadd.f32 0.0, %v638
      %v640 = vpop.f32.mrf.mxu0
      %v641 = vpop.f32.mrf.mxu0
      %v642 = vadd.f32 0.0, %v641
      %v643 = vpop.f32.mrf.mxu0
      %644 = vmatprep.mubr.bf16.mxu0 0
      %645 = vmatmul.mubr.bf16.gmra.mxu0 %v374
      %v646 = vpop.f32.mrf.mxu0
      %v647 = vadd.f32 0.0, %v646
      %v648 = vpop.f32.mrf.mxu0
      %v649 = vpop.f32.mrf.mxu0
      %v650 = vadd.f32 0.0, %v649
      %v651 = vpop.f32.mrf.mxu0
      %652 = vmatprep.mubr.bf16.mxu0 0
      %653 = vmatmul.mubr.bf16.gmra.mxu0 %v375
      %v654 = vpop.f32.mrf.mxu0
      %v655 = vadd.f32 0.0, %v654
      %v656 = vpop.f32.mrf.mxu0
      %v657 = vpop.f32.mrf.mxu0
      %v658 = vadd.f32 0.0, %v657
      %v659 = vpop.f32.mrf.mxu0
      %660 = vmatprep.mubr.bf16.mxu0 0
      %661 = vmatmul.mubr.bf16.gmra.mxu0 %v376
      %v662 = vpop.f32.mrf.mxu0
      %v663 = vadd.f32 0.0, %v662
      %v664 = vpop.f32.mrf.mxu0
      %v665 = vpop.f32.mrf.mxu0
      %v666 = vadd.f32 0.0, %v665
      %v667 = vpop.f32.mrf.mxu0
      %668 = vmatprep.mubr.bf16.mxu0 0
      %669 = vmatmul.mubr.bf16.gmra.mxu0 %v377
      %v670 = vpop.f32.mrf.mxu0
      %v671 = vadd.f32 0.0, %v670
      %v672 = vpop.f32.mrf.mxu0
      %v673 = vpop.f32.mrf.mxu0
      %v674 = vadd.f32 0.0, %v673
      %v675 = vpop.f32.mrf.mxu0
      %676 = vmatprep.mubr.bf16.mxu0 0
      %677 = vmatmul.mubr.bf16.gmra.mxu0 %v378
      %v678 = vpop.f32.mrf.mxu0
      %v679 = vadd.f32 0.0, %v678
      %v680 = vpop.f32.mrf.mxu0
      %v681 = vpop.f32.mrf.mxu0
      %v682 = vadd.f32 0.0, %v681
      %v683 = vpop.f32.mrf.mxu0
      %684 = vmatprep.mubr.bf16.mxu0 0
      %685 = vmatmul.mubr.bf16.gmra.mxu0 %v379
      %v686 = vpop.f32.mrf.mxu0
      %v687 = vadd.f32 0.0, %v686
      %v688 = vpop.f32.mrf.mxu0
      %v689 = vpop.f32.mrf.mxu0
      %v690 = vadd.f32 0.0, %v689
      %v691 = vpop.f32.mrf.mxu0
      %692 = vmatprep.mubr.bf16.mxu0 0
      %693 = vmatmul.mubr.bf16.gmra.mxu0 %v380
      %v694 = vpop.f32.mrf.mxu0
      %v695 = vadd.f32 0.0, %v694
      %v696 = vpop.f32.mrf.mxu0
      %v697 = vpop.f32.mrf.mxu0
      %v698 = vadd.f32 0.0, %v697
      %v699 = vpop.f32.mrf.mxu0
      %700 = vmatprep.mubr.bf16.mxu0 0
      %701 = vmatmul.mubr.bf16.gmra.mxu0 %v381
      %v702 = vpop.f32.mrf.mxu0
      %v703 = vadd.f32 0.0, %v702
      %v704 = vpop.f32.mrf.mxu0
      %v705 = vpop.f32.mrf.mxu0
      %v706 = vadd.f32 0.0, %v705
      %v707 = vpop.f32.mrf.mxu0
      %708 = vmatprep.mubr.bf16.mxu0 0
      %709 = vmatmul.mubr.bf16.gmra.mxu0 %v382
      %v710 = vpop.f32.mrf.mxu0
      %v711 = vadd.f32 0.0, %v710
      %v712 = vpop.f32.mrf.mxu0
      %v713 = vpop.f32.mrf.mxu0
      %v714 = vadd.f32 0.0, %v713
      %v715 = vpop.f32.mrf.mxu0
      %716 = vmatprep.mubr.bf16.mxu0 0
      %717 = vmatmul.mubr.bf16.gmra.mxu0 %v383
      %v718 = vpop.f32.mrf.mxu0
      %v719 = vadd.f32 0.0, %v718
      %v720 = vpop.f32.mrf.mxu0
      %v721 = vpop.f32.mrf.mxu0
      %v722 = vadd.f32 0.0, %v721
      %v723 = vpop.f32.mrf.mxu0
      %724 = vmatprep.mubr.bf16.mxu0 0
      %725 = vmatmul.mubr.bf16.gmra.mxu0 %v384
      %v726 = vpop.f32.mrf.mxu0
      %v727 = vadd.f32 0.0, %v726
      %v728 = vpop.f32.mrf.mxu0
      %v729 = vpop.f32.mrf.mxu0
      %v730 = vadd.f32 0.0, %v729
      %v731 = vpop.f32.mrf.mxu0
      %732 = vmatprep.mubr.bf16.mxu0 0
      %733 = vmatmul.mubr.bf16.gmra.mxu0 %v385
      %v734 = vpop.f32.mrf.mxu0
      %v735 = vadd.f32 0.0, %v734
      %v736 = vpop.f32.mrf.mxu0
      %v737 = vpop.f32.mrf.mxu0
      %v738 = vadd.f32 0.0, %v737
      %v739 = vpop.f32.mrf.mxu0
      %740 = vmatprep.mubr.bf16.mxu0 0
      %741 = vmatmul.mubr.bf16.gmra.mxu0 %v386
      %v742 = vpop.f32.mrf.mxu0
      %v743 = vadd.f32 0.0, %v742
      %v744 = vpop.f32.mrf.mxu0
      %v745 = vpop.f32.mrf.mxu0
      %v746 = vadd.f32 0.0, %v745
      %v747 = vpop.f32.mrf.mxu0
      %748 = vmatprep.mubr.bf16.mxu0 0
      %749 = vmatmul.mubr.bf16.gmra.mxu0 %v387
      %v750 = vpop.f32.mrf.mxu0
      %v751 = vadd.f32 0.0, %v750
      %v752 = vpop.f32.mrf.mxu0
      %v753 = vpop.f32.mrf.mxu0
      %v754 = vadd.f32 0.0, %v753
      %v755 = vpop.f32.mrf.mxu0
      %756 = vdwg.mxu0
      %v757 = vtanh.pop %v503
      %v758 = vtanh.pop %v506
      %v759 = vtanh.pop %v511
      %v760 = vtanh.pop %v514
      %v761 = vtanh.pop %v519
      %v762 = vtanh.pop %v522
      %v763 = vtanh.pop %v527
      %v764 = vtanh.pop %v530
      %v765 = vtanh.pop %v535
      %v766 = vtanh.pop %v538
      %v767 = vtanh.pop %v543
      %v768 = vtanh.pop %v546
      %v769 = vtanh.pop %v551
      %v770 = vtanh.pop %v554
      %v771 = vtanh.pop %v559
      %v772 = vtanh.pop %v562
      %v773 = vtanh.pop %v567
      %v774 = vtanh.pop %v570
      %v775 = vtanh.pop %v575
      %v776 = vtanh.pop %v578
      %v777 = vtanh.pop %v583
      %v778 = vtanh.pop %v586
      %v779 = vtanh.pop %v591
      %v780 = vtanh.pop %v594
      %v781 = vtanh.pop %v599
      %v782 = vtanh.pop %v602
      %v783 = vtanh.pop %v607
      %v784 = vtanh.pop %v610
      %v785 = vtanh.pop %v615
      %v786 = vtanh.pop %v618
      %v787 = vtanh.pop %v623
      %v788 = vtanh.pop %v626
      %v789 = vtanh.pop %v631
      %v790 = vtanh.pop %v634
      %v791 = vtanh.pop %v639
      %v792 = vtanh.pop %v642
      %v793 = vtanh.pop %v647
      %v794 = vtanh.pop %v650
      %v795 = vtanh.pop %v655
      %v796 = vtanh.pop %v658
      %v797 = vtanh.pop %v663
      %v798 = vtanh.pop %v666
      %v799 = vtanh.pop %v671
      %v800 = vtanh.pop %v674
      %v801 = vtanh.pop %v679
      %v802 = vtanh.pop %v682
      %v803 = vtanh.pop %v687
      %v804 = vtanh.pop %v690
      %v805 = vtanh.pop %v695
      %v806 = vtanh.pop %v698
      %v807 = vtanh.pop %v703
      %v808 = vtanh.pop %v706
      %v809 = vtanh.pop %v711
      %v810 = vtanh.pop %v714
      %v811 = vtanh.pop %v719
      %v812 = vtanh.pop %v722
      %v813 = vtanh.pop %v727
      %v814 = vtanh.pop %v730
      %v815 = vtanh.pop %v735
      %v816 = vtanh.pop %v738
      %v817 = vtanh.pop %v743
      %v818 = vtanh.pop %v746
      %v819 = vtanh.pop %v751
      %v820 = vtanh.pop %v754
      %v821 = vpack.c.bf16 %v758, %v757
      %v822 = vpack.c.bf16 %v760, %v759
      %v823 = vpack.c.bf16 %v762, %v761
      %v824 = vpack.c.bf16 %v764, %v763
      %v825 = vpack.c.bf16 %v766, %v765
      %v826 = vpack.c.bf16 %v768, %v767
      %v827 = vpack.c.bf16 %v770, %v769
      %v828 = vpack.c.bf16 %v772, %v771
      %v829 = vpack.c.bf16 %v774, %v773
      %v830 = vpack.c.bf16 %v776, %v775
      %v831 = vpack.c.bf16 %v778, %v777
      %v832 = vpack.c.bf16 %v780, %v779
      %v833 = vpack.c.bf16 %v782, %v781
      %v834 = vpack.c.bf16 %v784, %v783
      %v835 = vpack.c.bf16 %v786, %v785
      %v836 = vpack.c.bf16 %v788, %v787
      %v837 = vpack.c.bf16 %v790, %v789
      %v838 = vpack.c.bf16 %v792, %v791
      %v839 = vpack.c.bf16 %v794, %v793
      %v840 = vpack.c.bf16 %v796, %v795
      %v841 = vpack.c.bf16 %v798, %v797
      %v842 = vpack.c.bf16 %v800, %v799
      %v843 = vpack.c.bf16 %v802, %v801
      %v844 = vpack.c.bf16 %v804, %v803
      %v845 = vpack.c.bf16 %v806, %v805
      %v846 = vpack.c.bf16 %v808, %v807
      %v847 = vpack.c.bf16 %v810, %v809
      %v848 = vpack.c.bf16 %v812, %v811
      %v849 = vpack.c.bf16 %v814, %v813
      %v850 = vpack.c.bf16 %v816, %v815
      %v851 = vpack.c.bf16 %v818, %v817
      %v852 = vpack.c.bf16 %v820, %v819
      %v885 = vunpack.c.l.b16 %v821
      %v886 = vunpack.c.h.b16 %v821
      %v887 = vunpack.c.l.b16 %v822
      %v888 = vunpack.c.h.b16 %v822
      %v889 = vunpack.c.l.b16 %v823
      %v890 = vunpack.c.h.b16 %v823
      %v891 = vunpack.c.l.b16 %v824
      %v892 = vunpack.c.h.b16 %v824
      %v893 = vunpack.c.l.b16 %v825
      %v894 = vunpack.c.h.b16 %v825
      %v895 = vunpack.c.l.b16 %v826
      %v896 = vunpack.c.h.b16 %v826
      %v897 = vunpack.c.l.b16 %v827
      %v898 = vunpack.c.h.b16 %v827
      %v899 = vunpack.c.l.b16 %v828
      %v900 = vunpack.c.h.b16 %v828
      %v901 = vunpack.c.l.b16 %v829
      %v902 = vunpack.c.h.b16 %v829
      %v903 = vunpack.c.l.b16 %v830
      %v904 = vunpack.c.h.b16 %v830
      %v905 = vunpack.c.l.b16 %v831
      %v906 = vunpack.c.h.b16 %v831
      %v907 = vunpack.c.l.b16 %v832
      %v908 = vunpack.c.h.b16 %v832
      %v909 = vunpack.c.l.b16 %v833
      %v910 = vunpack.c.h.b16 %v833
      %v911 = vunpack.c.l.b16 %v834
      %v912 = vunpack.c.h.b16 %v834
      %v913 = vunpack.c.l.b16 %v835
      %v914 = vunpack.c.h.b16 %v835
      %v915 = vunpack.c.l.b16 %v836
      %v916 = vunpack.c.h.b16 %v836
      %v917 = vunpack.c.l.b16 %v837
      %v918 = vunpack.c.h.b16 %v837
      %v919 = vunpack.c.l.b16 %v838
      %v920 = vunpack.c.h.b16 %v838
      %v921 = vunpack.c.l.b16 %v839
      %v922 = vunpack.c.h.b16 %v839
      %v923 = vunpack.c.l.b16 %v840
      %v924 = vunpack.c.h.b16 %v840
      %v925 = vunpack.c.l.b16 %v841
      %v926 = vunpack.c.h.b16 %v841
      %v927 = vunpack.c.l.b16 %v842
      %v928 = vunpack.c.h.b16 %v842
      %v929 = vunpack.c.l.b16 %v843
      %v930 = vunpack.c.h.b16 %v843
      %v931 = vunpack.c.l.b16 %v844
      %v932 = vunpack.c.h.b16 %v844
      %v933 = vunpack.c.l.b16 %v845
      %v934 = vunpack.c.h.b16 %v845
      %v935 = vunpack.c.l.b16 %v846
      %v936 = vunpack.c.h.b16 %v846
      %v937 = vunpack.c.l.b16 %v847
      %v938 = vunpack.c.h.b16 %v847
      %v939 = vunpack.c.l.b16 %v848
      %v940 = vunpack.c.h.b16 %v848
      %v941 = vunpack.c.l.b16 %v849
      %v942 = vunpack.c.h.b16 %v849
      %v943 = vunpack.c.l.b16 %v850
      %v944 = vunpack.c.h.b16 %v850
      %v945 = vunpack.c.l.b16 %v851
      %v946 = vunpack.c.h.b16 %v851
      %v947 = vunpack.c.l.b16 %v852
      %v948 = vunpack.c.h.b16 %v852
      %v949 = vpack.c.b16 %v885, %v885
      %v950 = vpack.c.b16 %v886, %v886
      %v951 = vpack.c.b16 %v887, %v887
      %v952 = vpack.c.b16 %v888, %v888
      %v953 = vpack.c.b16 %v889, %v889
      %v954 = vpack.c.b16 %v890, %v890
      %v955 = vpack.c.b16 %v891, %v891
      %v956 = vpack.c.b16 %v892, %v892
      %v957 = vpack.c.b16 %v893, %v893
      %v958 = vpack.c.b16 %v894, %v894
      %v959 = vpack.c.b16 %v895, %v895
      %v960 = vpack.c.b16 %v896, %v896
      %v961 = vpack.c.b16 %v897, %v897
      %v962 = vpack.c.b16 %v898, %v898
      %v963 = vpack.c.b16 %v899, %v899
      %v964 = vpack.c.b16 %v900, %v900
      %v965 = vpack.c.b16 %v901, %v901
      %v966 = vpack.c.b16 %v902, %v902
      %v967 = vpack.c.b16 %v903, %v903
      %v968 = vpack.c.b16 %v904, %v904
      %v969 = vpack.c.b16 %v905, %v905
      %v970 = vpack.c.b16 %v906, %v906
      %v971 = vpack.c.b16 %v907, %v907
      %v972 = vpack.c.b16 %v908, %v908
      %v973 = vpack.c.b16 %v909, %v909
      %v974 = vpack.c.b16 %v910, %v910
      %v975 = vpack.c.b16 %v911, %v911
      %v976 = vpack.c.b16 %v912, %v912
      %v977 = vpack.c.b16 %v913, %v913
      %v978 = vpack.c.b16 %v914, %v914
      %v979 = vpack.c.b16 %v915, %v915
      %v980 = vpack.c.b16 %v916, %v916
      %v981 = vpack.c.b16 %v917, %v917
      %v982 = vpack.c.b16 %v918, %v918
      %v983 = vpack.c.b16 %v919, %v919
      %v984 = vpack.c.b16 %v920, %v920
      %v985 = vpack.c.b16 %v921, %v921
      %v986 = vpack.c.b16 %v922, %v922
      %v987 = vpack.c.b16 %v923, %v923
      %v988 = vpack.c.b16 %v924, %v924
      %v989 = vpack.c.b16 %v925, %v925
      %v990 = vpack.c.b16 %v926, %v926
      %v991 = vpack.c.b16 %v927, %v927
      %v992 = vpack.c.b16 %v928, %v928
      %v993 = vpack.c.b16 %v929, %v929
      %v994 = vpack.c.b16 %v930, %v930
      %v995 = vpack.c.b16 %v931, %v931
      %v996 = vpack.c.b16 %v932, %v932
      %v997 = vpack.c.b16 %v933, %v933
      %v998 = vpack.c.b16 %v934, %v934
      %v999 = vpack.c.b16 %v935, %v935
      %v1000 = vpack.c.b16 %v936, %v936
      %v1001 = vpack.c.b16 %v937, %v937
      %v1002 = vpack.c.b16 %v938, %v938
      %v1003 = vpack.c.b16 %v939, %v939
      %v1004 = vpack.c.b16 %v940, %v940
      %v1005 = vpack.c.b16 %v941, %v941
      %v1006 = vpack.c.b16 %v942, %v942
      %v1007 = vpack.c.b16 %v943, %v943
      %v1008 = vpack.c.b16 %v944, %v944
      %v1009 = vpack.c.b16 %v945, %v945
      %v1010 = vpack.c.b16 %v946, %v946
      %v1011 = vpack.c.b16 %v947, %v947
      %v1012 = vpack.c.b16 %v948, %v948
      %1077 = vst [vmem:[%s145] sm:$0xf] %v949
      %1078 = vst [vmem:[%s145 + $0x4] sm:$0xf] %v950
      %1079 = vst [vmem:[%s145 + $0x8] sm:$0xf] %v951
      %1080 = vst [vmem:[%s145 + $0xc] sm:$0xf] %v952
      %1081 = vst [vmem:[%s145 + $0x10] sm:$0xf] %v953
      %1082 = vst [vmem:[%s145 + $0x14] sm:$0xf] %v954
      %1083 = vst [vmem:[%s145 + $0x18] sm:$0xf] %v955
      %1084 = vst [vmem:[%s145 + $0x1c] sm:$0xf] %v956
      %1085 = vst [vmem:[%s145 + $0x20] sm:$0xf] %v957
      %1086 = vst [vmem:[%s145 + $0x24] sm:$0xf] %v958
      %1087 = vst [vmem:[%s145 + $0x28] sm:$0xf] %v959
      %1088 = vst [vmem:[%s145 + $0x2c] sm:$0xf] %v960
      %1089 = vst [vmem:[%s145 + $0x30] sm:$0xf] %v961
      %1090 = vst [vmem:[%s145 + $0x34] sm:$0xf] %v962
      %1091 = vst [vmem:[%s145 + $0x38] sm:$0xf] %v963
      %1092 = vst [vmem:[%s145 + $0x3c] sm:$0xf] %v964
      %1093 = vst [vmem:[%s145 + $0x40] sm:$0xf] %v965
      %1094 = vst [vmem:[%s145 + $0x44] sm:$0xf] %v966
      %1095 = vst [vmem:[%s145 + $0x48] sm:$0xf] %v967
      %1096 = vst [vmem:[%s145 + $0x4c] sm:$0xf] %v968
      %1097 = vst [vmem:[%s145 + $0x50] sm:$0xf] %v969
      %1098 = vst [vmem:[%s145 + $0x54] sm:$0xf] %v970
      %1099 = vst [vmem:[%s145 + $0x58] sm:$0xf] %v971
      %1100 = vst [vmem:[%s145 + $0x5c] sm:$0xf] %v972
      %1101 = vst [vmem:[%s145 + $0x60] sm:$0xf] %v973
      %1102 = vst [vmem:[%s145 + $0x64] sm:$0xf] %v974
      %1103 = vst [vmem:[%s145 + $0x68] sm:$0xf] %v975
      %1104 = vst [vmem:[%s145 + $0x6c] sm:$0xf] %v976
      %1105 = vst [vmem:[%s145 + $0x70] sm:$0xf] %v977
      %1106 = vst [vmem:[%s145 + $0x74] sm:$0xf] %v978
      %1107 = vst [vmem:[%s145 + $0x78] sm:$0xf] %v979
      %1108 = vst [vmem:[%s145 + $0x7c] sm:$0xf] %v980
      %1109 = vst [vmem:[%s145 + $0x80] sm:$0xf] %v981
      %1110 = vst [vmem:[%s145 + $0x84] sm:$0xf] %v982
      %1111 = vst [vmem:[%s145 + $0x88] sm:$0xf] %v983
      %1112 = vst [vmem:[%s145 + $0x8c] sm:$0xf] %v984
      %1113 = vst [vmem:[%s145 + $0x90] sm:$0xf] %v985
      %1114 = vst [vmem:[%s145 + $0x94] sm:$0xf] %v986
      %1115 = vst [vmem:[%s145 + $0x98] sm:$0xf] %v987
      %1116 = vst [vmem:[%s145 + $0x9c] sm:$0xf] %v988
      %1117 = vst [vmem:[%s145 + $0xa0] sm:$0xf] %v989
      %1118 = vst [vmem:[%s145 + $0xa4] sm:$0xf] %v990
      %1119 = vst [vmem:[%s145 + $0xa8] sm:$0xf] %v991
      %1120 = vst [vmem:[%s145 + $0xac] sm:$0xf] %v992
      %1121 = vst [vmem:[%s145 + $0xb0] sm:$0xf] %v993
      %1122 = vst [vmem:[%s145 + $0xb4] sm:$0xf] %v994
      %1123 = vst [vmem:[%s145 + $0xb8] sm:$0xf] %v995
      %1124 = vst [vmem:[%s145 + $0xbc] sm:$0xf] %v996
      %1125 = vst [vmem:[%s145 + $0xc0] sm:$0xf] %v997
      %1126 = vst [vmem:[%s145 + $0xc4] sm:$0xf] %v998
      %1127 = vst [vmem:[%s145 + $0xc8] sm:$0xf] %v999
      %1128 = vst [vmem:[%s145 + $0xcc] sm:$0xf] %v1000
      %1129 = vst [vmem:[%s145 + $0xd0] sm:$0xf] %v1001
      %1130 = vst [vmem:[%s145 + $0xd4] sm:$0xf] %v1002
      %1131 = vst [vmem:[%s145 + $0xd8] sm:$0xf] %v1003
      %1132 = vst [vmem:[%s145 + $0xdc] sm:$0xf] %v1004
      %1133 = vst [vmem:[%s145 + $0xe0] sm:$0xf] %v1005
      %1134 = vst [vmem:[%s145 + $0xe4] sm:$0xf] %v1006
      %1135 = vst [vmem:[%s145 + $0xe8] sm:$0xf] %v1007
      %1136 = vst [vmem:[%s145 + $0xec] sm:$0xf] %v1008
      %1137 = vst [vmem:[%s145 + $0xf0] sm:$0xf] %v1009
      %1138 = vst [vmem:[%s145 + $0xf4] sm:$0xf] %v1010
      %1139 = vst [vmem:[%s145 + $0xf8] sm:$0xf] %v1011
      %1140 = vst [vmem:[%s145 + $0xfc] sm:$0xf] %v1012
      %s1141 = smul.u32 64, %s13
      %p1142 = scmp.lt.s32.totalorder %s1141, 255
      %s1143 = scalar_select %p1142, %s1141, 255
      %s1144 = smul.addr %s1143, 4
      %s1145 = scalar_lea.vmem %s2, %s1144
      // Predicated region
      $region29: #{a_call__.21} parent=27 // pred_check
        %p1146 = pneg %p78
      $region30: #{a_call__.21} parent=27 // pred_check_branch
        %1148 = sbr.rel (%p1146) target = $region32
      $region31: #{a_call__.21} parent=27 // pred_region
        %s1149 = smul.u32 64, %s13
      $region32: #{a_call__.21} parent=27 // pred_fallthru
        _
    $region28: #{a_call__.21} parent=5 // pred_fallthru
      _
    %p1150 = scmp.le.s32.totalorder 2, %s8
    // Predicated region
    $region33: #{a_call__.21} parent=5 // pred_check
      %p1151 = pneg %p1150
    $region34: #{a_call__.21} parent=5 // pred_check_branch
      %1153 = sbr.rel (%p1151) target = $region36
    $region35: #{a_call__.21} parent=5 // pred_region
      %s1154 = ssub.s32 %s8, 2
      // Predicated region
      $region37: #{a_call__.21} parent=35 // pred_check
        %p1155 = pneg %p84
      $region38: #{a_call__.21} parent=35 // pred_check_branch
        %1157 = sbr.rel (%p1155) target = $region40
      $region39: #{a_call__.21} parent=35 // pred_region
        %s1158 = smul.u32 64, %s14
        %p1159 = scmp.lt.s32.totalorder %s1158, 255
        %s1160 = scalar_select %p1159, %s1158, 255
        %s1161 = smul.addr %s1160, 4
        %s1162 = scalar_lea.vmem %s2, %s1161
      $region40: #{a_call__.21} parent=35 // pred_fallthru
        _
    $region36: #{a_call__.21} parent=5 // pred_fallthru
      _
  $region6: #{a_call__.21} parent=0 // loop_footer
    %s12 = sadd.s32 1, %s8
  $region7: #{a_call__.21} parent=0 // loop_footer_branch
    %7 = sbr.rel target = $region3
  $region8: #{a_call__.21} parent=0 // loop_exit
    _

</llo_original>
